<compile_context>
chip_gen: v7x
topology: tpu7x:2x2x1
jax: 0.10.0
libtpu: 0.0.40
codegen_flags: <defaults>
</compile_context>

<pallas_src>
import jax
import jax.numpy as jnp
import numpy as np
from jax.experimental import pallas as pl
from jax.experimental.pallas import tpu as pltpu

# ---- small, TPU-friendly stand-in dims for llama-2-13b (5120 / 40 / 128 / 13824) ----
B, S, H = 2, 8, 256          # batch, seq, hidden
NH, DH = 2, 128              # attention heads, head_dim (H == NH * DH)
I = 512                      # MLP intermediate size
EPS = 1e-5                   # rms_norm_eps
ROPE_BASE = 10000.0


def llama_block_kernel(x_ref, cos_ref, sin_ref, mask_ref,
                       wqkv_ref, wo_ref, wgu_ref, wd_ref,
                       ln1_ref, ln2_ref,
                       out_ref, k_out_ref, v_out_ref):
    x = x_ref[...]                     # (B*S, H) f32, batch folded into rows
    cos = cos_ref[...]                 # (S, DH)  f32, batch-invariant
    sin = sin_ref[...]                 # (S, DH)  f32
    mask = mask_ref[...]               # (S, S)   additive causal mask

    # rotate_half(x) == sign * roll(x, DH//2); fold the sign into sin once.
    lane = jax.lax.broadcasted_iota(jnp.int32, (1, DH), 1)
    sin_s = sin * jnp.where(lane < DH // 2, -1.0, 1.0)

    # ---------- input RMSNorm (f32 math) -> bf16 activations for the MXU ----------
    var = jnp.mean(x * x, axis=-1, keepdims=True)
    xn = (x * jax.lax.rsqrt(var + EPS) * ln1_ref[...]).astype(jnp.bfloat16)

    # fused q/k/v projection: one (B*S, H) @ (H, 3H) bf16 matmul, f32 accumulate
    qkv = jnp.dot(xn, wqkv_ref[...], preferred_element_type=jnp.float32)
    q = qkv[:, 0 * H:1 * H]
    k = qkv[:, 1 * H:2 * H]
    v = qkv[:, 2 * H:3 * H]

    scale = 1.0 / (DH ** 0.5)
    ctx_rows = []
    for b in range(B):                 # static unroll; row slices sublane-aligned (S=8)
        rows = slice(b * S, (b + 1) * S)
        ctx_heads = []
        for h in range(NH):            # static unroll; head slices lane-aligned (DH=128)
            sl = slice(h * DH, (h + 1) * DH)
            q_bh = q[rows, sl]
            k_bh = k[rows, sl]
            v_bh = v[rows, sl]

            # RoPE via XLU roll (free slot) + sign-folded sin
            q_bh = q_bh * cos + pltpu.roll(q_bh, shift=DH // 2, axis=1) * sin_s
            k_bh = k_bh * cos + pltpu.roll(k_bh, shift=DH // 2, axis=1) * sin_s

            # scores = q @ k^T on the bf16 MXU path, softmax kept in f32
            scores = jax.lax.dot_general(
                q_bh.astype(jnp.bfloat16), k_bh.astype(jnp.bfloat16),
                (((1,), (1,)), ((), ())),
                preferred_element_type=jnp.float32) * scale + mask
            m = jnp.max(scores, axis=-1, keepdims=True)
            e = jnp.exp(scores - m)
            p = e * pl.reciprocal(jnp.sum(e, axis=-1, keepdims=True), approx=True)

            ctx = jnp.dot(p.astype(jnp.bfloat16), v_bh.astype(jnp.bfloat16),
                          preferred_element_type=jnp.float32)          # (S, DH)
            ctx_heads.append(ctx)

            # present key/value cache (post-RoPE k, raw v) -> (B, NH, S, DH)
            k_out_ref[b, h] = k_bh
            v_out_ref[b, h] = v_bh
        ctx_rows.append(jnp.concatenate(ctx_heads, axis=-1))            # (S, H)
    ctx_all = jnp.concatenate(ctx_rows, axis=0)                         # (B*S, H)

    # single o_proj matmul after the head loop (replaces per-head accumulation)
    attn_out = jnp.dot(ctx_all.astype(jnp.bfloat16), wo_ref[...],
                       preferred_element_type=jnp.float32)
    hidden = x + attn_out

    # ---------- post-attention RMSNorm + SiLU-gated MLP ----------
    var2 = jnp.mean(hidden * hidden, axis=-1, keepdims=True)
    hn = (hidden * jax.lax.rsqrt(var2 + EPS) * ln2_ref[...]).astype(jnp.bfloat16)

    # fused gate/up projection: (B*S, H) @ (H, 2I), lane-aligned column slices
    gu = jnp.dot(hn, wgu_ref[...], preferred_element_type=jnp.float32)
    gate = gu[:, :I]
    up = gu[:, I:]
    act = (gate * jax.nn.sigmoid(gate) * up).astype(jnp.bfloat16)       # SiLU(gate)*up
    mlp = jnp.dot(act, wd_ref[...], preferred_element_type=jnp.float32)

    out_ref[...] = hidden + mlp


@jax.jit
def llama_block(x, cos, sin, mask, packed_params):
    wqkv, wo, wgu, wd, ln1, ln2 = packed_params
    out, past_k, past_v = pl.pallas_call(
        llama_block_kernel,
        out_shape=(
            jax.ShapeDtypeStruct((B * S, H), jnp.float32),
            jax.ShapeDtypeStruct((B, NH, S, DH), jnp.float32),
            jax.ShapeDtypeStruct((B, NH, S, DH), jnp.float32),
        ),
        # no grid: whole problem fits VMEM at these dims -> single invocation,
        # no serial per-batch grid steps, no double-buffered weight copies.
    )(x.reshape(B * S, H), cos, sin, mask, wqkv, wo, wgu, wd, ln1, ln2)
    return out.reshape(B, S, H), past_k, past_v


# ---------------- glue: RoPE tables, causal mask, params ----------------

def rope_tables(seq_len):
    # HF LlamaRotaryEmbedding, position_ids = arange(S) (batch-invariant).
    inv_freq = 1.0 / (ROPE_BASE ** (jnp.arange(0, DH, 2, dtype=jnp.float32) / DH))
    pos = jnp.arange(seq_len, dtype=jnp.float32)
    freqs = pos[:, None] * inv_freq[None, :]
    emb = jnp.concatenate([freqs, freqs], axis=-1)          # (S, DH)
    return jnp.cos(emb), jnp.sin(emb)


def causal_mask(seq_len):
    i = jnp.arange(seq_len)[:, None]
    j = jnp.arange(seq_len)[None, :]
    return jnp.where(j <= i, 0.0, -1e9).astype(jnp.float32)  # (S, S)


def init_params(key):
    ks = jax.random.split(key, 7)
    sc = 0.02
    wq = sc * jax.random.normal(ks[0], (H, H), jnp.float32)
    wk = sc * jax.random.normal(ks[1], (H, H), jnp.float32)
    wv = sc * jax.random.normal(ks[2], (H, H), jnp.float32)
    wo = sc * jax.random.normal(ks[3], (H, H), jnp.float32)
    wg = sc * jax.random.normal(ks[4], (H, I), jnp.float32)
    wu = sc * jax.random.normal(ks[5], (H, I), jnp.float32)
    wd = sc * jax.random.normal(ks[6], (I, H), jnp.float32)
    ln1 = jnp.ones((1, H), jnp.float32)
    ln2 = jnp.ones((1, H), jnp.float32)
    return (wq, wk, wv, wo, wg, wu, wd, ln1, ln2)


def pack_params(params):
    """Fuse qkv / gate-up and cast weights to bf16 for the kernel."""
    wq, wk, wv, wo, wg, wu, wd, ln1, ln2 = params
    wqkv = jnp.concatenate([wq, wk, wv], axis=1).astype(jnp.bfloat16)   # (H, 3H)
    wgu = jnp.concatenate([wg, wu], axis=1).astype(jnp.bfloat16)        # (H, 2I)
    return (wqkv, wo.astype(jnp.bfloat16), wgu, wd.astype(jnp.bfloat16), ln1, ln2)


# ---------------- pure-JAX f32 reference (HF LlamaDecoderLayer semantics) ----------------

def reference(x, cos, sin, mask, params):
    wq, wk, wv, wo, wg, wu, wd, ln1, ln2 = params

    def rms(t, w):
        v = jnp.mean(t * t, axis=-1, keepdims=True)
        return t * jax.lax.rsqrt(v + EPS) * w

    xn = rms(x, ln1)
    q = xn @ wq
    k = xn @ wk
    v = xn @ wv

    def heads(t):
        return t.reshape(B, S, NH, DH).transpose(0, 2, 1, 3)

    q, k, v = heads(q), heads(k), heads(v)

    def rot_half(t):
        return jnp.concatenate([-t[..., DH // 2:], t[..., :DH // 2]], axis=-1)

    cos_b = jnp.broadcast_to(cos, (B, S, DH))[:, None, :, :]
    sin_b = jnp.broadcast_to(sin, (B, S, DH))[:, None, :, :]
    q = q * cos_b + rot_half(q) * sin_b
    k = k * cos_b + rot_half(k) * sin_b

    scores = jnp.einsum('bhsd,bhtd->bhst', q, k) / (DH ** 0.5) + mask[None, None]
    p = jax.nn.softmax(scores, axis=-1)
    ctx = jnp.einsum('bhst,bhtd->bhsd', p, v)
    ctx = ctx.transpose(0, 2, 1, 3).reshape(B, S, H)
    hidden = x + ctx @ wo

    hn = rms(hidden, ln2)
    mlp = (jax.nn.silu(hn @ wg) * (hn @ wu)) @ wd
    return hidden + mlp, k, v


if __name__ == "__main__":
    key = jax.random.PRNGKey(0)
    k_param, k_x = jax.random.split(key)

    params = init_params(k_param)
    packed = pack_params(params)

    hidden_states = jax.random.normal(k_x, (B, S, H), jnp.float32)
    cos, sin = rope_tables(S)       # batch-invariant (S, DH)
    mask = causal_mask(S)           # batch-invariant (S, S)

    out, past_k, past_v = llama_block(hidden_states, cos, sin, mask, packed)
    jax.block_until_ready((out, past_k, past_v))

    ref_out, ref_k, ref_v = reference(hidden_states, cos, sin, mask, params)
    np.testing.assert_allclose(np.asarray(out), np.asarray(ref_out), rtol=2e-2, atol=2e-2)
    np.testing.assert_allclose(np.asarray(past_k), np.asarray(ref_k), rtol=2e-2, atol=2e-2)
    np.testing.assert_allclose(np.asarray(past_v), np.asarray(ref_v), rtol=2e-2, atol=2e-2)

    print("KERNEL_OK")
</pallas_src>

<mosaic_0001>
module attributes {stable_mosaic.version = 11 : i64} {
  func.func @llama_block_kernel(%arg0: memref<16x256xf32, #tpu.memory_space<vmem>>, %arg1: memref<8x128xf32, #tpu.memory_space<vmem>>, %arg2: memref<8x128xf32, #tpu.memory_space<vmem>>, %arg3: memref<8x8xf32, #tpu.memory_space<vmem>>, %arg4: memref<256x768xbf16, #tpu.memory_space<vmem>>, %arg5: memref<256x256xbf16, #tpu.memory_space<vmem>>, %arg6: memref<256x1024xbf16, #tpu.memory_space<vmem>>, %arg7: memref<512x256xbf16, #tpu.memory_space<vmem>>, %arg8: memref<1x256xf32, #tpu.memory_space<vmem>>, %arg9: memref<1x256xf32, #tpu.memory_space<vmem>>, %arg10: memref<16x256xf32, #tpu.memory_space<vmem>>, %arg11: memref<2x2x8x128xf32, #tpu.memory_space<vmem>>, %arg12: memref<2x2x8x128xf32, #tpu.memory_space<vmem>>) attributes {dimension_semantics = [], scalar_prefetch = 0 : i64, scratch_operands = 0 : i64, tpu.core_type = #tpu.core_type<tc>} {
    %c0 = arith.constant 0 : index
    %c0_0 = arith.constant 0 : index
    %0 = vector.load %arg0[%c0, %c0_0] : memref<16x256xf32, #tpu.memory_space<vmem>>, vector<16x256xf32>
    %c0_1 = arith.constant 0 : index
    %c0_2 = arith.constant 0 : index
    %1 = vector.load %arg1[%c0_1, %c0_2] : memref<8x128xf32, #tpu.memory_space<vmem>>, vector<8x128xf32>
    %c0_3 = arith.constant 0 : index
    %c0_4 = arith.constant 0 : index
    %2 = vector.load %arg2[%c0_3, %c0_4] : memref<8x128xf32, #tpu.memory_space<vmem>>, vector<8x128xf32>
    %c0_5 = arith.constant 0 : index
    %c0_6 = arith.constant 0 : index
    %3 = vector.load %arg3[%c0_5, %c0_6] : memref<8x8xf32, #tpu.memory_space<vmem>>, vector<8x8xf32>
    %4 = tpu.iota {dimensions = array<i32: 1>} : vector<1x128xi32>
    %c64_i32 = arith.constant 64 : i32
    %5 = vector.broadcast %c64_i32 : i32 to vector<1x128xi32>
    %6 = arith.cmpi slt, %4, %5 : vector<1x128xi32>
    %cst = arith.constant -1.000000e+00 : f32
    %cst_7 = arith.constant 1.000000e+00 : f32
    %7 = vector.broadcast %cst : f32 to vector<1x128xf32>
    %8 = vector.broadcast %cst_7 : f32 to vector<1x128xf32>
    %9 = arith.select %6, %7, %8 : vector<1x128xi1>, vector<1x128xf32>
    %10 = vector.broadcast %9 : vector<1x128xf32> to vector<8x128xf32>
    %11 = arith.mulf %2, %10 : vector<8x128xf32>
    %12 = arith.mulf %0, %0 : vector<16x256xf32>
    %cst_8 = arith.constant dense<0.000000e+00> : vector<16xf32>
    %13 = vector.multi_reduction <add>, %12, %cst_8 [1] : vector<16x256xf32> to vector<16xf32>
    %14 = vector.shape_cast %13 : vector<16xf32> to vector<16x1xf32>
    %cst_9 = arith.constant 2.560000e+02 : f32
    %15 = vector.broadcast %cst_9 : f32 to vector<16x1xf32>
    %16 = arith.divf %14, %15 : vector<16x1xf32>
    %cst_10 = arith.constant 9.99999974E-6 : f32
    %17 = vector.broadcast %cst_10 : f32 to vector<16x1xf32>
    %18 = arith.addf %16, %17 : vector<16x1xf32>
    %19 = math.rsqrt %18 : vector<16x1xf32>
    %20 = vector.broadcast %19 : vector<16x1xf32> to vector<16x256xf32>
    %21 = arith.mulf %0, %20 : vector<16x256xf32>
    %c0_11 = arith.constant 0 : index
    %c0_12 = arith.constant 0 : index
    %22 = vector.load %arg8[%c0_11, %c0_12] : memref<1x256xf32, #tpu.memory_space<vmem>>, vector<1x256xf32>
    %23 = vector.broadcast %22 : vector<1x256xf32> to vector<16x256xf32>
    %24 = arith.mulf %21, %23 : vector<16x256xf32>
    %25 = arith.truncf %24 : vector<16x256xf32> to vector<16x256xbf16>
    %c0_13 = arith.constant 0 : index
    %c0_14 = arith.constant 0 : index
    %26 = vector.load %arg4[%c0_13, %c0_14] : memref<256x768xbf16, #tpu.memory_space<vmem>>, vector<256x768xbf16>
    %cst_15 = arith.constant dense<0.000000e+00> : vector<16x768xf32>
    %27 = tpu.matmul %25, %26, %cst_15 {dimension_numbers = #tpu.dot_dimension_numbers<[1], [0], [0], [1], [0, 0, 1, 1], [], []>} : vector<16x256xbf16>, vector<256x768xbf16>, vector<16x768xf32> -> vector<16x768xf32>
    %28 = vector.extract_strided_slice %27 {offsets = [0, 0], sizes = [16, 256], strides = [1, 1]} : vector<16x768xf32> to vector<16x256xf32>
    %29 = vector.extract_strided_slice %27 {offsets = [0, 256], sizes = [16, 256], strides = [1, 1]} : vector<16x768xf32> to vector<16x256xf32>
    %30 = vector.extract_strided_slice %27 {offsets = [0, 512], sizes = [16, 256], strides = [1, 1]} : vector<16x768xf32> to vector<16x256xf32>
    %31 = vector.extract_strided_slice %28 {offsets = [0, 0], sizes = [8, 128], strides = [1, 1]} : vector<16x256xf32> to vector<8x128xf32>
    %32 = vector.extract_strided_slice %29 {offsets = [0, 0], sizes = [8, 128], strides = [1, 1]} : vector<16x256xf32> to vector<8x128xf32>
    %33 = vector.extract_strided_slice %30 {offsets = [0, 0], sizes = [8, 128], strides = [1, 1]} : vector<16x256xf32> to vector<8x128xf32>
    %34 = arith.mulf %31, %1 : vector<8x128xf32>
    %c64_i32_16 = arith.constant 64 : i32
    %35 = tpu.dynamic_rotate %31 by %c64_i32_16 dim 1 : vector<8x128xf32>, i32 -> vector<8x128xf32>
    %36 = arith.mulf %35, %11 : vector<8x128xf32>
    %37 = arith.addf %34, %36 : vector<8x128xf32>
    %38 = arith.mulf %32, %1 : vector<8x128xf32>
    %c64_i32_17 = arith.constant 64 : i32
    %39 = tpu.dynamic_rotate %32 by %c64_i32_17 dim 1 : vector<8x128xf32>, i32 -> vector<8x128xf32>
    %40 = arith.mulf %39, %11 : vector<8x128xf32>
    %41 = arith.addf %38, %40 : vector<8x128xf32>
    %42 = arith.truncf %37 : vector<8x128xf32> to vector<8x128xbf16>
    %43 = arith.truncf %41 : vector<8x128xf32> to vector<8x128xbf16>
    %cst_18 = arith.constant dense<0.000000e+00> : vector<8x8xf32>
    %44 = tpu.matmul %42, %43, %cst_18 {dimension_numbers = #tpu.dot_dimension_numbers<[1], [1], [0], [0], [0, 0, 1, 0], [], []>} : vector<8x128xbf16>, vector<8x128xbf16>, vector<8x8xf32> -> vector<8x8xf32>
    %cst_19 = arith.constant 0.0883883461 : f32
    %45 = vector.broadcast %cst_19 : f32 to vector<8x8xf32>
    %46 = arith.mulf %44, %45 : vector<8x8xf32>
    %47 = arith.addf %46, %3 : vector<8x8xf32>
    %cst_20 = arith.constant dense<0xFF800000> : vector<8xf32>
    %48 = vector.multi_reduction <maximumf>, %47, %cst_20 [1] : vector<8x8xf32> to vector<8xf32>
    %49 = vector.shape_cast %48 : vector<8xf32> to vector<8x1xf32>
    %50 = vector.broadcast %49 : vector<8x1xf32> to vector<8x8xf32>
    %51 = arith.subf %47, %50 : vector<8x8xf32>
    %52 = math.exp %51 : vector<8x8xf32>
    %cst_21 = arith.constant dense<0.000000e+00> : vector<8xf32>
    %53 = vector.multi_reduction <add>, %52, %cst_21 [1] : vector<8x8xf32> to vector<8xf32>
    %54 = vector.shape_cast %53 : vector<8xf32> to vector<8x1xf32>
    %55 = tpu.reciprocal %54 {approx = true} : vector<8x1xf32> -> vector<8x1xf32>
    %56 = vector.broadcast %55 : vector<8x1xf32> to vector<8x8xf32>
    %57 = arith.mulf %52, %56 : vector<8x8xf32>
    %58 = arith.truncf %57 : vector<8x8xf32> to vector<8x8xbf16>
    %59 = arith.truncf %33 : vector<8x128xf32> to vector<8x128xbf16>
    %cst_22 = arith.constant dense<0.000000e+00> : vector<8x128xf32>
    %60 = tpu.matmul %58, %59, %cst_22 {dimension_numbers = #tpu.dot_dimension_numbers<[1], [0], [0], [1], [0, 0, 1, 1], [], []>} : vector<8x8xbf16>, vector<8x128xbf16>, vector<8x128xf32> -> vector<8x128xf32>
    %c0_23 = arith.constant 0 : index
    %c0_24 = arith.constant 0 : index
    %c0_25 = arith.constant 0 : index
    %c0_26 = arith.constant 0 : index
    %61 = vector.load %arg11[%c0_23, %c0_24, %c0_25, %c0_26] : memref<2x2x8x128xf32, #tpu.memory_space<vmem>>, vector<1x1x8x128xf32>
    %62 = vector.shape_cast %61 : vector<1x1x8x128xf32> to vector<8x128xf32>
    %63 = vector.shape_cast %41 : vector<8x128xf32> to vector<1x1x8x128xf32>
    tpu.vector_store %arg11[%c0_23, %c0_24, %c0_25, %c0_26], %63 {strides = array<i32>} : memref<2x2x8x128xf32, #tpu.memory_space<vmem>>, vector<1x1x8x128xf32>,
    %c0_27 = arith.constant 0 : index
    %c0_28 = arith.constant 0 : index
    %c0_29 = arith.constant 0 : index
    %c0_30 = arith.constant 0 : index
    %64 = vector.load %arg12[%c0_27, %c0_28, %c0_29, %c0_30] : memref<2x2x8x128xf32, #tpu.memory_space<vmem>>, vector<1x1x8x128xf32>
    %65 = vector.shape_cast %64 : vector<1x1x8x128xf32> to vector<8x128xf32>
    %66 = vector.shape_cast %33 : vector<8x128xf32> to vector<1x1x8x128xf32>
    tpu.vector_store %arg12[%c0_27, %c0_28, %c0_29, %c0_30], %66 {strides = array<i32>} : memref<2x2x8x128xf32, #tpu.memory_space<vmem>>, vector<1x1x8x128xf32>,
    %67 = vector.extract_strided_slice %28 {offsets = [0, 128], sizes = [8, 128], strides = [1, 1]} : vector<16x256xf32> to vector<8x128xf32>
    %68 = vector.extract_strided_slice %29 {offsets = [0, 128], sizes = [8, 128], strides = [1, 1]} : vector<16x256xf32> to vector<8x128xf32>
    %69 = vector.extract_strided_slice %30 {offsets = [0, 128], sizes = [8, 128], strides = [1, 1]} : vector<16x256xf32> to vector<8x128xf32>
    %70 = arith.mulf %67, %1 : vector<8x128xf32>
    %c64_i32_31 = arith.constant 64 : i32
    %71 = tpu.dynamic_rotate %67 by %c64_i32_31 dim 1 : vector<8x128xf32>, i32 -> vector<8x128xf32>
    %72 = arith.mulf %71, %11 : vector<8x128xf32>
    %73 = arith.addf %70, %72 : vector<8x128xf32>
    %74 = arith.mulf %68, %1 : vector<8x128xf32>
    %c64_i32_32 = arith.constant 64 : i32
    %75 = tpu.dynamic_rotate %68 by %c64_i32_32 dim 1 : vector<8x128xf32>, i32 -> vector<8x128xf32>
    %76 = arith.mulf %75, %11 : vector<8x128xf32>
    %77 = arith.addf %74, %76 : vector<8x128xf32>
    %78 = arith.truncf %73 : vector<8x128xf32> to vector<8x128xbf16>
    %79 = arith.truncf %77 : vector<8x128xf32> to vector<8x128xbf16>
    %cst_33 = arith.constant dense<0.000000e+00> : vector<8x8xf32>
    %80 = tpu.matmul %78, %79, %cst_33 {dimension_numbers = #tpu.dot_dimension_numbers<[1], [1], [0], [0], [0, 0, 1, 0], [], []>} : vector<8x128xbf16>, vector<8x128xbf16>, vector<8x8xf32> -> vector<8x8xf32>
    %cst_34 = arith.constant 0.0883883461 : f32
    %81 = vector.broadcast %cst_34 : f32 to vector<8x8xf32>
    %82 = arith.mulf %80, %81 : vector<8x8xf32>
    %83 = arith.addf %82, %3 : vector<8x8xf32>
    %cst_35 = arith.constant dense<0xFF800000> : vector<8xf32>
    %84 = vector.multi_reduction <maximumf>, %83, %cst_35 [1] : vector<8x8xf32> to vector<8xf32>
    %85 = vector.shape_cast %84 : vector<8xf32> to vector<8x1xf32>
    %86 = vector.broadcast %85 : vector<8x1xf32> to vector<8x8xf32>
    %87 = arith.subf %83, %86 : vector<8x8xf32>
    %88 = math.exp %87 : vector<8x8xf32>
    %cst_36 = arith.constant dense<0.000000e+00> : vector<8xf32>
    %89 = vector.multi_reduction <add>, %88, %cst_36 [1] : vector<8x8xf32> to vector<8xf32>
    %90 = vector.shape_cast %89 : vector<8xf32> to vector<8x1xf32>
    %91 = tpu.reciprocal %90 {approx = true} : vector<8x1xf32> -> vector<8x1xf32>
    %92 = vector.broadcast %91 : vector<8x1xf32> to vector<8x8xf32>
    %93 = arith.mulf %88, %92 : vector<8x8xf32>
    %94 = arith.truncf %93 : vector<8x8xf32> to vector<8x8xbf16>
    %95 = arith.truncf %69 : vector<8x128xf32> to vector<8x128xbf16>
    %cst_37 = arith.constant dense<0.000000e+00> : vector<8x128xf32>
    %96 = tpu.matmul %94, %95, %cst_37 {dimension_numbers = #tpu.dot_dimension_numbers<[1], [0], [0], [1], [0, 0, 1, 1], [], []>} : vector<8x8xbf16>, vector<8x128xbf16>, vector<8x128xf32> -> vector<8x128xf32>
    %c0_38 = arith.constant 0 : index
    %c1 = arith.constant 1 : index
    %c0_39 = arith.constant 0 : index
    %c0_40 = arith.constant 0 : index
    %97 = vector.load %arg11[%c0_38, %c1, %c0_39, %c0_40] : memref<2x2x8x128xf32, #tpu.memory_space<vmem>>, vector<1x1x8x128xf32>
    %98 = vector.shape_cast %97 : vector<1x1x8x128xf32> to vector<8x128xf32>
    %99 = vector.shape_cast %77 : vector<8x128xf32> to vector<1x1x8x128xf32>
    tpu.vector_store %arg11[%c0_38, %c1, %c0_39, %c0_40], %99 {strides = array<i32>} : memref<2x2x8x128xf32, #tpu.memory_space<vmem>>, vector<1x1x8x128xf32>,
    %c0_41 = arith.constant 0 : index
    %c1_42 = arith.constant 1 : index
    %c0_43 = arith.constant 0 : index
    %c0_44 = arith.constant 0 : index
    %100 = vector.load %arg12[%c0_41, %c1_42, %c0_43, %c0_44] : memref<2x2x8x128xf32, #tpu.memory_space<vmem>>, vector<1x1x8x128xf32>
    %101 = vector.shape_cast %100 : vector<1x1x8x128xf32> to vector<8x128xf32>
    %102 = vector.shape_cast %69 : vector<8x128xf32> to vector<1x1x8x128xf32>
    tpu.vector_store %arg12[%c0_41, %c1_42, %c0_43, %c0_44], %102 {strides = array<i32>} : memref<2x2x8x128xf32, #tpu.memory_space<vmem>>, vector<1x1x8x128xf32>,
    %103 = tpu.concatenate %60, %96 in 1 : vector<8x128xf32>, vector<8x128xf32> -> vector<8x256xf32>
    %104 = vector.extract_strided_slice %28 {offsets = [8, 0], sizes = [8, 128], strides = [1, 1]} : vector<16x256xf32> to vector<8x128xf32>
    %105 = vector.extract_strided_slice %29 {offsets = [8, 0], sizes = [8, 128], strides = [1, 1]} : vector<16x256xf32> to vector<8x128xf32>
    %106 = vector.extract_strided_slice %30 {offsets = [8, 0], sizes = [8, 128], strides = [1, 1]} : vector<16x256xf32> to vector<8x128xf32>
    %107 = arith.mulf %104, %1 : vector<8x128xf32>
    %c64_i32_45 = arith.constant 64 : i32
    %108 = tpu.dynamic_rotate %104 by %c64_i32_45 dim 1 : vector<8x128xf32>, i32 -> vector<8x128xf32>
    %109 = arith.mulf %108, %11 : vector<8x128xf32>
    %110 = arith.addf %107, %109 : vector<8x128xf32>
    %111 = arith.mulf %105, %1 : vector<8x128xf32>
    %c64_i32_46 = arith.constant 64 : i32
    %112 = tpu.dynamic_rotate %105 by %c64_i32_46 dim 1 : vector<8x128xf32>, i32 -> vector<8x128xf32>
    %113 = arith.mulf %112, %11 : vector<8x128xf32>
    %114 = arith.addf %111, %113 : vector<8x128xf32>
    %115 = arith.truncf %110 : vector<8x128xf32> to vector<8x128xbf16>
    %116 = arith.truncf %114 : vector<8x128xf32> to vector<8x128xbf16>
    %cst_47 = arith.constant dense<0.000000e+00> : vector<8x8xf32>
    %117 = tpu.matmul %115, %116, %cst_47 {dimension_numbers = #tpu.dot_dimension_numbers<[1], [1], [0], [0], [0, 0, 1, 0], [], []>} : vector<8x128xbf16>, vector<8x128xbf16>, vector<8x8xf32> -> vector<8x8xf32>
    %cst_48 = arith.constant 0.0883883461 : f32
    %118 = vector.broadcast %cst_48 : f32 to vector<8x8xf32>
    %119 = arith.mulf %117, %118 : vector<8x8xf32>
    %120 = arith.addf %119, %3 : vector<8x8xf32>
    %cst_49 = arith.constant dense<0xFF800000> : vector<8xf32>
    %121 = vector.multi_reduction <maximumf>, %120, %cst_49 [1] : vector<8x8xf32> to vector<8xf32>
    %122 = vector.shape_cast %121 : vector<8xf32> to vector<8x1xf32>
    %123 = vector.broadcast %122 : vector<8x1xf32> to vector<8x8xf32>
    %124 = arith.subf %120, %123 : vector<8x8xf32>
    %125 = math.exp %124 : vector<8x8xf32>
    %cst_50 = arith.constant dense<0.000000e+00> : vector<8xf32>
    %126 = vector.multi_reduction <add>, %125, %cst_50 [1] : vector<8x8xf32> to vector<8xf32>
    %127 = vector.shape_cast %126 : vector<8xf32> to vector<8x1xf32>
    %128 = tpu.reciprocal %127 {approx = true} : vector<8x1xf32> -> vector<8x1xf32>
    %129 = vector.broadcast %128 : vector<8x1xf32> to vector<8x8xf32>
    %130 = arith.mulf %125, %129 : vector<8x8xf32>
    %131 = arith.truncf %130 : vector<8x8xf32> to vector<8x8xbf16>
    %132 = arith.truncf %106 : vector<8x128xf32> to vector<8x128xbf16>
    %cst_51 = arith.constant dense<0.000000e+00> : vector<8x128xf32>
    %133 = tpu.matmul %131, %132, %cst_51 {dimension_numbers = #tpu.dot_dimension_numbers<[1], [0], [0], [1], [0, 0, 1, 1], [], []>} : vector<8x8xbf16>, vector<8x128xbf16>, vector<8x128xf32> -> vector<8x128xf32>
    %c1_52 = arith.constant 1 : index
    %c0_53 = arith.constant 0 : index
    %c0_54 = arith.constant 0 : index
    %c0_55 = arith.constant 0 : index
    %134 = vector.load %arg11[%c1_52, %c0_53, %c0_54, %c0_55] : memref<2x2x8x128xf32, #tpu.memory_space<vmem>>, vector<1x1x8x128xf32>
    %135 = vector.shape_cast %134 : vector<1x1x8x128xf32> to vector<8x128xf32>
    %136 = vector.shape_cast %114 : vector<8x128xf32> to vector<1x1x8x128xf32>
    tpu.vector_store %arg11[%c1_52, %c0_53, %c0_54, %c0_55], %136 {strides = array<i32>} : memref<2x2x8x128xf32, #tpu.memory_space<vmem>>, vector<1x1x8x128xf32>,
    %c1_56 = arith.constant 1 : index
    %c0_57 = arith.constant 0 : index
    %c0_58 = arith.constant 0 : index
    %c0_59 = arith.constant 0 : index
    %137 = vector.load %arg12[%c1_56, %c0_57, %c0_58, %c0_59] : memref<2x2x8x128xf32, #tpu.memory_space<vmem>>, vector<1x1x8x128xf32>
    %138 = vector.shape_cast %137 : vector<1x1x8x128xf32> to vector<8x128xf32>
    %139 = vector.shape_cast %106 : vector<8x128xf32> to vector<1x1x8x128xf32>
    tpu.vector_store %arg12[%c1_56, %c0_57, %c0_58, %c0_59], %139 {strides = array<i32>} : memref<2x2x8x128xf32, #tpu.memory_space<vmem>>, vector<1x1x8x128xf32>,
    %140 = vector.extract_strided_slice %28 {offsets = [8, 128], sizes = [8, 128], strides = [1, 1]} : vector<16x256xf32> to vector<8x128xf32>
    %141 = vector.extract_strided_slice %29 {offsets = [8, 128], sizes = [8, 128], strides = [1, 1]} : vector<16x256xf32> to vector<8x128xf32>
    %142 = vector.extract_strided_slice %30 {offsets = [8, 128], sizes = [8, 128], strides = [1, 1]} : vector<16x256xf32> to vector<8x128xf32>
    %143 = arith.mulf %140, %1 : vector<8x128xf32>
    %c64_i32_60 = arith.constant 64 : i32
    %144 = tpu.dynamic_rotate %140 by %c64_i32_60 dim 1 : vector<8x128xf32>, i32 -> vector<8x128xf32>
    %145 = arith.mulf %144, %11 : vector<8x128xf32>
    %146 = arith.addf %143, %145 : vector<8x128xf32>
    %147 = arith.mulf %141, %1 : vector<8x128xf32>
    %c64_i32_61 = arith.constant 64 : i32
    %148 = tpu.dynamic_rotate %141 by %c64_i32_61 dim 1 : vector<8x128xf32>, i32 -> vector<8x128xf32>
    %149 = arith.mulf %148, %11 : vector<8x128xf32>
    %150 = arith.addf %147, %149 : vector<8x128xf32>
    %151 = arith.truncf %146 : vector<8x128xf32> to vector<8x128xbf16>
    %152 = arith.truncf %150 : vector<8x128xf32> to vector<8x128xbf16>
    %cst_62 = arith.constant dense<0.000000e+00> : vector<8x8xf32>
    %153 = tpu.matmul %151, %152, %cst_62 {dimension_numbers = #tpu.dot_dimension_numbers<[1], [1], [0], [0], [0, 0, 1, 0], [], []>} : vector<8x128xbf16>, vector<8x128xbf16>, vector<8x8xf32> -> vector<8x8xf32>
    %cst_63 = arith.constant 0.0883883461 : f32
    %154 = vector.broadcast %cst_63 : f32 to vector<8x8xf32>
    %155 = arith.mulf %153, %154 : vector<8x8xf32>
    %156 = arith.addf %155, %3 : vector<8x8xf32>
    %cst_64 = arith.constant dense<0xFF800000> : vector<8xf32>
    %157 = vector.multi_reduction <maximumf>, %156, %cst_64 [1] : vector<8x8xf32> to vector<8xf32>
    %158 = vector.shape_cast %157 : vector<8xf32> to vector<8x1xf32>
    %159 = vector.broadcast %158 : vector<8x1xf32> to vector<8x8xf32>
    %160 = arith.subf %156, %159 : vector<8x8xf32>
    %161 = math.exp %160 : vector<8x8xf32>
    %cst_65 = arith.constant dense<0.000000e+00> : vector<8xf32>
    %162 = vector.multi_reduction <add>, %161, %cst_65 [1] : vector<8x8xf32> to vector<8xf32>
    %163 = vector.shape_cast %162 : vector<8xf32> to vector<8x1xf32>
    %164 = tpu.reciprocal %163 {approx = true} : vector<8x1xf32> -> vector<8x1xf32>
    %165 = vector.broadcast %164 : vector<8x1xf32> to vector<8x8xf32>
    %166 = arith.mulf %161, %165 : vector<8x8xf32>
    %167 = arith.truncf %166 : vector<8x8xf32> to vector<8x8xbf16>
    %168 = arith.truncf %142 : vector<8x128xf32> to vector<8x128xbf16>
    %cst_66 = arith.constant dense<0.000000e+00> : vector<8x128xf32>
    %169 = tpu.matmul %167, %168, %cst_66 {dimension_numbers = #tpu.dot_dimension_numbers<[1], [0], [0], [1], [0, 0, 1, 1], [], []>} : vector<8x8xbf16>, vector<8x128xbf16>, vector<8x128xf32> -> vector<8x128xf32>
    %c1_67 = arith.constant 1 : index
    %c1_68 = arith.constant 1 : index
    %c0_69 = arith.constant 0 : index
    %c0_70 = arith.constant 0 : index
    %170 = vector.load %arg11[%c1_67, %c1_68, %c0_69, %c0_70] : memref<2x2x8x128xf32, #tpu.memory_space<vmem>>, vector<1x1x8x128xf32>
    %171 = vector.shape_cast %170 : vector<1x1x8x128xf32> to vector<8x128xf32>
    %172 = vector.shape_cast %150 : vector<8x128xf32> to vector<1x1x8x128xf32>
    tpu.vector_store %arg11[%c1_67, %c1_68, %c0_69, %c0_70], %172 {strides = array<i32>} : memref<2x2x8x128xf32, #tpu.memory_space<vmem>>, vector<1x1x8x128xf32>,
    %c1_71 = arith.constant 1 : index
    %c1_72 = arith.constant 1 : index
    %c0_73 = arith.constant 0 : index
    %c0_74 = arith.constant 0 : index
    %173 = vector.load %arg12[%c1_71, %c1_72, %c0_73, %c0_74] : memref<2x2x8x128xf32, #tpu.memory_space<vmem>>, vector<1x1x8x128xf32>
    %174 = vector.shape_cast %173 : vector<1x1x8x128xf32> to vector<8x128xf32>
    %175 = vector.shape_cast %142 : vector<8x128xf32> to vector<1x1x8x128xf32>
    tpu.vector_store %arg12[%c1_71, %c1_72, %c0_73, %c0_74], %175 {strides = array<i32>} : memref<2x2x8x128xf32, #tpu.memory_space<vmem>>, vector<1x1x8x128xf32>,
    %176 = tpu.concatenate %133, %169 in 1 : vector<8x128xf32>, vector<8x128xf32> -> vector<8x256xf32>
    %177 = tpu.concatenate %103, %176 in 0 : vector<8x256xf32>, vector<8x256xf32> -> vector<16x256xf32>
    %178 = arith.truncf %177 : vector<16x256xf32> to vector<16x256xbf16>
    %c0_75 = arith.constant 0 : index
    %c0_76 = arith.constant 0 : index
    %179 = vector.load %arg5[%c0_75, %c0_76] : memref<256x256xbf16, #tpu.memory_space<vmem>>, vector<256x256xbf16>
    %cst_77 = arith.constant dense<0.000000e+00> : vector<16x256xf32>
    %180 = tpu.matmul %178, %179, %cst_77 {dimension_numbers = #tpu.dot_dimension_numbers<[1], [0], [0], [1], [0, 0, 1, 1], [], []>} : vector<16x256xbf16>, vector<256x256xbf16>, vector<16x256xf32> -> vector<16x256xf32>
    %181 = arith.addf %0, %180 : vector<16x256xf32>
    %182 = arith.mulf %181, %181 : vector<16x256xf32>
    %cst_78 = arith.constant dense<0.000000e+00> : vector<16xf32>
    %183 = vector.multi_reduction <add>, %182, %cst_78 [1] : vector<16x256xf32> to vector<16xf32>
    %184 = vector.shape_cast %183 : vector<16xf32> to vector<16x1xf32>
    %cst_79 = arith.constant 2.560000e+02 : f32
    %185 = vector.broadcast %cst_79 : f32 to vector<16x1xf32>
    %186 = arith.divf %184, %185 : vector<16x1xf32>
    %cst_80 = arith.constant 9.99999974E-6 : f32
    %187 = vector.broadcast %cst_80 : f32 to vector<16x1xf32>
    %188 = arith.addf %186, %187 : vector<16x1xf32>
    %189 = math.rsqrt %188 : vector<16x1xf32>
    %190 = vector.broadcast %189 : vector<16x1xf32> to vector<16x256xf32>
    %191 = arith.mulf %181, %190 : vector<16x256xf32>
    %c0_81 = arith.constant 0 : index
    %c0_82 = arith.constant 0 : index
    %192 = vector.load %arg9[%c0_81, %c0_82] : memref<1x256xf32, #tpu.memory_space<vmem>>, vector<1x256xf32>
    %193 = vector.broadcast %192 : vector<1x256xf32> to vector<16x256xf32>
    %194 = arith.mulf %191, %193 : vector<16x256xf32>
    %195 = arith.truncf %194 : vector<16x256xf32> to vector<16x256xbf16>
    %c0_83 = arith.constant 0 : index
    %c0_84 = arith.constant 0 : index
    %196 = vector.load %arg6[%c0_83, %c0_84] : memref<256x1024xbf16, #tpu.memory_space<vmem>>, vector<256x1024xbf16>
    %cst_85 = arith.constant dense<0.000000e+00> : vector<16x1024xf32>
    %197 = tpu.matmul %195, %196, %cst_85 {dimension_numbers = #tpu.dot_dimension_numbers<[1], [0], [0], [1], [0, 0, 1, 1], [], []>} : vector<16x256xbf16>, vector<256x1024xbf16>, vector<16x1024xf32> -> vector<16x1024xf32>
    %198 = vector.extract_strided_slice %197 {offsets = [0, 0], sizes = [16, 512], strides = [1, 1]} : vector<16x1024xf32> to vector<16x512xf32>
    %199 = vector.extract_strided_slice %197 {offsets = [0, 512], sizes = [16, 512], strides = [1, 1]} : vector<16x1024xf32> to vector<16x512xf32>
    %200 = arith.negf %198 : vector<16x512xf32>
    %201 = math.exp %200 : vector<16x512xf32>
    %cst_86 = arith.constant 1.000000e+00 : f32
    %202 = vector.broadcast %cst_86 : f32 to vector<16x512xf32>
    %203 = arith.addf %202, %201 : vector<16x512xf32>
    %204 = arith.divf %202, %203 : vector<16x512xf32>
    %205 = arith.mulf %198, %204 : vector<16x512xf32>
    %206 = arith.mulf %205, %199 : vector<16x512xf32>
    %207 = arith.truncf %206 : vector<16x512xf32> to vector<16x512xbf16>
    %c0_87 = arith.constant 0 : index
    %c0_88 = arith.constant 0 : index
    %208 = vector.load %arg7[%c0_87, %c0_88] : memref<512x256xbf16, #tpu.memory_space<vmem>>, vector<512x256xbf16>
    %cst_89 = arith.constant dense<0.000000e+00> : vector<16x256xf32>
    %209 = tpu.matmul %207, %208, %cst_89 {dimension_numbers = #tpu.dot_dimension_numbers<[1], [0], [0], [1], [0, 0, 1, 1], [], []>} : vector<16x512xbf16>, vector<512x256xbf16>, vector<16x256xf32> -> vector<16x256xf32>
    %210 = arith.addf %181, %209 : vector<16x256xf32>
    %c0_90 = arith.constant 0 : index
    %c0_91 = arith.constant 0 : index
    %211 = vector.load %arg10[%c0_90, %c0_91] : memref<16x256xf32, #tpu.memory_space<vmem>>, vector<16x256xf32>
    tpu.vector_store %arg10[%c0_90, %c0_91], %210 {strides = array<i32>} : memref<16x256xf32, #tpu.memory_space<vmem>>, vector<16x256xf32>,
    return
  }
}

</mosaic_0001>

<llo_original>
// kernel: llama_block.1
$region0: #{llama_block.1}
  #allocation0 [shape = 'u32[]', space=smem, size = 0x4, offset = 0x4, fixed_abs, tag = 'smem constant byte address 0x4 - core index']
  #allocation1 [shape = 'u32[144,128]{1,0:T(1,128)}', space=vmem, size = 0x12000, scoped, tag = 'internal scratch']
  %s0 = inlined_call_operand.hbm [shape: f32[16,256], index: 0, kind: input, shape index: {}]
  %s1 = inlined_call_operand.hbm [shape: f32[8,128], index: 1, kind: input, shape index: {}]
  %s2 = inlined_call_operand.vmem [shape: f32[8,128], index: 2, kind: input, shape index: {}]
  %s3 = inlined_call_operand.hbm [shape: f32[8,8], index: 3, kind: input, shape index: {}]
  %s4 = inlined_call_operand.hbm [shape: bf16[256,768], index: 4, kind: input, shape index: {}]
  %s5 = inlined_call_operand.hbm [shape: bf16[256,256], index: 5, kind: input, shape index: {}]
  %s6 = inlined_call_operand.hbm [shape: bf16[256,1024], index: 6, kind: input, shape index: {}]
  %s7 = inlined_call_operand.hbm [shape: bf16[512,256], index: 7, kind: input, shape index: {}]
  %s8 = inlined_call_operand.vmem [shape: f32[1,256], index: 8, kind: input, shape index: {}]
  %s9 = inlined_call_operand.vmem [shape: f32[1,256], index: 9, kind: input, shape index: {}]
  %s10 = inlined_call_operand.hbm [shape: f32[16,256], index: 10, kind: output, shape index: {0}]
  %s11 = inlined_call_operand.hbm [shape: f32[2,2,8,128], index: 11, kind: output, shape index: {1}]
  %s12 = inlined_call_operand.hbm [shape: f32[2,2,8,128], index: 12, kind: output, shape index: {2}]
  %13 = xla_tuple %s10, %s11, %s12
  %s14 = sld [smem:[#allocation0]]
  $region94: #{llama_block.1} parent=0
    _
  %s16 = ssub.s32 1, %s14
  %s17 = scalar_select 0, %s16, %s14
  $region1: #{llama_block.1} parent=0
    #allocation2 [shape = 'u8[16384]{0}', space=vmem, size = 0x4000, scoped, tag = 'input window, operand 0, single buffered']
    #allocation3 [shape = 's32[1]{0}', space=sflag, size = 0x4, scoped, tag = 'scoped memory for llama_block.1']
    #allocation4 [shape = 's32[1]{0}', space=sflag, size = 0x4, scoped, tag = 'scoped memory for llama_block.1']
    #allocation5 [shape = 'u8[4096]{0}', space=vmem, size = 0x1000, scoped, tag = 'input window, operand 1, single buffered']
    #allocation6 [shape = 's32[1]{0}', space=sflag, size = 0x4, scoped, tag = 'scoped memory for llama_block.1']
    #allocation7 [shape = 'u8[4096]{0}', space=vmem, size = 0x1000, scoped, tag = 'input window, operand 3, single buffered']
    #allocation8 [shape = 'u8[393216]{0}', space=vmem, size = 0x60000, scoped, tag = 'input window, operand 4, single buffered']
    #allocation9 [shape = 's32[1]{0}', space=sflag, size = 0x4, scoped, tag = 'scoped memory for llama_block.1']
    #allocation10 [shape = 'u8[131072]{0}', space=vmem, size = 0x20000, scoped, tag = 'input window, operand 5, single buffered']
    #allocation11 [shape = 'u8[524288]{0}', space=vmem, size = 0x80000, scoped, tag = 'input window, operand 6, single buffered']
    #allocation12 [shape = 's32[1]{0}', space=sflag, size = 0x4, scoped, tag = 'scoped memory for llama_block.1']
    #allocation13 [shape = 'u8[262144]{0}', space=vmem, size = 0x40000, scoped, tag = 'input window, operand 7, single buffered']
    #allocation14 [shape = 'u8[16384]{0}', space=vmem, size = 0x4000, scoped, tag = 'output window, operand 0, single buffered']
    #allocation15 [shape = 'u8[16384]{0}', space=vmem, size = 0x4000, scoped, tag = 'output window, operand 1, single buffered']
    #allocation16 [shape = 's32[1]{0}', space=sflag, size = 0x4, scoped, tag = 'scoped memory for llama_block.1']
    #allocation17 [shape = 'u8[16384]{0}', space=vmem, size = 0x4000, scoped, tag = 'output window, operand 2, single buffered']
    %18 = vsyncpa [#allocation3], 0
    %19 = vsyncpa [#allocation6], 0
    %20 = vsyncpa [#allocation9], 0
    %21 = vsyncpa [#allocation12], 0
    %22 = vsyncpa [#allocation4], 0
    %23 = vsyncpa [#allocation16], 0
    // Predicated region
    $region2: #{llama_block.1} parent=1 // pred_check
      _
    $region3: #{llama_block.1} parent=1 // pred_check_branch
      %25 = sbr.rel (0) target = $region5
    $region4: #{llama_block.1} parent=1 // pred_region
      %s27 = ssub.s32 512, 512
      %28 = vsyncadd [#allocation3], %s27
      %s29 = sshll.u32 [#allocation2], 4
      %s30 = int_to_ptr.vmem [resolvable:$true] %s29
      %35 = dma.hbm_to_vmem [thread:$0]  %s0, 512, %s30, [#allocation3], 256, 256, 16
    $region5: #{llama_block.1} parent=1 // pred_fallthru
      _
    // Predicated region
    $region6: #{llama_block.1} parent=1 // pred_check
      _
    $region7: #{llama_block.1} parent=1 // pred_check_branch
      %37 = sbr.rel (0) target = $region9
    $region8: #{llama_block.1} parent=1 // pred_region
      %s39 = ssub.s32 128, 128
      %40 = vsyncadd [#allocation6], %s39
      %s42 = sshll.u32 [#allocation5], 4
      %s43 = int_to_ptr.vmem [resolvable:$true] %s42
      %45 = dma.hbm_to_vmem [thread:$0]  %s1, 128, %s43, [#allocation6]
    $region9: #{llama_block.1} parent=1 // pred_fallthru
      _
    // Predicated region
    $region10: #{llama_block.1} parent=1 // pred_check
      _
    $region11: #{llama_block.1} parent=1 // pred_check_branch
      %47 = sbr.rel (0) target = $region13
    $region12: #{llama_block.1} parent=1 // pred_region
      _
    $region13: #{llama_block.1} parent=1 // pred_fallthru
      _
    // Predicated region
    $region14: #{llama_block.1} parent=1 // pred_check
      _
    $region15: #{llama_block.1} parent=1 // pred_check_branch
      %49 = sbr.rel (0) target = $region17
    $region16: #{llama_block.1} parent=1 // pred_region
      %s51 = ssub.s32 128, 128
      %52 = vsyncadd [#allocation6], %s51
      %s54 = sshll.u32 [#allocation7], 4
      %s55 = int_to_ptr.vmem [resolvable:$true] %s54
      %57 = dma.hbm_to_vmem [thread:$0]  %s3, 128, %s55, [#allocation6]
    $region17: #{llama_block.1} parent=1 // pred_fallthru
      _
    // Predicated region
    $region18: #{llama_block.1} parent=1 // pred_check
      _
    $region19: #{llama_block.1} parent=1 // pred_check_branch
      %59 = sbr.rel (0) target = $region21
    $region20: #{llama_block.1} parent=1 // pred_region
      %s61 = ssub.s32 12288, 12288
      %62 = vsyncadd [#allocation9], %s61
      %s63 = sshll.u32 [#allocation8], 4
      %s64 = int_to_ptr.vmem [resolvable:$true] %s63
      %69 = dma.hbm_to_vmem [thread:$0]  %s4, 12288, %s64, [#allocation9], 384, 384, 24
    $region21: #{llama_block.1} parent=1 // pred_fallthru
      _
    // Predicated region
    $region22: #{llama_block.1} parent=1 // pred_check
      _
    $region23: #{llama_block.1} parent=1 // pred_check_branch
      %71 = sbr.rel (0) target = $region25
    $region24: #{llama_block.1} parent=1 // pred_region
      %s73 = ssub.s32 4096, 4096
      %74 = vsyncadd [#allocation9], %s73
      %s75 = sshll.u32 [#allocation10], 4
      %s76 = int_to_ptr.vmem [resolvable:$true] %s75
      %81 = dma.hbm_to_vmem [thread:$0]  %s5, 4096, %s76, [#allocation9], 128, 128, 8
    $region25: #{llama_block.1} parent=1 // pred_fallthru
      _
    // Predicated region
    $region26: #{llama_block.1} parent=1 // pred_check
      _
    $region27: #{llama_block.1} parent=1 // pred_check_branch
      %83 = sbr.rel (0) target = $region29
    $region28: #{llama_block.1} parent=1 // pred_region
      %s85 = ssub.s32 16384, 16384
      %86 = vsyncadd [#allocation12], %s85
      %s87 = sshll.u32 [#allocation11], 4
      %s88 = int_to_ptr.vmem [resolvable:$true] %s87
      %93 = dma.hbm_to_vmem [thread:$0]  %s6, 16384, %s88, [#allocation12], 512, 512, 32
    $region29: #{llama_block.1} parent=1 // pred_fallthru
      _
    // Predicated region
    $region30: #{llama_block.1} parent=1 // pred_check
      _
    $region31: #{llama_block.1} parent=1 // pred_check_branch
      %95 = sbr.rel (0) target = $region33
    $region32: #{llama_block.1} parent=1 // pred_region
      %s97 = ssub.s32 8192, 8192
      %98 = vsyncadd [#allocation12], %s97
      %s99 = sshll.u32 [#allocation13], 4
      %s100 = int_to_ptr.vmem [resolvable:$true] %s99
      %105 = dma.hbm_to_vmem [thread:$0]  %s7, 8192, %s100, [#allocation12], 128, 128, 8
    $region33: #{llama_block.1} parent=1 // pred_fallthru
      _
    // Predicated region
    $region34: #{llama_block.1} parent=1 // pred_check
      _
    $region35: #{llama_block.1} parent=1 // pred_check_branch
      %107 = sbr.rel (0) target = $region37
    $region36: #{llama_block.1} parent=1 // pred_region
      _
    $region37: #{llama_block.1} parent=1 // pred_fallthru
      _
    // Predicated region
    $region38: #{llama_block.1} parent=1 // pred_check
      _
    $region39: #{llama_block.1} parent=1 // pred_check_branch
      %109 = sbr.rel (0) target = $region41
    $region40: #{llama_block.1} parent=1 // pred_region
      _
    $region41: #{llama_block.1} parent=1 // pred_fallthru
      _
    // Predicated region
    $region42: #{llama_block.1} parent=1 // pred_check
      _
    $region43: #{llama_block.1} parent=1 // pred_check_branch
      %111 = sbr.rel (0) target = $region45
    $region44: #{llama_block.1} parent=1 // pred_region
      %112 = dma.done [#allocation3], 512
    $region45: #{llama_block.1} parent=1 // pred_fallthru
      _
    // Predicated region
    $region46: #{llama_block.1} parent=1 // pred_check
      _
    $region47: #{llama_block.1} parent=1 // pred_check_branch
      %114 = sbr.rel (0) target = $region49
    $region48: #{llama_block.1} parent=1 // pred_region
      %115 = dma.done [#allocation6], 128
    $region49: #{llama_block.1} parent=1 // pred_fallthru
      _
    // Predicated region
    $region50: #{llama_block.1} parent=1 // pred_check
      _
    $region51: #{llama_block.1} parent=1 // pred_check_branch
      %117 = sbr.rel (0) target = $region53
    $region52: #{llama_block.1} parent=1 // pred_region
      %118 = dma.done [#allocation6], 128
    $region53: #{llama_block.1} parent=1 // pred_fallthru
      _
    // Predicated region
    $region54: #{llama_block.1} parent=1 // pred_check
      _
    $region55: #{llama_block.1} parent=1 // pred_check_branch
      %120 = sbr.rel (0) target = $region57
    $region56: #{llama_block.1} parent=1 // pred_region
      %121 = dma.done [#allocation9], 12288
    $region57: #{llama_block.1} parent=1 // pred_fallthru
      _
    // Predicated region
    $region58: #{llama_block.1} parent=1 // pred_check
      _
    $region59: #{llama_block.1} parent=1 // pred_check_branch
      %123 = sbr.rel (0) target = $region61
    $region60: #{llama_block.1} parent=1 // pred_region
      %124 = dma.done [#allocation9], 4096
    $region61: #{llama_block.1} parent=1 // pred_fallthru
      _
    // Predicated region
    $region62: #{llama_block.1} parent=1 // pred_check
      _
    $region63: #{llama_block.1} parent=1 // pred_check_branch
      %126 = sbr.rel (0) target = $region65
    $region64: #{llama_block.1} parent=1 // pred_region
      %127 = dma.done [#allocation12], 16384
    $region65: #{llama_block.1} parent=1 // pred_fallthru
      _
    // Predicated region
    $region66: #{llama_block.1} parent=1 // pred_check
      _
    $region67: #{llama_block.1} parent=1 // pred_check_branch
      %129 = sbr.rel (0) target = $region69
    $region68: #{llama_block.1} parent=1 // pred_region
      %130 = dma.done [#allocation12], 8192
    $region69: #{llama_block.1} parent=1 // pred_fallthru
      _
    %v132 = vld [vmem:[#allocation2] sm:$0xff]
    %v133 = vld [vmem:[#allocation2 + $0x8] sm:$0xff]
    %v134 = vld [vmem:[#allocation2 + $0x10] sm:$0xff]
    %v135 = vld [vmem:[#allocation2 + $0x18] sm:$0xff]
    %v136 = vld [vmem:[#allocation5] sm:$0xff]
    %v137 = vld [vmem:[%s2] sm:$0xff]
    %v138 = vld [vmem:[#allocation7] sm:$0xff]
    %v139 = vlaneseq
    %v140 = vand.u32 %v139, 127
    %vm141 = vcmp.lt.s32.totalorder %v140, 64
    %v142 = vsel %vm141, -1.0, 1.0
    %v143 = vmul.f32 %v137, %v142
    %v144 = vmul.f32 %v132, %v132
    %v145 = vmul.f32 %v133, %v133
    %v146 = vmul.f32 %v134, %v134
    %v147 = vmul.f32 %v135, %v135
    %v148 = vadd.f32 %v144, %v145
    %149 = vadd.xlane.f32.xlu0 %v148
    %v150 = vpop.xlane.xlu0 %149
    %v151 = vadd.f32 %v146, %v147
    %152 = vadd.xlane.f32.xlu0 %v151
    %v153 = vpop.xlane.xlu0 %152
    %v154 = vrcp.pop 256.0
    %v155 = vmul.f32 %v150, %v154
    %v156 = vmul.f32 %v153, %v154
    %v157 = vadd.f32 %v155, 1e-05
    %v158 = vadd.f32 %v156, 1e-05
    %v159 = vrsqrt.pop %v157
    %v160 = vrsqrt.pop %v158
    %v161 = vmul.f32 %v132, %v159
    %v162 = vmul.f32 %v133, %v159
    %v163 = vmul.f32 %v134, %v160
    %v164 = vmul.f32 %v135, %v160
    %v165 = vld [vmem:[%s8] sm:$0x3]
    %v167 = vlaneseq
    %v168 = vshrl.u32 %v167, 7
    %v169 = vsub.s32 0, %v168
    %v170 = vrot.slane %v165, %v169
    %v171 = vlaneseq
    %v172 = vshrl.u32 %v171, 7
    %v173 = vsub.s32 1, %v172
    %v174 = vrot.slane %v165, %v173
    %v177 = vmul.f32 %v161, %v170
    %v178 = vmul.f32 %v162, %v174
    %v179 = vmul.f32 %v163, %v170
    %v180 = vmul.f32 %v164, %v174
    %v181 = vpack.c.bf16 %v179, %v177
    %v182 = vpack.c.bf16 %v180, %v178
    %v183 = vld [vmem:[#allocation8] sm:$0xff]
    %v184 = vld [vmem:[#allocation8 + $0x8] sm:$0xff]
    %v185 = vld [vmem:[#allocation8 + $0x10] sm:$0xff]
    %v186 = vld [vmem:[#allocation8 + $0x18] sm:$0xff]
    %v187 = vld [vmem:[#allocation8 + $0x20] sm:$0xff]
    %v188 = vld [vmem:[#allocation8 + $0x28] sm:$0xff]
    %v189 = vld [vmem:[#allocation8 + $0x30] sm:$0xff]
    %v190 = vld [vmem:[#allocation8 + $0x38] sm:$0xff]
    %v191 = vld [vmem:[#allocation8 + $0x40] sm:$0xff]
    %v192 = vld [vmem:[#allocation8 + $0x48] sm:$0xff]
    %v193 = vld [vmem:[#allocation8 + $0x50] sm:$0xff]
    %v194 = vld [vmem:[#allocation8 + $0x58] sm:$0xff]
    %v195 = vld [vmem:[#allocation8 + $0x60] sm:$0xff]
    %v196 = vld [vmem:[#allocation8 + $0x68] sm:$0xff]
    %v197 = vld [vmem:[#allocation8 + $0x70] sm:$0xff]
    %v198 = vld [vmem:[#allocation8 + $0x78] sm:$0xff]
    %v199 = vld [vmem:[#allocation8 + $0x80] sm:$0xff]
    %v200 = vld [vmem:[#allocation8 + $0x88] sm:$0xff]
    %v201 = vld [vmem:[#allocation8 + $0x90] sm:$0xff]
    %v202 = vld [vmem:[#allocation8 + $0x98] sm:$0xff]
    %v203 = vld [vmem:[#allocation8 + $0xa0] sm:$0xff]
    %v204 = vld [vmem:[#allocation8 + $0xa8] sm:$0xff]
    %v205 = vld [vmem:[#allocation8 + $0xb0] sm:$0xff]
    %v206 = vld [vmem:[#allocation8 + $0xb8] sm:$0xff]
    %v207 = vld [vmem:[#allocation8 + $0xc0] sm:$0xff]
    %v208 = vld [vmem:[#allocation8 + $0xc8] sm:$0xff]
    %v209 = vld [vmem:[#allocation8 + $0xd0] sm:$0xff]
    %v210 = vld [vmem:[#allocation8 + $0xd8] sm:$0xff]
    %v211 = vld [vmem:[#allocation8 + $0xe0] sm:$0xff]
    %v212 = vld [vmem:[#allocation8 + $0xe8] sm:$0xff]
    %v213 = vld [vmem:[#allocation8 + $0xf0] sm:$0xff]
    %v214 = vld [vmem:[#allocation8 + $0xf8] sm:$0xff]
    %v215 = vld [vmem:[#allocation8 + $0x100] sm:$0xff]
    %v216 = vld [vmem:[#allocation8 + $0x108] sm:$0xff]
    %v217 = vld [vmem:[#allocation8 + $0x110] sm:$0xff]
    %v218 = vld [vmem:[#allocation8 + $0x118] sm:$0xff]
    %v219 = vld [vmem:[#allocation8 + $0x120] sm:$0xff]
    %v220 = vld [vmem:[#allocation8 + $0x128] sm:$0xff]
    %v221 = vld [vmem:[#allocation8 + $0x130] sm:$0xff]
    %v222 = vld [vmem:[#allocation8 + $0x138] sm:$0xff]
    %v223 = vld [vmem:[#allocation8 + $0x140] sm:$0xff]
    %v224 = vld [vmem:[#allocation8 + $0x148] sm:$0xff]
    %v225 = vld [vmem:[#allocation8 + $0x150] sm:$0xff]
    %v226 = vld [vmem:[#allocation8 + $0x158] sm:$0xff]
    %v227 = vld [vmem:[#allocation8 + $0x160] sm:$0xff]
    %v228 = vld [vmem:[#allocation8 + $0x168] sm:$0xff]
    %v229 = vld [vmem:[#allocation8 + $0x170] sm:$0xff]
    %v230 = vld [vmem:[#allocation8 + $0x178] sm:$0xff]
    %v231 = vld [vmem:[#allocation8 + $0x180] sm:$0xff]
    %v232 = vld [vmem:[#allocation8 + $0x188] sm:$0xff]
    %v233 = vld [vmem:[#allocation8 + $0x190] sm:$0xff]
    %v234 = vld [vmem:[#allocation8 + $0x198] sm:$0xff]
    %v235 = vld [vmem:[#allocation8 + $0x1a0] sm:$0xff]
    %v236 = vld [vmem:[#allocation8 + $0x1a8] sm:$0xff]
    %v237 = vld [vmem:[#allocation8 + $0x1b0] sm:$0xff]
    %v238 = vld [vmem:[#allocation8 + $0x1b8] sm:$0xff]
    %v239 = vld [vmem:[#allocation8 + $0x1c0] sm:$0xff]
    %v240 = vld [vmem:[#allocation8 + $0x1c8] sm:$0xff]
    %v241 = vld [vmem:[#allocation8 + $0x1d0] sm:$0xff]
    %v242 = vld [vmem:[#allocation8 + $0x1d8] sm:$0xff]
    %v243 = vld [vmem:[#allocation8 + $0x1e0] sm:$0xff]
    %v244 = vld [vmem:[#allocation8 + $0x1e8] sm:$0xff]
    %v245 = vld [vmem:[#allocation8 + $0x1f0] sm:$0xff]
    %v246 = vld [vmem:[#allocation8 + $0x1f8] sm:$0xff]
    %v247 = vld [vmem:[#allocation8 + $0x200] sm:$0xff]
    %v248 = vld [vmem:[#allocation8 + $0x208] sm:$0xff]
    %v249 = vld [vmem:[#allocation8 + $0x210] sm:$0xff]
    %v250 = vld [vmem:[#allocation8 + $0x218] sm:$0xff]
    %v251 = vld [vmem:[#allocation8 + $0x220] sm:$0xff]
    %v252 = vld [vmem:[#allocation8 + $0x228] sm:$0xff]
    %v253 = vld [vmem:[#allocation8 + $0x230] sm:$0xff]
    %v254 = vld [vmem:[#allocation8 + $0x238] sm:$0xff]
    %v255 = vld [vmem:[#allocation8 + $0x240] sm:$0xff]
    %v256 = vld [vmem:[#allocation8 + $0x248] sm:$0xff]
    %v257 = vld [vmem:[#allocation8 + $0x250] sm:$0xff]
    %v258 = vld [vmem:[#allocation8 + $0x258] sm:$0xff]
    %v259 = vld [vmem:[#allocation8 + $0x260] sm:$0xff]
    %v260 = vld [vmem:[#allocation8 + $0x268] sm:$0xff]
    %v261 = vld [vmem:[#allocation8 + $0x270] sm:$0xff]
    %v262 = vld [vmem:[#allocation8 + $0x278] sm:$0xff]
    %v263 = vld [vmem:[#allocation8 + $0x280] sm:$0xff]
    %v264 = vld [vmem:[#allocation8 + $0x288] sm:$0xff]
    %v265 = vld [vmem:[#allocation8 + $0x290] sm:$0xff]
    %v266 = vld [vmem:[#allocation8 + $0x298] sm:$0xff]
    %v267 = vld [vmem:[#allocation8 + $0x2a0] sm:$0xff]
    %v268 = vld [vmem:[#allocation8 + $0x2a8] sm:$0xff]
    %v269 = vld [vmem:[#allocation8 + $0x2b0] sm:$0xff]
    %v270 = vld [vmem:[#allocation8 + $0x2b8] sm:$0xff]
    %v271 = vld [vmem:[#allocation8 + $0x2c0] sm:$0xff]
    %v272 = vld [vmem:[#allocation8 + $0x2c8] sm:$0xff]
    %v273 = vld [vmem:[#allocation8 + $0x2d0] sm:$0xff]
    %v274 = vld [vmem:[#allocation8 + $0x2d8] sm:$0xff]
    %v275 = vld [vmem:[#allocation8 + $0x2e0] sm:$0xff]
    %v276 = vld [vmem:[#allocation8 + $0x2e8] sm:$0xff]
    %v277 = vld [vmem:[#allocation8 + $0x2f0] sm:$0xff]
    %v278 = vld [vmem:[#allocation8 + $0x2f8] sm:$0xff]
    %v375 = vunpack.c.l.b16 %v183
    %v376 = vunpack.c.h.b16 %v183
    %v377 = vunpack.c.l.b16 %v184
    %v378 = vunpack.c.h.b16 %v184
    %v379 = vunpack.c.l.b16 %v185
    %v380 = vunpack.c.h.b16 %v185
    %v381 = vunpack.c.l.b16 %v186
    %v382 = vunpack.c.h.b16 %v186
    %v383 = vunpack.c.l.b16 %v187
    %v384 = vunpack.c.h.b16 %v187
    %v385 = vunpack.c.l.b16 %v188
    %v386 = vunpack.c.h.b16 %v188
    %v387 = vunpack.c.l.b16 %v189
    %v388 = vunpack.c.h.b16 %v189
    %v389 = vunpack.c.l.b16 %v190
    %v390 = vunpack.c.h.b16 %v190
    %v391 = vunpack.c.l.b16 %v191
    %v392 = vunpack.c.h.b16 %v191
    %v393 = vunpack.c.l.b16 %v192
    %v394 = vunpack.c.h.b16 %v192
    %v395 = vunpack.c.l.b16 %v193
    %v396 = vunpack.c.h.b16 %v193
    %v397 = vunpack.c.l.b16 %v194
    %v398 = vunpack.c.h.b16 %v194
    %v399 = vunpack.c.l.b16 %v195
    %v400 = vunpack.c.h.b16 %v195
    %v401 = vunpack.c.l.b16 %v196
    %v402 = vunpack.c.h.b16 %v196
    %v403 = vunpack.c.l.b16 %v197
    %v404 = vunpack.c.h.b16 %v197
    %v405 = vunpack.c.l.b16 %v198
    %v406 = vunpack.c.h.b16 %v198
    %v407 = vunpack.c.l.b16 %v199
    %v408 = vunpack.c.h.b16 %v199
    %v409 = vunpack.c.l.b16 %v200
    %v410 = vunpack.c.h.b16 %v200
    %v411 = vunpack.c.l.b16 %v201
    %v412 = vunpack.c.h.b16 %v201
    %v413 = vunpack.c.l.b16 %v202
    %v414 = vunpack.c.h.b16 %v202
    %v415 = vunpack.c.l.b16 %v203
    %v416 = vunpack.c.h.b16 %v203
    %v417 = vunpack.c.l.b16 %v204
    %v418 = vunpack.c.h.b16 %v204
    %v419 = vunpack.c.l.b16 %v205
    %v420 = vunpack.c.h.b16 %v205
    %v421 = vunpack.c.l.b16 %v206
    %v422 = vunpack.c.h.b16 %v206
    %v423 = vunpack.c.l.b16 %v207
    %v424 = vunpack.c.h.b16 %v207
    %v425 = vunpack.c.l.b16 %v208
    %v426 = vunpack.c.h.b16 %v208
    %v427 = vunpack.c.l.b16 %v209
    %v428 = vunpack.c.h.b16 %v209
    %v429 = vunpack.c.l.b16 %v210
    %v430 = vunpack.c.h.b16 %v210
    %v431 = vunpack.c.l.b16 %v211
    %v432 = vunpack.c.h.b16 %v211
    %v433 = vunpack.c.l.b16 %v212
    %v434 = vunpack.c.h.b16 %v212
    %v435 = vunpack.c.l.b16 %v213
    %v436 = vunpack.c.h.b16 %v213
    %v437 = vunpack.c.l.b16 %v214
    %v438 = vunpack.c.h.b16 %v214
    %v439 = vunpack.c.l.b16 %v215
    %v440 = vunpack.c.h.b16 %v215
    %v441 = vunpack.c.l.b16 %v216
    %v442 = vunpack.c.h.b16 %v216
    %v443 = vunpack.c.l.b16 %v217
    %v444 = vunpack.c.h.b16 %v217
    %v445 = vunpack.c.l.b16 %v218
    %v446 = vunpack.c.h.b16 %v218
    %v447 = vunpack.c.l.b16 %v219
    %v448 = vunpack.c.h.b16 %v219
    %v449 = vunpack.c.l.b16 %v220
    %v450 = vunpack.c.h.b16 %v220
    %v451 = vunpack.c.l.b16 %v221
    %v452 = vunpack.c.h.b16 %v221
    %v453 = vunpack.c.l.b16 %v222
    %v454 = vunpack.c.h.b16 %v222
    %v455 = vunpack.c.l.b16 %v223
    %v456 = vunpack.c.h.b16 %v223
    %v457 = vunpack.c.l.b16 %v224
    %v458 = vunpack.c.h.b16 %v224
    %v459 = vunpack.c.l.b16 %v225
    %v460 = vunpack.c.h.b16 %v225
    %v461 = vunpack.c.l.b16 %v226
    %v462 = vunpack.c.h.b16 %v226
    %v463 = vunpack.c.l.b16 %v227
    %v464 = vunpack.c.h.b16 %v227
    %v465 = vunpack.c.l.b16 %v228
    %v466 = vunpack.c.h.b16 %v228
    %v467 = vunpack.c.l.b16 %v229
    %v468 = vunpack.c.h.b16 %v229
    %v469 = vunpack.c.l.b16 %v230
    %v470 = vunpack.c.h.b16 %v230
    %v471 = vunpack.c.l.b16 %v231
    %v472 = vunpack.c.h.b16 %v231
    %v473 = vunpack.c.l.b16 %v232
    %v474 = vunpack.c.h.b16 %v232
    %v475 = vunpack.c.l.b16 %v233
    %v476 = vunpack.c.h.b16 %v233
    %v477 = vunpack.c.l.b16 %v234
    %v478 = vunpack.c.h.b16 %v234
    %v479 = vunpack.c.l.b16 %v235
    %v480 = vunpack.c.h.b16 %v235
    %v481 = vunpack.c.l.b16 %v236
    %v482 = vunpack.c.h.b16 %v236
    %v483 = vunpack.c.l.b16 %v237
    %v484 = vunpack.c.h.b16 %v237
    %v485 = vunpack.c.l.b16 %v238
    %v486 = vunpack.c.h.b16 %v238
    %v487 = vunpack.c.l.b16 %v239
    %v488 = vunpack.c.h.b16 %v239
    %v489 = vunpack.c.l.b16 %v240
    %v490 = vunpack.c.h.b16 %v240
    %v491 = vunpack.c.l.b16 %v241
    %v492 = vunpack.c.h.b16 %v241
    %v493 = vunpack.c.l.b16 %v242
    %v494 = vunpack.c.h.b16 %v242
    %v495 = vunpack.c.l.b16 %v243
    %v496 = vunpack.c.h.b16 %v243
    %v497 = vunpack.c.l.b16 %v244
    %v498 = vunpack.c.h.b16 %v244
    %v499 = vunpack.c.l.b16 %v245
    %v500 = vunpack.c.h.b16 %v245
    %v501 = vunpack.c.l.b16 %v246
    %v502 = vunpack.c.h.b16 %v246
    %v503 = vunpack.c.l.b16 %v247
    %v504 = vunpack.c.h.b16 %v247
    %v505 = vunpack.c.l.b16 %v248
    %v506 = vunpack.c.h.b16 %v248
    %v507 = vunpack.c.l.b16 %v249
    %v508 = vunpack.c.h.b16 %v249
    %v509 = vunpack.c.l.b16 %v250
    %v510 = vunpack.c.h.b16 %v250
    %v511 = vunpack.c.l.b16 %v251
    %v512 = vunpack.c.h.b16 %v251
    %v513 = vunpack.c.l.b16 %v252
    %v514 = vunpack.c.h.b16 %v252
    %v515 = vunpack.c.l.b16 %v253
    %v516 = vunpack.c.h.b16 %v253
    %v517 = vunpack.c.l.b16 %v254
    %v518 = vunpack.c.h.b16 %v254
    %v519 = vunpack.c.l.b16 %v255
    %v520 = vunpack.c.h.b16 %v255
    %v521 = vunpack.c.l.b16 %v256
    %v522 = vunpack.c.h.b16 %v256
    %v523 = vunpack.c.l.b16 %v257
    %v524 = vunpack.c.h.b16 %v257
    %v525 = vunpack.c.l.b16 %v258
    %v526 = vunpack.c.h.b16 %v258
    %v527 = vunpack.c.l.b16 %v259
    %v528 = vunpack.c.h.b16 %v259
    %v529 = vunpack.c.l.b16 %v260
    %v530 = vunpack.c.h.b16 %v260
    %v531 = vunpack.c.l.b16 %v261
    %v532 = vunpack.c.h.b16 %v261
    %v533 = vunpack.c.l.b16 %v262
    %v534 = vunpack.c.h.b16 %v262
    %v535 = vunpack.c.l.b16 %v263
    %v536 = vunpack.c.h.b16 %v263
    %v537 = vunpack.c.l.b16 %v264
    %v538 = vunpack.c.h.b16 %v264
    %v539 = vunpack.c.l.b16 %v265
    %v540 = vunpack.c.h.b16 %v265
    %v541 = vunpack.c.l.b16 %v266
    %v542 = vunpack.c.h.b16 %v266
    %v543 = vunpack.c.l.b16 %v267
    %v544 = vunpack.c.h.b16 %v267
    %v545 = vunpack.c.l.b16 %v268
    %v546 = vunpack.c.h.b16 %v268
    %v547 = vunpack.c.l.b16 %v269
    %v548 = vunpack.c.h.b16 %v269
    %v549 = vunpack.c.l.b16 %v270
    %v550 = vunpack.c.h.b16 %v270
    %v551 = vunpack.c.l.b16 %v271
    %v552 = vunpack.c.h.b16 %v271
    %v553 = vunpack.c.l.b16 %v272
    %v554 = vunpack.c.h.b16 %v272
    %v555 = vunpack.c.l.b16 %v273
    %v556 = vunpack.c.h.b16 %v273
    %v557 = vunpack.c.l.b16 %v274
    %v558 = vunpack.c.h.b16 %v274
    %v559 = vunpack.c.l.b16 %v275
    %v560 = vunpack.c.h.b16 %v275
    %v561 = vunpack.c.l.b16 %v276
    %v562 = vunpack.c.h.b16 %v276
    %v563 = vunpack.c.l.b16 %v277
    %v564 = vunpack.c.h.b16 %v277
    %v565 = vunpack.c.l.b16 %v278
    %v566 = vunpack.c.h.b16 %v278
    %v567 = vpack.c.b16 %v381, %v375
    %v568 = vpack.c.b16 %v382, %v376
    %v569 = vpack.c.b16 %v383, %v377
    %v570 = vpack.c.b16 %v384, %v378
    %v571 = vpack.c.b16 %v385, %v379
    %v572 = vpack.c.b16 %v386, %v380
    %v573 = vpack.c.b16 %v393, %v387
    %v574 = vpack.c.b16 %v394, %v388
    %v575 = vpack.c.b16 %v395, %v389
    %v576 = vpack.c.b16 %v396, %v390
    %v577 = vpack.c.b16 %v397, %v391
    %v578 = vpack.c.b16 %v398, %v392
    %v579 = vpack.c.b16 %v405, %v399
    %v580 = vpack.c.b16 %v406, %v400
    %v581 = vpack.c.b16 %v407, %v401
    %v582 = vpack.c.b16 %v408, %v402
    %v583 = vpack.c.b16 %v409, %v403
    %v584 = vpack.c.b16 %v410, %v404
    %v585 = vpack.c.b16 %v417, %v411
    %v586 = vpack.c.b16 %v418, %v412
    %v587 = vpack.c.b16 %v419, %v413
    %v588 = vpack.c.b16 %v420, %v414
    %v589 = vpack.c.b16 %v421, %v415
    %v590 = vpack.c.b16 %v422, %v416
    %v591 = vpack.c.b16 %v429, %v423
    %v592 = vpack.c.b16 %v430, %v424
    %v593 = vpack.c.b16 %v431, %v425
    %v594 = vpack.c.b16 %v432, %v426
    %v595 = vpack.c.b16 %v433, %v427
    %v596 = vpack.c.b16 %v434, %v428
    %v597 = vpack.c.b16 %v441, %v435
    %v598 = vpack.c.b16 %v442, %v436
    %v599 = vpack.c.b16 %v443, %v437
    %v600 = vpack.c.b16 %v444, %v438
    %v601 = vpack.c.b16 %v445, %v439
    %v602 = vpack.c.b16 %v446, %v440
    %v603 = vpack.c.b16 %v453, %v447
    %v604 = vpack.c.b16 %v454, %v448
    %v605 = vpack.c.b16 %v455, %v449
    %v606 = vpack.c.b16 %v456, %v450
    %v607 = vpack.c.b16 %v457, %v451
    %v608 = vpack.c.b16 %v458, %v452
    %v609 = vpack.c.b16 %v465, %v459
    %v610 = vpack.c.b16 %v466, %v460
    %v611 = vpack.c.b16 %v467, %v461
    %v612 = vpack.c.b16 %v468, %v462
    %v613 = vpack.c.b16 %v469, %v463
    %v614 = vpack.c.b16 %v470, %v464
    %v615 = vpack.c.b16 %v477, %v471
    %v616 = vpack.c.b16 %v478, %v472
    %v617 = vpack.c.b16 %v479, %v473
    %v618 = vpack.c.b16 %v480, %v474
    %v619 = vpack.c.b16 %v481, %v475
    %v620 = vpack.c.b16 %v482, %v476
    %v621 = vpack.c.b16 %v489, %v483
    %v622 = vpack.c.b16 %v490, %v484
    %v623 = vpack.c.b16 %v491, %v485
    %v624 = vpack.c.b16 %v492, %v486
    %v625 = vpack.c.b16 %v493, %v487
    %v626 = vpack.c.b16 %v494, %v488
    %v627 = vpack.c.b16 %v501, %v495
    %v628 = vpack.c.b16 %v502, %v496
    %v629 = vpack.c.b16 %v503, %v497
    %v630 = vpack.c.b16 %v504, %v498
    %v631 = vpack.c.b16 %v505, %v499
    %v632 = vpack.c.b16 %v506, %v500
    %v633 = vpack.c.b16 %v513, %v507
    %v634 = vpack.c.b16 %v514, %v508
    %v635 = vpack.c.b16 %v515, %v509
    %v636 = vpack.c.b16 %v516, %v510
    %v637 = vpack.c.b16 %v517, %v511
    %v638 = vpack.c.b16 %v518, %v512
    %v639 = vpack.c.b16 %v525, %v519
    %v640 = vpack.c.b16 %v526, %v520
    %v641 = vpack.c.b16 %v527, %v521
    %v642 = vpack.c.b16 %v528, %v522
    %v643 = vpack.c.b16 %v529, %v523
    %v644 = vpack.c.b16 %v530, %v524
    %v645 = vpack.c.b16 %v537, %v531
    %v646 = vpack.c.b16 %v538, %v532
    %v647 = vpack.c.b16 %v539, %v533
    %v648 = vpack.c.b16 %v540, %v534
    %v649 = vpack.c.b16 %v541, %v535
    %v650 = vpack.c.b16 %v542, %v536
    %v651 = vpack.c.b16 %v549, %v543
    %v652 = vpack.c.b16 %v550, %v544
    %v653 = vpack.c.b16 %v551, %v545
    %v654 = vpack.c.b16 %v552, %v546
    %v655 = vpack.c.b16 %v553, %v547
    %v656 = vpack.c.b16 %v554, %v548
    %v657 = vpack.c.b16 %v561, %v555
    %v658 = vpack.c.b16 %v562, %v556
    %v659 = vpack.c.b16 %v563, %v557
    %v660 = vpack.c.b16 %v564, %v558
    %v661 = vpack.c.b16 %v565, %v559
    %v662 = vpack.c.b16 %v566, %v560
    %759 = vmatprep.subr.bf16.mxu0 %v568
    %760 = vmatpush1.bf16.msra.mxu0 %v567
    %761 = vmatprep.subr.bf16.mxu0 %v574
    %762 = vmatpush1.bf16.msra.mxu0 %v573
    %763 = vmatprep.subr.bf16.mxu0 %v580
    %764 = vmatpush1.bf16.msra.mxu0 %v579
    %765 = vmatprep.subr.bf16.mxu0 %v586
    %766 = vmatpush1.bf16.msra.mxu0 %v585
    %767 = vmatprep.subr.bf16.mxu0 %v592
    %768 = vmatpush1.bf16.msra.mxu0 %v591
    %769 = vmatprep.subr.bf16.mxu0 %v598
    %770 = vmatpush1.bf16.msra.mxu0 %v597
    %771 = vmatprep.subr.bf16.mxu0 %v604
    %772 = vmatpush1.bf16.msra.mxu0 %v603
    %773 = vmatprep.subr.bf16.mxu0 %v610
    %774 = vmatpush1.bf16.msra.mxu0 %v609
    %775 = vmatprep.subr.bf16.mxu0 %v616
    %776 = vmatpush1.bf16.msra.mxu0 %v615
    %777 = vmatprep.subr.bf16.mxu0 %v622
    %778 = vmatpush1.bf16.msra.mxu0 %v621
    %779 = vmatprep.subr.bf16.mxu0 %v628
    %780 = vmatpush1.bf16.msra.mxu0 %v627
    %781 = vmatprep.subr.bf16.mxu0 %v634
    %782 = vmatpush1.bf16.msra.mxu0 %v633
    %783 = vmatprep.subr.bf16.mxu0 %v640
    %784 = vmatpush1.bf16.msra.mxu0 %v639
    %785 = vmatprep.subr.bf16.mxu0 %v646
    %786 = vmatpush1.bf16.msra.mxu0 %v645
    %787 = vmatprep.subr.bf16.mxu0 %v652
    %788 = vmatpush1.bf16.msra.mxu0 %v651
    %789 = vmatprep.subr.bf16.mxu0 %v658
    %790 = vmatpush1.bf16.msra.mxu0 %v657
    %791 = vmatprep.mubr.bf16.mxu0 %v182
    %792 = vmatmul.mubr.bf16.gmra.mrb[0].mxu0 %v181
    %v793 = vpop.f32.mrb[0].mxu0
    %v794 = vadd.f32 0.0, %v793
    %v795 = vpop.f32.mrb[0].mxu0
    %v796 = vadd.f32 0.0, %v795
    %v797 = vpop.f32.mrb[0].mxu0
    %v798 = vadd.f32 0.0, %v797
    %v799 = vpop.f32.mrb[0].mxu0
    %v800 = vadd.f32 0.0, %v799
    %801 = vdwg.mxu0
    %802 = vmatprep.subr.bf16.mxu0 %v570
    %803 = vmatpush1.bf16.msra.mxu0 %v569
    %804 = vmatprep.subr.bf16.mxu0 %v576
    %805 = vmatpush1.bf16.msra.mxu0 %v575
    %806 = vmatprep.subr.bf16.mxu0 %v582
    %807 = vmatpush1.bf16.msra.mxu0 %v581
    %808 = vmatprep.subr.bf16.mxu0 %v588
    %809 = vmatpush1.bf16.msra.mxu0 %v587
    %810 = vmatprep.subr.bf16.mxu0 %v594
    %811 = vmatpush1.bf16.msra.mxu0 %v593
    %812 = vmatprep.subr.bf16.mxu0 %v600
    %813 = vmatpush1.bf16.msra.mxu0 %v599
    %814 = vmatprep.subr.bf16.mxu0 %v606
    %815 = vmatpush1.bf16.msra.mxu0 %v605
    %816 = vmatprep.subr.bf16.mxu0 %v612
    %817 = vmatpush1.bf16.msra.mxu0 %v611
    %818 = vmatprep.subr.bf16.mxu0 %v618
    %819 = vmatpush1.bf16.msra.mxu0 %v617
    %820 = vmatprep.subr.bf16.mxu0 %v624
    %821 = vmatpush1.bf16.msra.mxu0 %v623
    %822 = vmatprep.subr.bf16.mxu0 %v630
    %823 = vmatpush1.bf16.msra.mxu0 %v629
    %824 = vmatprep.subr.bf16.mxu0 %v636
    %825 = vmatpush1.bf16.msra.mxu0 %v635
    %826 = vmatprep.subr.bf16.mxu0 %v642
    %827 = vmatpush1.bf16.msra.mxu0 %v641
    %828 = vmatprep.subr.bf16.mxu0 %v648
    %829 = vmatpush1.bf16.msra.mxu0 %v647
    %830 = vmatprep.subr.bf16.mxu0 %v654
    %831 = vmatpush1.bf16.msra.mxu0 %v653
    %832 = vmatprep.subr.bf16.mxu0 %v660
    %833 = vmatpush1.bf16.msra.mxu0 %v659
    %834 = vmatprep.mubr.bf16.mxu0 %v182
    %835 = vmatmul.mubr.bf16.gmra.mrb[0].mxu0 %v181
    %v836 = vpop.f32.mrb[0].mxu0
    %v837 = vadd.f32 0.0, %v836
    %v838 = vpop.f32.mrb[0].mxu0
    %v839 = vadd.f32 0.0, %v838
    %v840 = vpop.f32.mrb[0].mxu0
    %v841 = vadd.f32 0.0, %v840
    %v842 = vpop.f32.mrb[0].mxu0
    %v843 = vadd.f32 0.0, %v842
    %844 = vdwg.mxu0
    %845 = vmatprep.subr.bf16.mxu0 %v572
    %846 = vmatpush1.bf16.msra.mxu0 %v571
    %847 = vmatprep.subr.bf16.mxu0 %v578
    %848 = vmatpush1.bf16.msra.mxu0 %v577
    %849 = vmatprep.subr.bf16.mxu0 %v584
    %850 = vmatpush1.bf16.msra.mxu0 %v583
    %851 = vmatprep.subr.bf16.mxu0 %v590
    %852 = vmatpush1.bf16.msra.mxu0 %v589
    %853 = vmatprep.subr.bf16.mxu0 %v596
    %854 = vmatpush1.bf16.msra.mxu0 %v595
    %855 = vmatprep.subr.bf16.mxu0 %v602
    %856 = vmatpush1.bf16.msra.mxu0 %v601
    %857 = vmatprep.subr.bf16.mxu0 %v608
    %858 = vmatpush1.bf16.msra.mxu0 %v607
    %859 = vmatprep.subr.bf16.mxu0 %v614
    %860 = vmatpush1.bf16.msra.mxu0 %v613
    %861 = vmatprep.subr.bf16.mxu0 %v620
    %862 = vmatpush1.bf16.msra.mxu0 %v619
    %863 = vmatprep.subr.bf16.mxu0 %v626
    %864 = vmatpush1.bf16.msra.mxu0 %v625
    %865 = vmatprep.subr.bf16.mxu0 %v632
    %866 = vmatpush1.bf16.msra.mxu0 %v631
    %867 = vmatprep.subr.bf16.mxu0 %v638
    %868 = vmatpush1.bf16.msra.mxu0 %v637
    %869 = vmatprep.subr.bf16.mxu0 %v644
    %870 = vmatpush1.bf16.msra.mxu0 %v643
    %871 = vmatprep.subr.bf16.mxu0 %v650
    %872 = vmatpush1.bf16.msra.mxu0 %v649
    %873 = vmatprep.subr.bf16.mxu0 %v656
    %874 = vmatpush1.bf16.msra.mxu0 %v655
    %875 = vmatprep.subr.bf16.mxu0 %v662
    %876 = vmatpush1.bf16.msra.mxu0 %v661
    %877 = vmatprep.mubr.bf16.mxu0 %v182
    %878 = vmatmul.mubr.bf16.gmra.mrb[0].mxu0 %v181
    %v879 = vpop.f32.mrb[0].mxu0
    %v880 = vadd.f32 0.0, %v879
    %v881 = vpop.f32.mrb[0].mxu0
    %v882 = vadd.f32 0.0, %v881
    %v883 = vpop.f32.mrb[0].mxu0
    %v884 = vadd.f32 0.0, %v883
    %v885 = vpop.f32.mrb[0].mxu0
    %v886 = vadd.f32 0.0, %v885
    %887 = vdwg.mxu0
    %v888 = vmul.f32 %v794, %v136
    %889 = vrot.lane.b32.xlu0 %v794, 64
    %v890 = vpop.permute.xlu0 %889
    %v891 = vmul.f32 %v890, %v143
    %v892 = vadd.f32 %v888, %v891
    %v893 = vmul.f32 %v837, %v136
    %894 = vrot.lane.b32.xlu0 %v837, 64
    %v895 = vpop.permute.xlu0 %894
    %v896 = vmul.f32 %v895, %v143
    %v897 = vadd.f32 %v893, %v896
    %v898 = vpack.c.bf16 %v892, %v892
    %v899 = vpack.c.bf16 %v897, %v897
    %900 = vmatprep.subr.bf16.mxu0 0
    %901 = vmatpush1.bf16.xpose.msra.mxu0 %v899
    %902 = vmatprep.subr.bf16.mxu0 0
    %903 = vmatpush1.bf16.xpose.msra.mxu0 0
    %904 = vmatprep.subr.bf16.mxu0 0
    %905 = vmatpush1.bf16.xpose.msra.mxu0 0
    %906 = vmatprep.subr.bf16.mxu0 0
    %907 = vmatpush1.bf16.xpose.msra.mxu0 0
    %908 = vmatprep.subr.bf16.mxu0 0
    %909 = vmatpush1.bf16.xpose.msra.mxu0 0
    %910 = vmatprep.subr.bf16.mxu0 0
    %911 = vmatpush1.bf16.xpose.msra.mxu0 0
    %912 = vmatprep.subr.bf16.mxu0 0
    %913 = vmatpush1.bf16.xpose.msra.mxu0 0
    %914 = vmatprep.subr.bf16.mxu0 0
    %915 = vmatpush1.bf16.xpose.msra.mxu0 0
    %916 = vmatprep.subr.bf16.mxu0 0
    %917 = vmatpush1.bf16.xpose.msra.mxu0 0
    %918 = vmatprep.subr.bf16.mxu0 0
    %919 = vmatpush1.bf16.xpose.msra.mxu0 0
    %920 = vmatprep.subr.bf16.mxu0 0
    %921 = vmatpush1.bf16.xpose.msra.mxu0 0
    %922 = vmatprep.subr.bf16.mxu0 0
    %923 = vmatpush1.bf16.xpose.msra.mxu0 0
    %924 = vmatprep.subr.bf16.mxu0 0
    %925 = vmatpush1.bf16.xpose.msra.mxu0 0
    %926 = vmatprep.subr.bf16.mxu0 0
    %927 = vmatpush1.bf16.xpose.msra.mxu0 0
    %928 = vmatprep.subr.bf16.mxu0 0
    %929 = vmatpush1.bf16.xpose.msra.mxu0 0
    %930 = vmatprep.subr.bf16.mxu0 0
    %931 = vmatpush1.bf16.xpose.msra.mxu0 0
    %932 = vmatprep.mubr.bf16.mxu0 0
    %933 = vmatmul.mubr.bf16.gmra.mrb[0].mxu0 %v898
    %v934 = vpop.f32.mrb[0].mxu0
    %v935 = vadd.f32 0.0, %v934
    %v936 = vpop.f32.mrb[0].mxu0
    %v937 = vpop.f32.mrb[0].mxu0
    %v938 = vpop.f32.mrb[0].mxu0
    %939 = vdwg.mxu0
    %v940 = vmul.f32 %v935, 0.088388346
    %v941 = vadd.f32 %v940, %v138
    %vm942 = vcmask 64512
    %v943 = vsel %vm942, %v941, -inf
    %944 = vmax.xlane.f32.xlu0 %v943
    %v945 = vpop.xlane.xlu0 %944
    %v946 = vsub.f32 %v941, %v945
    %v947 = vmul.f32 %v946, 1.442695
    %v948 = vpow.pop %v947
    %v949 = vsel %vm942, %v948, 0.0
    %950 = vadd.xlane.f32.xlu0 %v949
    %v951 = vpop.xlane.xlu0 %950
    %v952 = vrcp.pop %v951
    %v953 = vmul.f32 %v948, %v952
    %v954 = vpack.c.bf16 %v953, %v953
    %v955 = vpack.c.bf16 %v880, %v880
    %v957 = vsel %vm942, %v954, 0
    %vm959 = vcmask 1043456
    %v961 = vsel %vm959, %v955, 0
    %963 = vmatprep.subr.bf16.mxu0 0
    %964 = vmatpush1.bf16.msra.mxu0 %v961
    %965 = vmatprep.subr.bf16.mxu0 0
    %966 = vmatpush1.bf16.msra.mxu0 0
    %967 = vmatprep.subr.bf16.mxu0 0
    %968 = vmatpush1.bf16.msra.mxu0 0
    %969 = vmatprep.subr.bf16.mxu0 0
    %970 = vmatpush1.bf16.msra.mxu0 0
    %971 = vmatprep.subr.bf16.mxu0 0
    %972 = vmatpush1.bf16.msra.mxu0 0
    %973 = vmatprep.subr.bf16.mxu0 0
    %974 = vmatpush1.bf16.msra.mxu0 0
    %975 = vmatprep.subr.bf16.mxu0 0
    %976 = vmatpush1.bf16.msra.mxu0 0
    %977 = vmatprep.subr.bf16.mxu0 0
    %978 = vmatpush1.bf16.msra.mxu0 0
    %979 = vmatprep.subr.bf16.mxu0 0
    %980 = vmatpush1.bf16.msra.mxu0 0
    %981 = vmatprep.subr.bf16.mxu0 0
    %982 = vmatpush1.bf16.msra.mxu0 0
    %983 = vmatprep.subr.bf16.mxu0 0
    %984 = vmatpush1.bf16.msra.mxu0 0
    %985 = vmatprep.subr.bf16.mxu0 0
    %986 = vmatpush1.bf16.msra.mxu0 0
    %987 = vmatprep.subr.bf16.mxu0 0
    %988 = vmatpush1.bf16.msra.mxu0 0
    %989 = vmatprep.subr.bf16.mxu0 0
    %990 = vmatpush1.bf16.msra.mxu0 0
    %991 = vmatprep.subr.bf16.mxu0 0
    %992 = vmatpush1.bf16.msra.mxu0 0
    %993 = vmatprep.subr.bf16.mxu0 0
    %994 = vmatpush1.bf16.msra.mxu0 0
    %995 = vmatprep.mubr.bf16.mxu0 0
    %996 = vmatmul.mubr.bf16.gmra.mrb[0].mxu0 %v957
    %v997 = vpop.f32.mrb[0].mxu0
    %v998 = vadd.f32 0.0, %v997
    %v999 = vpop.f32.mrb[0].mxu0
    %v1000 = vpop.f32.mrb[0].mxu0
    %v1001 = vpop.f32.mrb[0].mxu0
    %1002 = vdwg.mxu0
    %1003 = vst [vmem:[#allocation15] sm:$0xff] %v897
    %1004 = vst [vmem:[#allocation17] sm:$0xff] %v880
    %v1005 = vmul.f32 %v796, %v136
    %1006 = vrot.lane.b32.xlu0 %v796, 64
    %v1007 = vpop.permute.xlu0 %1006
    %v1008 = vmul.f32 %v1007, %v143
    %v1009 = vadd.f32 %v1005, %v1008
    %v1010 = vmul.f32 %v839, %v136
    %1011 = vrot.lane.b32.xlu0 %v839, 64
    %v1012 = vpop.permute.xlu0 %1011
    %v1013 = vmul.f32 %v1012, %v143
    %v1014 = vadd.f32 %v1010, %v1013
    %v1015 = vpack.c.bf16 %v1009, %v1009
    %v1016 = vpack.c.bf16 %v1014, %v1014
    %1017 = vmatprep.subr.bf16.mxu0 0
    %1018 = vmatpush1.bf16.xpose.msra.mxu0 %v1016
    %1019 = vmatprep.subr.bf16.mxu0 0
    %1020 = vmatpush1.bf16.xpose.msra.mxu0 0
    %1021 = vmatprep.subr.bf16.mxu0 0
    %1022 = vmatpush1.bf16.xpose.msra.mxu0 0
    %1023 = vmatprep.subr.bf16.mxu0 0
    %1024 = vmatpush1.bf16.xpose.msra.mxu0 0
    %1025 = vmatprep.subr.bf16.mxu0 0
    %1026 = vmatpush1.bf16.xpose.msra.mxu0 0
    %1027 = vmatprep.subr.bf16.mxu0 0
    %1028 = vmatpush1.bf16.xpose.msra.mxu0 0
    %1029 = vmatprep.subr.bf16.mxu0 0
    %1030 = vmatpush1.bf16.xpose.msra.mxu0 0
    %1031 = vmatprep.subr.bf16.mxu0 0
    %1032 = vmatpush1.bf16.xpose.msra.mxu0 0
    %1033 = vmatprep.subr.bf16.mxu0 0
    %1034 = vmatpush1.bf16.xpose.msra.mxu0 0
    %1035 = vmatprep.subr.bf16.mxu0 0
    %1036 = vmatpush1.bf16.xpose.msra.mxu0 0
    %1037 = vmatprep.subr.bf16.mxu0 0
    %1038 = vmatpush1.bf16.xpose.msra.mxu0 0
    %1039 = vmatprep.subr.bf16.mxu0 0
    %1040 = vmatpush1.bf16.xpose.msra.mxu0 0
    %1041 = vmatprep.subr.bf16.mxu0 0
    %1042 = vmatpush1.bf16.xpose.msra.mxu0 0
    %1043 = vmatprep.subr.bf16.mxu0 0
    %1044 = vmatpush1.bf16.xpose.msra.mxu0 0
    %1045 = vmatprep.subr.bf16.mxu0 0
    %1046 = vmatpush1.bf16.xpose.msra.mxu0 0
    %1047 = vmatprep.subr.bf16.mxu0 0
    %1048 = vmatpush1.bf16.xpose.msra.mxu0 0
    %1049 = vmatprep.mubr.bf16.mxu0 0
    %1050 = vmatmul.mubr.bf16.gmra.mrb[0].mxu0 %v1015
    %v1051 = vpop.f32.mrb[0].mxu0
    %v1052 = vadd.f32 0.0, %v1051
    %v1053 = vpop.f32.mrb[0].mxu0
    %v1054 = vpop.f32.mrb[0].mxu0
    %v1055 = vpop.f32.mrb[0].mxu0
    %1056 = vdwg.mxu0
    %v1057 = vmul.f32 %v1052, 0.088388346
    %v1058 = vadd.f32 %v1057, %v138
    %v1059 = vsel %vm942, %v1058, -inf
    %1060 = vmax.xlane.f32.xlu0 %v1059
    %v1061 = vpop.xlane.xlu0 %1060
    %v1062 = vsub.f32 %v1058, %v1061
    %v1063 = vmul.f32 %v1062, 1.442695
    %v1064 = vpow.pop %v1063
    %v1065 = vsel %vm942, %v1064, 0.0
    %1066 = vadd.xlane.f32.xlu0 %v1065
    %v1067 = vpop.xlane.xlu0 %1066
    %v1068 = vrcp.pop %v1067
    %v1069 = vmul.f32 %v1064, %v1068
    %v1070 = vpack.c.bf16 %v1069, %v1069
    %v1071 = vpack.c.bf16 %v882, %v882
    %v1073 = vsel %vm942, %v1070, 0
    %v1076 = vsel %vm959, %v1071, 0
    %1078 = vmatprep.subr.bf16.mxu0 0
    %1079 = vmatpush1.bf16.msra.mxu0 %v1076
    %1080 = vmatprep.subr.bf16.mxu0 0
    %1081 = vmatpush1.bf16.msra.mxu0 0
    %1082 = vmatprep.subr.bf16.mxu0 0
    %1083 = vmatpush1.bf16.msra.mxu0 0
    %1084 = vmatprep.subr.bf16.mxu0 0
    %1085 = vmatpush1.bf16.msra.mxu0 0
    %1086 = vmatprep.subr.bf16.mxu0 0
    %1087 = vmatpush1.bf16.msra.mxu0 0
    %1088 = vmatprep.subr.bf16.mxu0 0
    %1089 = vmatpush1.bf16.msra.mxu0 0
    %1090 = vmatprep.subr.bf16.mxu0 0
    %1091 = vmatpush1.bf16.msra.mxu0 0
    %1092 = vmatprep.subr.bf16.mxu0 0
    %1093 = vmatpush1.bf16.msra.mxu0 0
    %1094 = vmatprep.subr.bf16.mxu0 0
    %1095 = vmatpush1.bf16.msra.mxu0 0
    %1096 = vmatprep.subr.bf16.mxu0 0
    %1097 = vmatpush1.bf16.msra.mxu0 0
    %1098 = vmatprep.subr.bf16.mxu0 0
    %1099 = vmatpush1.bf16.msra.mxu0 0
    %1100 = vmatprep.subr.bf16.mxu0 0
    %1101 = vmatpush1.bf16.msra.mxu0 0
    %1102 = vmatprep.subr.bf16.mxu0 0
    %1103 = vmatpush1.bf16.msra.mxu0 0
    %1104 = vmatprep.subr.bf16.mxu0 0
    %1105 = vmatpush1.bf16.msra.mxu0 0
    %1106 = vmatprep.subr.bf16.mxu0 0
    %1107 = vmatpush1.bf16.msra.mxu0 0
    %1108 = vmatprep.subr.bf16.mxu0 0
    %1109 = vmatpush1.bf16.msra.mxu0 0
    %1110 = vmatprep.mubr.bf16.mxu0 0
    %1111 = vmatmul.mubr.bf16.gmra.mrb[0].mxu0 %v1073
    %v1112 = vpop.f32.mrb[0].mxu0
    %v1113 = vadd.f32 0.0, %v1112
    %v1114 = vpop.f32.mrb[0].mxu0
    %v1115 = vpop.f32.mrb[0].mxu0
    %v1116 = vpop.f32.mrb[0].mxu0
    %1117 = vdwg.mxu0
    %s1118 = scalar_lea.vmem [#allocation15], 8
    %1119 = vst [vmem:[%s1118] sm:$0xff] %v1014
    %s1120 = scalar_lea.vmem [#allocation17], 8
    %1121 = vst [vmem:[%s1120] sm:$0xff] %v882
    %v1122 = vmul.f32 %v798, %v136
    %1123 = vrot.lane.b32.xlu0 %v798, 64
    %v1124 = vpop.permute.xlu0 %1123
    %v1125 = vmul.f32 %v1124, %v143
    %v1126 = vadd.f32 %v1122, %v1125
    %v1127 = vmul.f32 %v841, %v136
    %1128 = vrot.lane.b32.xlu0 %v841, 64
    %v1129 = vpop.permute.xlu0 %1128
    %v1130 = vmul.f32 %v1129, %v143
    %v1131 = vadd.f32 %v1127, %v1130
    %v1132 = vpack.c.bf16 %v1126, %v1126
    %v1133 = vpack.c.bf16 %v1131, %v1131
    %1134 = vmatprep.subr.bf16.mxu0 0
    %1135 = vmatpush1.bf16.xpose.msra.mxu0 %v1133
    %1136 = vmatprep.subr.bf16.mxu0 0
    %1137 = vmatpush1.bf16.xpose.msra.mxu0 0
    %1138 = vmatprep.subr.bf16.mxu0 0
    %1139 = vmatpush1.bf16.xpose.msra.mxu0 0
    %1140 = vmatprep.subr.bf16.mxu0 0
    %1141 = vmatpush1.bf16.xpose.msra.mxu0 0
    %1142 = vmatprep.subr.bf16.mxu0 0
    %1143 = vmatpush1.bf16.xpose.msra.mxu0 0
    %1144 = vmatprep.subr.bf16.mxu0 0
    %1145 = vmatpush1.bf16.xpose.msra.mxu0 0
    %1146 = vmatprep.subr.bf16.mxu0 0
    %1147 = vmatpush1.bf16.xpose.msra.mxu0 0
    %1148 = vmatprep.subr.bf16.mxu0 0
    %1149 = vmatpush1.bf16.xpose.msra.mxu0 0
    %1150 = vmatprep.subr.bf16.mxu0 0
    %1151 = vmatpush1.bf16.xpose.msra.mxu0 0
    %1152 = vmatprep.subr.bf16.mxu0 0
    %1153 = vmatpush1.bf16.xpose.msra.mxu0 0
    %1154 = vmatprep.subr.bf16.mxu0 0
    %1155 = vmatpush1.bf16.xpose.msra.mxu0 0
    %1156 = vmatprep.subr.bf16.mxu0 0
    %1157 = vmatpush1.bf16.xpose.msra.mxu0 0
    %1158 = vmatprep.subr.bf16.mxu0 0
    %1159 = vmatpush1.bf16.xpose.msra.mxu0 0
    %1160 = vmatprep.subr.bf16.mxu0 0
    %1161 = vmatpush1.bf16.xpose.msra.mxu0 0
    %1162 = vmatprep.subr.bf16.mxu0 0
    %1163 = vmatpush1.bf16.xpose.msra.mxu0 0
    %1164 = vmatprep.subr.bf16.mxu0 0
    %1165 = vmatpush1.bf16.xpose.msra.mxu0 0
    %1166 = vmatprep.mubr.bf16.mxu0 0
    %1167 = vmatmul.mubr.bf16.gmra.mrb[0].mxu0 %v1132
    %v1168 = vpop.f32.mrb[0].mxu0
    %v1169 = vadd.f32 0.0, %v1168
    %v1170 = vpop.f32.mrb[0].mxu0
    %v1171 = vpop.f32.mrb[0].mxu0
    %v1172 = vpop.f32.mrb[0].mxu0
    %1173 = vdwg.mxu0
    %v1174 = vmul.f32 %v1169, 0.088388346
    %v1175 = vadd.f32 %v1174, %v138
    %v1176 = vsel %vm942, %v1175, -inf
    %1177 = vmax.xlane.f32.xlu0 %v1176
    %v1178 = vpop.xlane.xlu0 %1177
    %v1179 = vsub.f32 %v1175, %v1178
    %v1180 = vmul.f32 %v1179, 1.442695
    %v1181 = vpow.pop %v1180
    %v1182 = vsel %vm942, %v1181, 0.0
    %1183 = vadd.xlane.f32.xlu0 %v1182
    %v1184 = vpop.xlane.xlu0 %1183
    %v1185 = vrcp.pop %v1184
    %v1186 = vmul.f32 %v1181, %v1185
    %v1187 = vpack.c.bf16 %v1186, %v1186
    %v1188 = vpack.c.bf16 %v884, %v884
    %v1190 = vsel %vm942, %v1187, 0
    %v1193 = vsel %vm959, %v1188, 0
    %1195 = vmatprep.subr.bf16.mxu0 0
    %1196 = vmatpush1.bf16.msra.mxu0 %v1193
    %1197 = vmatprep.subr.bf16.mxu0 0
    %1198 = vmatpush1.bf16.msra.mxu0 0
    %1199 = vmatprep.subr.bf16.mxu0 0
    %1200 = vmatpush1.bf16.msra.mxu0 0
    %1201 = vmatprep.subr.bf16.mxu0 0
    %1202 = vmatpush1.bf16.msra.mxu0 0
    %1203 = vmatprep.subr.bf16.mxu0 0
    %1204 = vmatpush1.bf16.msra.mxu0 0
    %1205 = vmatprep.subr.bf16.mxu0 0
    %1206 = vmatpush1.bf16.msra.mxu0 0
    %1207 = vmatprep.subr.bf16.mxu0 0
    %1208 = vmatpush1.bf16.msra.mxu0 0
    %1209 = vmatprep.subr.bf16.mxu0 0
    %1210 = vmatpush1.bf16.msra.mxu0 0
    %1211 = vmatprep.subr.bf16.mxu0 0
    %1212 = vmatpush1.bf16.msra.mxu0 0
    %1213 = vmatprep.subr.bf16.mxu0 0
    %1214 = vmatpush1.bf16.msra.mxu0 0
    %1215 = vmatprep.subr.bf16.mxu0 0
    %1216 = vmatpush1.bf16.msra.mxu0 0
    %1217 = vmatprep.subr.bf16.mxu0 0
    %1218 = vmatpush1.bf16.msra.mxu0 0
    %1219 = vmatprep.subr.bf16.mxu0 0
    %1220 = vmatpush1.bf16.msra.mxu0 0
    %1221 = vmatprep.subr.bf16.mxu0 0
    %1222 = vmatpush1.bf16.msra.mxu0 0
    %1223 = vmatprep.subr.bf16.mxu0 0
    %1224 = vmatpush1.bf16.msra.mxu0 0
    %1225 = vmatprep.subr.bf16.mxu0 0
    %1226 = vmatpush1.bf16.msra.mxu0 0
    %1227 = vmatprep.mubr.bf16.mxu0 0
    %1228 = vmatmul.mubr.bf16.gmra.mrb[0].mxu0 %v1190
    %v1229 = vpop.f32.mrb[0].mxu0
    %v1230 = vadd.f32 0.0, %v1229
    %v1231 = vpop.f32.mrb[0].mxu0
    %v1232 = vpop.f32.mrb[0].mxu0
    %v1233 = vpop.f32.mrb[0].mxu0
    %1234 = vdwg.mxu0
    %s1235 = scalar_lea.vmem [#allocation15], 16
    %1236 = vst [vmem:[%s1235] sm:$0xff] %v1131
    %s1237 = scalar_lea.vmem [#allocation17], 16
    %1238 = vst [vmem:[%s1237] sm:$0xff] %v884
    %v1239 = vmul.f32 %v800, %v136
    %1240 = vrot.lane.b32.xlu0 %v800, 64
    %v1241 = vpop.permute.xlu0 %1240
    %v1242 = vmul.f32 %v1241, %v143
    %v1243 = vadd.f32 %v1239, %v1242
    %v1244 = vmul.f32 %v843, %v136
    %1245 = vrot.lane.b32.xlu0 %v843, 64
    %v1246 = vpop.permute.xlu0 %1245
    %v1247 = vmul.f32 %v1246, %v143
    %v1248 = vadd.f32 %v1244, %v1247
    %v1249 = vpack.c.bf16 %v1243, %v1243
    %v1250 = vpack.c.bf16 %v1248, %v1248
    %1251 = vmatprep.subr.bf16.mxu0 0
    %1252 = vmatpush1.bf16.xpose.msra.mxu0 %v1250
    %1253 = vmatprep.subr.bf16.mxu0 0
    %1254 = vmatpush1.bf16.xpose.msra.mxu0 0
    %1255 = vmatprep.subr.bf16.mxu0 0
    %1256 = vmatpush1.bf16.xpose.msra.mxu0 0
    %1257 = vmatprep.subr.bf16.mxu0 0
    %1258 = vmatpush1.bf16.xpose.msra.mxu0 0
    %1259 = vmatprep.subr.bf16.mxu0 0
    %1260 = vmatpush1.bf16.xpose.msra.mxu0 0
    %1261 = vmatprep.subr.bf16.mxu0 0
    %1262 = vmatpush1.bf16.xpose.msra.mxu0 0
    %1263 = vmatprep.subr.bf16.mxu0 0
    %1264 = vmatpush1.bf16.xpose.msra.mxu0 0
    %1265 = vmatprep.subr.bf16.mxu0 0
    %1266 = vmatpush1.bf16.xpose.msra.mxu0 0
    %1267 = vmatprep.subr.bf16.mxu0 0
    %1268 = vmatpush1.bf16.xpose.msra.mxu0 0
    %1269 = vmatprep.subr.bf16.mxu0 0
    %1270 = vmatpush1.bf16.xpose.msra.mxu0 0
    %1271 = vmatprep.subr.bf16.mxu0 0
    %1272 = vmatpush1.bf16.xpose.msra.mxu0 0
    %1273 = vmatprep.subr.bf16.mxu0 0
    %1274 = vmatpush1.bf16.xpose.msra.mxu0 0
    %1275 = vmatprep.subr.bf16.mxu0 0
    %1276 = vmatpush1.bf16.xpose.msra.mxu0 0
    %1277 = vmatprep.subr.bf16.mxu0 0
    %1278 = vmatpush1.bf16.xpose.msra.mxu0 0
    %1279 = vmatprep.subr.bf16.mxu0 0
    %1280 = vmatpush1.bf16.xpose.msra.mxu0 0
    %1281 = vmatprep.subr.bf16.mxu0 0
    %1282 = vmatpush1.bf16.xpose.msra.mxu0 0
    %1283 = vmatprep.mubr.bf16.mxu0 0
    %1284 = vmatmul.mubr.bf16.gmra.mrb[0].mxu0 %v1249
    %v1285 = vpop.f32.mrb[0].mxu0
    %v1286 = vadd.f32 0.0, %v1285
    %v1287 = vpop.f32.mrb[0].mxu0
    %v1288 = vpop.f32.mrb[0].mxu0
    %v1289 = vpop.f32.mrb[0].mxu0
    %1290 = vdwg.mxu0
    %v1291 = vmul.f32 %v1286, 0.088388346
    %v1292 = vadd.f32 %v1291, %v138
    %v1293 = vsel %vm942, %v1292, -inf
    %1294 = vmax.xlane.f32.xlu0 %v1293
    %v1295 = vpop.xlane.xlu0 %1294
    %v1296 = vsub.f32 %v1292, %v1295
    %v1297 = vmul.f32 %v1296, 1.442695
    %v1298 = vpow.pop %v1297
    %v1299 = vsel %vm942, %v1298, 0.0
    %1300 = vadd.xlane.f32.xlu0 %v1299
    %v1301 = vpop.xlane.xlu0 %1300
    %v1302 = vrcp.pop %v1301
    %v1303 = vmul.f32 %v1298, %v1302
    %v1304 = vpack.c.bf16 %v1303, %v1303
    %v1305 = vpack.c.bf16 %v886, %v886
    %v1307 = vsel %vm942, %v1304, 0
    %v1310 = vsel %vm959, %v1305, 0
    %1312 = vmatprep.subr.bf16.mxu0 0
    %1313 = vmatpush1.bf16.msra.mxu0 %v1310
    %1314 = vmatprep.subr.bf16.mxu0 0
    %1315 = vmatpush1.bf16.msra.mxu0 0
    %1316 = vmatprep.subr.bf16.mxu0 0
    %1317 = vmatpush1.bf16.msra.mxu0 0
    %1318 = vmatprep.subr.bf16.mxu0 0
    %1319 = vmatpush1.bf16.msra.mxu0 0
    %1320 = vmatprep.subr.bf16.mxu0 0
    %1321 = vmatpush1.bf16.msra.mxu0 0
    %1322 = vmatprep.subr.bf16.mxu0 0
    %1323 = vmatpush1.bf16.msra.mxu0 0
    %1324 = vmatprep.subr.bf16.mxu0 0
    %1325 = vmatpush1.bf16.msra.mxu0 0
    %1326 = vmatprep.subr.bf16.mxu0 0
    %1327 = vmatpush1.bf16.msra.mxu0 0
    %1328 = vmatprep.subr.bf16.mxu0 0
    %1329 = vmatpush1.bf16.msra.mxu0 0
    %1330 = vmatprep.subr.bf16.mxu0 0
    %1331 = vmatpush1.bf16.msra.mxu0 0
    %1332 = vmatprep.subr.bf16.mxu0 0
    %1333 = vmatpush1.bf16.msra.mxu0 0
    %1334 = vmatprep.subr.bf16.mxu0 0
    %1335 = vmatpush1.bf16.msra.mxu0 0
    %1336 = vmatprep.subr.bf16.mxu0 0
    %1337 = vmatpush1.bf16.msra.mxu0 0
    %1338 = vmatprep.subr.bf16.mxu0 0
    %1339 = vmatpush1.bf16.msra.mxu0 0
    %1340 = vmatprep.subr.bf16.mxu0 0
    %1341 = vmatpush1.bf16.msra.mxu0 0
    %1342 = vmatprep.subr.bf16.mxu0 0
    %1343 = vmatpush1.bf16.msra.mxu0 0
    %1344 = vmatprep.mubr.bf16.mxu0 0
    %1345 = vmatmul.mubr.bf16.gmra.mrb[0].mxu0 %v1307
    %v1346 = vpop.f32.mrb[0].mxu0
    %v1347 = vadd.f32 0.0, %v1346
    %v1348 = vpop.f32.mrb[0].mxu0
    %v1349 = vpop.f32.mrb[0].mxu0
    %v1350 = vpop.f32.mrb[0].mxu0
    %1351 = vdwg.mxu0
    %s1352 = scalar_lea.vmem [#allocation15], 24
    %1353 = vst [vmem:[%s1352] sm:$0xff] %v1248
    %s1354 = scalar_lea.vmem [#allocation17], 24
    %1355 = vst [vmem:[%s1354] sm:$0xff] %v886
    %v1356 = vpack.c.bf16 %v1230, %v998
    %v1357 = vpack.c.bf16 %v1347, %v1113
    %v1358 = vld [vmem:[#allocation10] sm:$0xff]
    %v1359 = vld [vmem:[#allocation10 + $0x8] sm:$0xff]
    %v1360 = vld [vmem:[#allocation10 + $0x10] sm:$0xff]
    %v1361 = vld [vmem:[#allocation10 + $0x18] sm:$0xff]
    %v1362 = vld [vmem:[#allocation10 + $0x20] sm:$0xff]
    %v1363 = vld [vmem:[#allocation10 + $0x28] sm:$0xff]
    %v1364 = vld [vmem:[#allocation10 + $0x30] sm:$0xff]
    %v1365 = vld [vmem:[#allocation10 + $0x38] sm:$0xff]
    %v1366 = vld [vmem:[#allocation10 + $0x40] sm:$0xff]
    %v1367 = vld [vmem:[#allocation10 + $0x48] sm:$0xff]
    %v1368 = vld [vmem:[#allocation10 + $0x50] sm:$0xff]
    %v1369 = vld [vmem:[#allocation10 + $0x58] sm:$0xff]
    %v1370 = vld [vmem:[#allocation10 + $0x60] sm:$0xff]
    %v1371 = vld [vmem:[#allocation10 + $0x68] sm:$0xff]
    %v1372 = vld [vmem:[#allocation10 + $0x70] sm:$0xff]
    %v1373 = vld [vmem:[#allocation10 + $0x78] sm:$0xff]
    %v1374 = vld [vmem:[#allocation10 + $0x80] sm:$0xff]
    %v1375 = vld [vmem:[#allocation10 + $0x88] sm:$0xff]
    %v1376 = vld [vmem:[#allocation10 + $0x90] sm:$0xff]
    %v1377 = vld [vmem:[#allocation10 + $0x98] sm:$0xff]
    %v1378 = vld [vmem:[#allocation10 + $0xa0] sm:$0xff]
    %v1379 = vld [vmem:[#allocation10 + $0xa8] sm:$0xff]
    %v1380 = vld [vmem:[#allocation10 + $0xb0] sm:$0xff]
    %v1381 = vld [vmem:[#allocation10 + $0xb8] sm:$0xff]
    %v1382 = vld [vmem:[#allocation10 + $0xc0] sm:$0xff]
    %v1383 = vld [vmem:[#allocation10 + $0xc8] sm:$0xff]
    %v1384 = vld [vmem:[#allocation10 + $0xd0] sm:$0xff]
    %v1385 = vld [vmem:[#allocation10 + $0xd8] sm:$0xff]
    %v1386 = vld [vmem:[#allocation10 + $0xe0] sm:$0xff]
    %v1387 = vld [vmem:[#allocation10 + $0xe8] sm:$0xff]
    %v1388 = vld [vmem:[#allocation10 + $0xf0] sm:$0xff]
    %v1389 = vld [vmem:[#allocation10 + $0xf8] sm:$0xff]
    %v1422 = vunpack.c.l.b16 %v1358
    %v1423 = vunpack.c.h.b16 %v1358
    %v1424 = vunpack.c.l.b16 %v1359
    %v1425 = vunpack.c.h.b16 %v1359
    %v1426 = vunpack.c.l.b16 %v1360
    %v1427 = vunpack.c.h.b16 %v1360
    %v1428 = vunpack.c.l.b16 %v1361
    %v1429 = vunpack.c.h.b16 %v1361
    %v1430 = vunpack.c.l.b16 %v1362
    %v1431 = vunpack.c.h.b16 %v1362
    %v1432 = vunpack.c.l.b16 %v1363
    %v1433 = vunpack.c.h.b16 %v1363
    %v1434 = vunpack.c.l.b16 %v1364
    %v1435 = vunpack.c.h.b16 %v1364
    %v1436 = vunpack.c.l.b16 %v1365
    %v1437 = vunpack.c.h.b16 %v1365
    %v1438 = vunpack.c.l.b16 %v1366
    %v1439 = vunpack.c.h.b16 %v1366
    %v1440 = vunpack.c.l.b16 %v1367
    %v1441 = vunpack.c.h.b16 %v1367
    %v1442 = vunpack.c.l.b16 %v1368
    %v1443 = vunpack.c.h.b16 %v1368
    %v1444 = vunpack.c.l.b16 %v1369
    %v1445 = vunpack.c.h.b16 %v1369
    %v1446 = vunpack.c.l.b16 %v1370
    %v1447 = vunpack.c.h.b16 %v1370
    %v1448 = vunpack.c.l.b16 %v1371
    %v1449 = vunpack.c.h.b16 %v1371
    %v1450 = vunpack.c.l.b16 %v1372
    %v1451 = vunpack.c.h.b16 %v1372
    %v1452 = vunpack.c.l.b16 %v1373
    %v1453 = vunpack.c.h.b16 %v1373
    %v1454 = vunpack.c.l.b16 %v1374
    %v1455 = vunpack.c.h.b16 %v1374
    %v1456 = vunpack.c.l.b16 %v1375
    %v1457 = vunpack.c.h.b16 %v1375
    %v1458 = vunpack.c.l.b16 %v1376
    %v1459 = vunpack.c.h.b16 %v1376
    %v1460 = vunpack.c.l.b16 %v1377
    %v1461 = vunpack.c.h.b16 %v1377
    %v1462 = vunpack.c.l.b16 %v1378
    %v1463 = vunpack.c.h.b16 %v1378
    %v1464 = vunpack.c.l.b16 %v1379
    %v1465 = vunpack.c.h.b16 %v1379
    %v1466 = vunpack.c.l.b16 %v1380
    %v1467 = vunpack.c.h.b16 %v1380
    %v1468 = vunpack.c.l.b16 %v1381
    %v1469 = vunpack.c.h.b16 %v1381
    %v1470 = vunpack.c.l.b16 %v1382
    %v1471 = vunpack.c.h.b16 %v1382
    %v1472 = vunpack.c.l.b16 %v1383
    %v1473 = vunpack.c.h.b16 %v1383
    %v1474 = vunpack.c.l.b16 %v1384
    %v1475 = vunpack.c.h.b16 %v1384
    %v1476 = vunpack.c.l.b16 %v1385
    %v1477 = vunpack.c.h.b16 %v1385
    %v1478 = vunpack.c.l.b16 %v1386
    %v1479 = vunpack.c.h.b16 %v1386
    %v1480 = vunpack.c.l.b16 %v1387
    %v1481 = vunpack.c.h.b16 %v1387
    %v1482 = vunpack.c.l.b16 %v1388
    %v1483 = vunpack.c.h.b16 %v1388
    %v1484 = vunpack.c.l.b16 %v1389
    %v1485 = vunpack.c.h.b16 %v1389
    %v1486 = vpack.c.b16 %v1424, %v1422
    %v1487 = vpack.c.b16 %v1425, %v1423
    %v1488 = vpack.c.b16 %v1428, %v1426
    %v1489 = vpack.c.b16 %v1429, %v1427
    %v1490 = vpack.c.b16 %v1432, %v1430
    %v1491 = vpack.c.b16 %v1433, %v1431
    %v1492 = vpack.c.b16 %v1436, %v1434
    %v1493 = vpack.c.b16 %v1437, %v1435
    %v1494 = vpack.c.b16 %v1440, %v1438
    %v1495 = vpack.c.b16 %v1441, %v1439
    %v1496 = vpack.c.b16 %v1444, %v1442
    %v1497 = vpack.c.b16 %v1445, %v1443
    %v1498 = vpack.c.b16 %v1448, %v1446
    %v1499 = vpack.c.b16 %v1449, %v1447
    %v1500 = vpack.c.b16 %v1452, %v1450
    %v1501 = vpack.c.b16 %v1453, %v1451
    %v1502 = vpack.c.b16 %v1456, %v1454
    %v1503 = vpack.c.b16 %v1457, %v1455
    %v1504 = vpack.c.b16 %v1460, %v1458
    %v1505 = vpack.c.b16 %v1461, %v1459
    %v1506 = vpack.c.b16 %v1464, %v1462
    %v1507 = vpack.c.b16 %v1465, %v1463
    %v1508 = vpack.c.b16 %v1468, %v1466
    %v1509 = vpack.c.b16 %v1469, %v1467
    %v1510 = vpack.c.b16 %v1472, %v1470
    %v1511 = vpack.c.b16 %v1473, %v1471
    %v1512 = vpack.c.b16 %v1476, %v1474
    %v1513 = vpack.c.b16 %v1477, %v1475
    %v1514 = vpack.c.b16 %v1480, %v1478
    %v1515 = vpack.c.b16 %v1481, %v1479
    %v1516 = vpack.c.b16 %v1484, %v1482
    %v1517 = vpack.c.b16 %v1485, %v1483
    %1550 = vmatprep.subr.bf16.mxu0 %v1487
    %1551 = vmatpush1.bf16.msra.mxu0 %v1486
    %1552 = vmatprep.subr.bf16.mxu0 %v1489
    %1553 = vmatpush1.bf16.msra.mxu0 %v1488
    %1554 = vmatprep.subr.bf16.mxu0 %v1491
    %1555 = vmatpush1.bf16.msra.mxu0 %v1490
    %1556 = vmatprep.subr.bf16.mxu0 %v1493
    %1557 = vmatpush1.bf16.msra.mxu0 %v1492
    %1558 = vmatprep.subr.bf16.mxu0 %v1495
    %1559 = vmatpush1.bf16.msra.mxu0 %v1494
    %1560 = vmatprep.subr.bf16.mxu0 %v1497
    %1561 = vmatpush1.bf16.msra.mxu0 %v1496
    %1562 = vmatprep.subr.bf16.mxu0 %v1499
    %1563 = vmatpush1.bf16.msra.mxu0 %v1498
    %1564 = vmatprep.subr.bf16.mxu0 %v1501
    %1565 = vmatpush1.bf16.msra.mxu0 %v1500
    %1566 = vmatprep.subr.bf16.mxu0 %v1503
    %1567 = vmatpush1.bf16.msra.mxu0 %v1502
    %1568 = vmatprep.subr.bf16.mxu0 %v1505
    %1569 = vmatpush1.bf16.msra.mxu0 %v1504
    %1570 = vmatprep.subr.bf16.mxu0 %v1507
    %1571 = vmatpush1.bf16.msra.mxu0 %v1506
    %1572 = vmatprep.subr.bf16.mxu0 %v1509
    %1573 = vmatpush1.bf16.msra.mxu0 %v1508
    %1574 = vmatprep.subr.bf16.mxu0 %v1511
    %1575 = vmatpush1.bf16.msra.mxu0 %v1510
    %1576 = vmatprep.subr.bf16.mxu0 %v1513
    %1577 = vmatpush1.bf16.msra.mxu0 %v1512
    %1578 = vmatprep.subr.bf16.mxu0 %v1515
    %1579 = vmatpush1.bf16.msra.mxu0 %v1514
    %1580 = vmatprep.subr.bf16.mxu0 %v1517
    %1581 = vmatpush1.bf16.msra.mxu0 %v1516
    %1582 = vmatprep.mubr.bf16.mxu0 %v1357
    %1583 = vmatmul.mubr.bf16.gmra.mrb[0].mxu0 %v1356
    %v1584 = vpop.f32.mrb[0].mxu0
    %v1585 = vadd.f32 0.0, %v1584
    %v1586 = vpop.f32.mrb[0].mxu0
    %v1587 = vadd.f32 0.0, %v1586
    %v1588 = vpop.f32.mrb[0].mxu0
    %v1589 = vadd.f32 0.0, %v1588
    %v1590 = vpop.f32.mrb[0].mxu0
    %v1591 = vadd.f32 0.0, %v1590
    %1592 = vdwg.mxu0
    %v1593 = vadd.f32 %v132, %v1585
    %v1594 = vadd.f32 %v133, %v1587
    %v1595 = vadd.f32 %v134, %v1589
    %v1596 = vadd.f32 %v135, %v1591
    %v1597 = vmul.f32 %v1593, %v1593
    %v1598 = vmul.f32 %v1594, %v1594
    %v1599 = vmul.f32 %v1595, %v1595
    %v1600 = vmul.f32 %v1596, %v1596
    %v1601 = vadd.f32 %v1597, %v1598
    %1602 = vadd.xlane.f32.xlu0 %v1601
    %v1603 = vpop.xlane.xlu0 %1602
    %v1604 = vadd.f32 %v1599, %v1600
    %1605 = vadd.xlane.f32.xlu0 %v1604
    %v1606 = vpop.xlane.xlu0 %1605
    %v1607 = vmul.f32 %v1603, %v154
    %v1608 = vmul.f32 %v1606, %v154
    %v1609 = vadd.f32 %v1607, 1e-05
    %v1610 = vadd.f32 %v1608, 1e-05
    %v1611 = vrsqrt.pop %v1609
    %v1612 = vrsqrt.pop %v1610
    %v1613 = vmul.f32 %v1593, %v1611
    %v1614 = vmul.f32 %v1594, %v1611
    %v1615 = vmul.f32 %v1595, %v1612
    %v1616 = vmul.f32 %v1596, %v1612
    %v1617 = vld [vmem:[%s9] sm:$0x3]
    %v1619 = vlaneseq
    %v1620 = vshrl.u32 %v1619, 7
    %v1621 = vsub.s32 0, %v1620
    %v1622 = vrot.slane %v1617, %v1621
    %v1623 = vlaneseq
    %v1624 = vshrl.u32 %v1623, 7
    %v1625 = vsub.s32 1, %v1624
    %v1626 = vrot.slane %v1617, %v1625
    %v1629 = vmul.f32 %v1613, %v1622
    %v1630 = vmul.f32 %v1614, %v1626
    %v1631 = vmul.f32 %v1615, %v1622
    %v1632 = vmul.f32 %v1616, %v1626
    %v1633 = vpack.c.bf16 %v1631, %v1629
    %v1634 = vpack.c.bf16 %v1632, %v1630
    %v1635 = vld [vmem:[#allocation11] sm:$0xff]
    %v1636 = vld [vmem:[#allocation11 + $0x8] sm:$0xff]
    %v1637 = vld [vmem:[#allocation11 + $0x10] sm:$0xff]
    %v1638 = vld [vmem:[#allocation11 + $0x18] sm:$0xff]
    %v1639 = vld [vmem:[#allocation11 + $0x20] sm:$0xff]
    %v1640 = vld [vmem:[#allocation11 + $0x28] sm:$0xff]
    %v1641 = vld [vmem:[#allocation11 + $0x30] sm:$0xff]
    %v1642 = vld [vmem:[#allocation11 + $0x38] sm:$0xff]
    %v1643 = vld [vmem:[#allocation11 + $0x40] sm:$0xff]
    %v1644 = vld [vmem:[#allocation11 + $0x48] sm:$0xff]
    %v1645 = vld [vmem:[#allocation11 + $0x50] sm:$0xff]
    %v1646 = vld [vmem:[#allocation11 + $0x58] sm:$0xff]
    %v1647 = vld [vmem:[#allocation11 + $0x60] sm:$0xff]
    %v1648 = vld [vmem:[#allocation11 + $0x68] sm:$0xff]
    %v1649 = vld [vmem:[#allocation11 + $0x70] sm:$0xff]
    %v1650 = vld [vmem:[#allocation11 + $0x78] sm:$0xff]
    %v1651 = vld [vmem:[#allocation11 + $0x80] sm:$0xff]
    %v1652 = vld [vmem:[#allocation11 + $0x88] sm:$0xff]
    %v1653 = vld [vmem:[#allocation11 + $0x90] sm:$0xff]
    %v1654 = vld [vmem:[#allocation11 + $0x98] sm:$0xff]
    %v1655 = vld [vmem:[#allocation11 + $0xa0] sm:$0xff]
    %v1656 = vld [vmem:[#allocation11 + $0xa8] sm:$0xff]
    %v1657 = vld [vmem:[#allocation11 + $0xb0] sm:$0xff]
    %v1658 = vld [vmem:[#allocation11 + $0xb8] sm:$0xff]
    %v1659 = vld [vmem:[#allocation11 + $0xc0] sm:$0xff]
    %v1660 = vld [vmem:[#allocation11 + $0xc8] sm:$0xff]
    %v1661 = vld [vmem:[#allocation11 + $0xd0] sm:$0xff]
    %v1662 = vld [vmem:[#allocation11 + $0xd8] sm:$0xff]
    %v1663 = vld [vmem:[#allocation11 + $0xe0] sm:$0xff]
    %v1664 = vld [vmem:[#allocation11 + $0xe8] sm:$0xff]
    %v1665 = vld [vmem:[#allocation11 + $0xf0] sm:$0xff]
    %v1666 = vld [vmem:[#allocation11 + $0xf8] sm:$0xff]
    %v1667 = vld [vmem:[#allocation11 + $0x100] sm:$0xff]
    %v1668 = vld [vmem:[#allocation11 + $0x108] sm:$0xff]
    %v1669 = vld [vmem:[#allocation11 + $0x110] sm:$0xff]
    %v1670 = vld [vmem:[#allocation11 + $0x118] sm:$0xff]
    %v1671 = vld [vmem:[#allocation11 + $0x120] sm:$0xff]
    %v1672 = vld [vmem:[#allocation11 + $0x128] sm:$0xff]
    %v1673 = vld [vmem:[#allocation11 + $0x130] sm:$0xff]
    %v1674 = vld [vmem:[#allocation11 + $0x138] sm:$0xff]
    %v1675 = vld [vmem:[#allocation11 + $0x140] sm:$0xff]
    %v1676 = vld [vmem:[#allocation11 + $0x148] sm:$0xff]
    %v1677 = vld [vmem:[#allocation11 + $0x150] sm:$0xff]
    %v1678 = vld [vmem:[#allocation11 + $0x158] sm:$0xff]
    %v1679 = vld [vmem:[#allocation11 + $0x160] sm:$0xff]
    %v1680 = vld [vmem:[#allocation11 + $0x168] sm:$0xff]
    %v1681 = vld [vmem:[#allocation11 + $0x170] sm:$0xff]
    %v1682 = vld [vmem:[#allocation11 + $0x178] sm:$0xff]
    %v1683 = vld [vmem:[#allocation11 + $0x180] sm:$0xff]
    %v1684 = vld [vmem:[#allocation11 + $0x188] sm:$0xff]
    %v1685 = vld [vmem:[#allocation11 + $0x190] sm:$0xff]
    %v1686 = vld [vmem:[#allocation11 + $0x198] sm:$0xff]
    %v1687 = vld [vmem:[#allocation11 + $0x1a0] sm:$0xff]
    %v1688 = vld [vmem:[#allocation11 + $0x1a8] sm:$0xff]
    %v1689 = vld [vmem:[#allocation11 + $0x1b0] sm:$0xff]
    %v1690 = vld [vmem:[#allocation11 + $0x1b8] sm:$0xff]
    %v1691 = vld [vmem:[#allocation11 + $0x1c0] sm:$0xff]
    %v1692 = vld [vmem:[#allocation11 + $0x1c8] sm:$0xff]
    %v1693 = vld [vmem:[#allocation11 + $0x1d0] sm:$0xff]
    %v1694 = vld [vmem:[#allocation11 + $0x1d8] sm:$0xff]
    %v1695 = vld [vmem:[#allocation11 + $0x1e0] sm:$0xff]
    %v1696 = vld [vmem:[#allocation11 + $0x1e8] sm:$0xff]
    %v1697 = vld [vmem:[#allocation11 + $0x1f0] sm:$0xff]
    %v1698 = vld [vmem:[#allocation11 + $0x1f8] sm:$0xff]
    %v1699 = vld [vmem:[#allocation11 + $0x200] sm:$0xff]
    %v1700 = vld [vmem:[#allocation11 + $0x208] sm:$0xff]
    %v1701 = vld [vmem:[#allocation11 + $0x210] sm:$0xff]
    %v1702 = vld [vmem:[#allocation11 + $0x218] sm:$0xff]
    %v1703 = vld [vmem:[#allocation11 + $0x220] sm:$0xff]
    %v1704 = vld [vmem:[#allocation11 + $0x228] sm:$0xff]
    %v1705 = vld [vmem:[#allocation11 + $0x230] sm:$0xff]
    %v1706 = vld [vmem:[#allocation11 + $0x238] sm:$0xff]
    %v1707 = vld [vmem:[#allocation11 + $0x240] sm:$0xff]
    %v1708 = vld [vmem:[#allocation11 + $0x248] sm:$0xff]
    %v1709 = vld [vmem:[#allocation11 + $0x250] sm:$0xff]
    %v1710 = vld [vmem:[#allocation11 + $0x258] sm:$0xff]
    %v1711 = vld [vmem:[#allocation11 + $0x260] sm:$0xff]
    %v1712 = vld [vmem:[#allocation11 + $0x268] sm:$0xff]
    %v1713 = vld [vmem:[#allocation11 + $0x270] sm:$0xff]
    %v1714 = vld [vmem:[#allocation11 + $0x278] sm:$0xff]
    %v1715 = vld [vmem:[#allocation11 + $0x280] sm:$0xff]
    %v1716 = vld [vmem:[#allocation11 + $0x288] sm:$0xff]
    %v1717 = vld [vmem:[#allocation11 + $0x290] sm:$0xff]
    %v1718 = vld [vmem:[#allocation11 + $0x298] sm:$0xff]
    %v1719 = vld [vmem:[#allocation11 + $0x2a0] sm:$0xff]
    %v1720 = vld [vmem:[#allocation11 + $0x2a8] sm:$0xff]
    %v1721 = vld [vmem:[#allocation11 + $0x2b0] sm:$0xff]
    %v1722 = vld [vmem:[#allocation11 + $0x2b8] sm:$0xff]
    %v1723 = vld [vmem:[#allocation11 + $0x2c0] sm:$0xff]
    %v1724 = vld [vmem:[#allocation11 + $0x2c8] sm:$0xff]
    %v1725 = vld [vmem:[#allocation11 + $0x2d0] sm:$0xff]
    %v1726 = vld [vmem:[#allocation11 + $0x2d8] sm:$0xff]
    %v1727 = vld [vmem:[#allocation11 + $0x2e0] sm:$0xff]
    %v1728 = vld [vmem:[#allocation11 + $0x2e8] sm:$0xff]
    %v1729 = vld [vmem:[#allocation11 + $0x2f0] sm:$0xff]
    %v1730 = vld [vmem:[#allocation11 + $0x2f8] sm:$0xff]
    %v1731 = vld [vmem:[#allocation11 + $0x300] sm:$0xff]
    %v1732 = vld [vmem:[#allocation11 + $0x308] sm:$0xff]
    %v1733 = vld [vmem:[#allocation11 + $0x310] sm:$0xff]
    %v1734 = vld [vmem:[#allocation11 + $0x318] sm:$0xff]
    %v1735 = vld [vmem:[#allocation11 + $0x320] sm:$0xff]
    %v1736 = vld [vmem:[#allocation11 + $0x328] sm:$0xff]
    %v1737 = vld [vmem:[#allocation11 + $0x330] sm:$0xff]
    %v1738 = vld [vmem:[#allocation11 + $0x338] sm:$0xff]
    %v1739 = vld [vmem:[#allocation11 + $0x340] sm:$0xff]
    %v1740 = vld [vmem:[#allocation11 + $0x348] sm:$0xff]
    %v1741 = vld [vmem:[#allocation11 + $0x350] sm:$0xff]
    %v1742 = vld [vmem:[#allocation11 + $0x358] sm:$0xff]
    %v1743 = vld [vmem:[#allocation11 + $0x360] sm:$0xff]
    %v1744 = vld [vmem:[#allocation11 + $0x368] sm:$0xff]
    %v1745 = vld [vmem:[#allocation11 + $0x370] sm:$0xff]
    %v1746 = vld [vmem:[#allocation11 + $0x378] sm:$0xff]
    %v1747 = vld [vmem:[#allocation11 + $0x380] sm:$0xff]
    %v1748 = vld [vmem:[#allocation11 + $0x388] sm:$0xff]
    %v1749 = vld [vmem:[#allocation11 + $0x390] sm:$0xff]
    %v1750 = vld [vmem:[#allocation11 + $0x398] sm:$0xff]
    %v1751 = vld [vmem:[#allocation11 + $0x3a0] sm:$0xff]
    %v1752 = vld [vmem:[#allocation11 + $0x3a8] sm:$0xff]
    %v1753 = vld [vmem:[#allocation11 + $0x3b0] sm:$0xff]
    %v1754 = vld [vmem:[#allocation11 + $0x3b8] sm:$0xff]
    %v1755 = vld [vmem:[#allocation11 + $0x3c0] sm:$0xff]
    %v1756 = vld [vmem:[#allocation11 + $0x3c8] sm:$0xff]
    %v1757 = vld [vmem:[#allocation11 + $0x3d0] sm:$0xff]
    %v1758 = vld [vmem:[#allocation11 + $0x3d8] sm:$0xff]
    %v1759 = vld [vmem:[#allocation11 + $0x3e0] sm:$0xff]
    %v1760 = vld [vmem:[#allocation11 + $0x3e8] sm:$0xff]
    %v1761 = vld [vmem:[#allocation11 + $0x3f0] sm:$0xff]
    %v1762 = vld [vmem:[#allocation11 + $0x3f8] sm:$0xff]
    %v1891 = vunpack.c.l.b16 %v1635
    %v1892 = vunpack.c.h.b16 %v1635
    %v1893 = vunpack.c.l.b16 %v1636
    %v1894 = vunpack.c.h.b16 %v1636
    %v1895 = vunpack.c.l.b16 %v1637
    %v1896 = vunpack.c.h.b16 %v1637
    %v1897 = vunpack.c.l.b16 %v1638
    %v1898 = vunpack.c.h.b16 %v1638
    %v1899 = vunpack.c.l.b16 %v1639
    %v1900 = vunpack.c.h.b16 %v1639
    %v1901 = vunpack.c.l.b16 %v1640
    %v1902 = vunpack.c.h.b16 %v1640
    %v1903 = vunpack.c.l.b16 %v1641
    %v1904 = vunpack.c.h.b16 %v1641
    %v1905 = vunpack.c.l.b16 %v1642
    %v1906 = vunpack.c.h.b16 %v1642
    %v1907 = vunpack.c.l.b16 %v1643
    %v1908 = vunpack.c.h.b16 %v1643
    %v1909 = vunpack.c.l.b16 %v1644
    %v1910 = vunpack.c.h.b16 %v1644
    %v1911 = vunpack.c.l.b16 %v1645
    %v1912 = vunpack.c.h.b16 %v1645
    %v1913 = vunpack.c.l.b16 %v1646
    %v1914 = vunpack.c.h.b16 %v1646
    %v1915 = vunpack.c.l.b16 %v1647
    %v1916 = vunpack.c.h.b16 %v1647
    %v1917 = vunpack.c.l.b16 %v1648
    %v1918 = vunpack.c.h.b16 %v1648
    %v1919 = vunpack.c.l.b16 %v1649
    %v1920 = vunpack.c.h.b16 %v1649
    %v1921 = vunpack.c.l.b16 %v1650
    %v1922 = vunpack.c.h.b16 %v1650
    %v1923 = vunpack.c.l.b16 %v1651
    %v1924 = vunpack.c.h.b16 %v1651
    %v1925 = vunpack.c.l.b16 %v1652
    %v1926 = vunpack.c.h.b16 %v1652
    %v1927 = vunpack.c.l.b16 %v1653
    %v1928 = vunpack.c.h.b16 %v1653
    %v1929 = vunpack.c.l.b16 %v1654
    %v1930 = vunpack.c.h.b16 %v1654
    %v1931 = vunpack.c.l.b16 %v1655
    %v1932 = vunpack.c.h.b16 %v1655
    %v1933 = vunpack.c.l.b16 %v1656
    %v1934 = vunpack.c.h.b16 %v1656
    %v1935 = vunpack.c.l.b16 %v1657
    %v1936 = vunpack.c.h.b16 %v1657
    %v1937 = vunpack.c.l.b16 %v1658
    %v1938 = vunpack.c.h.b16 %v1658
    %v1939 = vunpack.c.l.b16 %v1659
    %v1940 = vunpack.c.h.b16 %v1659
    %v1941 = vunpack.c.l.b16 %v1660
    %v1942 = vunpack.c.h.b16 %v1660
    %v1943 = vunpack.c.l.b16 %v1661
    %v1944 = vunpack.c.h.b16 %v1661
    %v1945 = vunpack.c.l.b16 %v1662
    %v1946 = vunpack.c.h.b16 %v1662
    %v1947 = vunpack.c.l.b16 %v1663
    %v1948 = vunpack.c.h.b16 %v1663
    %v1949 = vunpack.c.l.b16 %v1664
    %v1950 = vunpack.c.h.b16 %v1664
    %v1951 = vunpack.c.l.b16 %v1665
    %v1952 = vunpack.c.h.b16 %v1665
    %v1953 = vunpack.c.l.b16 %v1666
    %v1954 = vunpack.c.h.b16 %v1666
    %v1955 = vunpack.c.l.b16 %v1667
    %v1956 = vunpack.c.h.b16 %v1667
    %v1957 = vunpack.c.l.b16 %v1668
    %v1958 = vunpack.c.h.b16 %v1668
    %v1959 = vunpack.c.l.b16 %v1669
    %v1960 = vunpack.c.h.b16 %v1669
    %v1961 = vunpack.c.l.b16 %v1670
    %v1962 = vunpack.c.h.b16 %v1670
    %v1963 = vunpack.c.l.b16 %v1671
    %v1964 = vunpack.c.h.b16 %v1671
    %v1965 = vunpack.c.l.b16 %v1672
    %v1966 = vunpack.c.h.b16 %v1672
    %v1967 = vunpack.c.l.b16 %v1673
    %v1968 = vunpack.c.h.b16 %v1673
    %v1969 = vunpack.c.l.b16 %v1674
    %v1970 = vunpack.c.h.b16 %v1674
    %v1971 = vunpack.c.l.b16 %v1675
    %v1972 = vunpack.c.h.b16 %v1675
    %v1973 = vunpack.c.l.b16 %v1676
    %v1974 = vunpack.c.h.b16 %v1676
    %v1975 = vunpack.c.l.b16 %v1677
    %v1976 = vunpack.c.h.b16 %v1677
    %v1977 = vunpack.c.l.b16 %v1678
    %v1978 = vunpack.c.h.b16 %v1678
    %v1979 = vunpack.c.l.b16 %v1679
    %v1980 = vunpack.c.h.b16 %v1679
    %v1981 = vunpack.c.l.b16 %v1680
    %v1982 = vunpack.c.h.b16 %v1680
    %v1983 = vunpack.c.l.b16 %v1681
    %v1984 = vunpack.c.h.b16 %v1681
    %v1985 = vunpack.c.l.b16 %v1682
    %v1986 = vunpack.c.h.b16 %v1682
    %v1987 = vunpack.c.l.b16 %v1683
    %v1988 = vunpack.c.h.b16 %v1683
    %v1989 = vunpack.c.l.b16 %v1684
    %v1990 = vunpack.c.h.b16 %v1684
    %v1991 = vunpack.c.l.b16 %v1685
    %v1992 = vunpack.c.h.b16 %v1685
    %v1993 = vunpack.c.l.b16 %v1686
    %v1994 = vunpack.c.h.b16 %v1686
    %v1995 = vunpack.c.l.b16 %v1687
    %v1996 = vunpack.c.h.b16 %v1687
    %v1997 = vunpack.c.l.b16 %v1688
    %v1998 = vunpack.c.h.b16 %v1688
    %v1999 = vunpack.c.l.b16 %v1689
    %v2000 = vunpack.c.h.b16 %v1689
    %v2001 = vunpack.c.l.b16 %v1690
    %v2002 = vunpack.c.h.b16 %v1690
    %v2003 = vunpack.c.l.b16 %v1691
    %v2004 = vunpack.c.h.b16 %v1691
    %v2005 = vunpack.c.l.b16 %v1692
    %v2006 = vunpack.c.h.b16 %v1692
    %v2007 = vunpack.c.l.b16 %v1693
    %v2008 = vunpack.c.h.b16 %v1693
    %v2009 = vunpack.c.l.b16 %v1694
    %v2010 = vunpack.c.h.b16 %v1694
    %v2011 = vunpack.c.l.b16 %v1695
    %v2012 = vunpack.c.h.b16 %v1695
    %v2013 = vunpack.c.l.b16 %v1696
    %v2014 = vunpack.c.h.b16 %v1696
    %v2015 = vunpack.c.l.b16 %v1697
    %v2016 = vunpack.c.h.b16 %v1697
    %v2017 = vunpack.c.l.b16 %v1698
    %v2018 = vunpack.c.h.b16 %v1698
    %v2019 = vunpack.c.l.b16 %v1699
    %v2020 = vunpack.c.h.b16 %v1699
    %v2021 = vunpack.c.l.b16 %v1700
    %v2022 = vunpack.c.h.b16 %v1700
    %v2023 = vunpack.c.l.b16 %v1701
    %v2024 = vunpack.c.h.b16 %v1701
    %v2025 = vunpack.c.l.b16 %v1702
    %v2026 = vunpack.c.h.b16 %v1702
    %v2027 = vunpack.c.l.b16 %v1703
    %v2028 = vunpack.c.h.b16 %v1703
    %v2029 = vunpack.c.l.b16 %v1704
    %v2030 = vunpack.c.h.b16 %v1704
    %v2031 = vunpack.c.l.b16 %v1705
    %v2032 = vunpack.c.h.b16 %v1705
    %v2033 = vunpack.c.l.b16 %v1706
    %v2034 = vunpack.c.h.b16 %v1706
    %v2035 = vunpack.c.l.b16 %v1707
    %v2036 = vunpack.c.h.b16 %v1707
    %v2037 = vunpack.c.l.b16 %v1708
    %v2038 = vunpack.c.h.b16 %v1708
    %v2039 = vunpack.c.l.b16 %v1709
    %v2040 = vunpack.c.h.b16 %v1709
    %v2041 = vunpack.c.l.b16 %v1710
    %v2042 = vunpack.c.h.b16 %v1710
    %v2043 = vunpack.c.l.b16 %v1711
    %v2044 = vunpack.c.h.b16 %v1711
    %v2045 = vunpack.c.l.b16 %v1712
    %v2046 = vunpack.c.h.b16 %v1712
    %v2047 = vunpack.c.l.b16 %v1713
    %v2048 = vunpack.c.h.b16 %v1713
    %v2049 = vunpack.c.l.b16 %v1714
    %v2050 = vunpack.c.h.b16 %v1714
    %v2051 = vunpack.c.l.b16 %v1715
    %v2052 = vunpack.c.h.b16 %v1715
    %v2053 = vunpack.c.l.b16 %v1716
    %v2054 = vunpack.c.h.b16 %v1716
    %v2055 = vunpack.c.l.b16 %v1717
    %v2056 = vunpack.c.h.b16 %v1717
    %v2057 = vunpack.c.l.b16 %v1718
    %v2058 = vunpack.c.h.b16 %v1718
    %v2059 = vunpack.c.l.b16 %v1719
    %v2060 = vunpack.c.h.b16 %v1719
    %v2061 = vunpack.c.l.b16 %v1720
    %v2062 = vunpack.c.h.b16 %v1720
    %v2063 = vunpack.c.l.b16 %v1721
    %v2064 = vunpack.c.h.b16 %v1721
    %v2065 = vunpack.c.l.b16 %v1722
    %v2066 = vunpack.c.h.b16 %v1722
    %v2067 = vunpack.c.l.b16 %v1723
    %v2068 = vunpack.c.h.b16 %v1723
    %v2069 = vunpack.c.l.b16 %v1724
    %v2070 = vunpack.c.h.b16 %v1724
    %v2071 = vunpack.c.l.b16 %v1725
    %v2072 = vunpack.c.h.b16 %v1725
    %v2073 = vunpack.c.l.b16 %v1726
    %v2074 = vunpack.c.h.b16 %v1726
    %v2075 = vunpack.c.l.b16 %v1727
    %v2076 = vunpack.c.h.b16 %v1727
    %v2077 = vunpack.c.l.b16 %v1728
    %v2078 = vunpack.c.h.b16 %v1728
    %v2079 = vunpack.c.l.b16 %v1729
    %v2080 = vunpack.c.h.b16 %v1729
    %v2081 = vunpack.c.l.b16 %v1730
    %v2082 = vunpack.c.h.b16 %v1730
    %v2083 = vunpack.c.l.b16 %v1731
    %v2084 = vunpack.c.h.b16 %v1731
    %v2085 = vunpack.c.l.b16 %v1732
    %v2086 = vunpack.c.h.b16 %v1732
    %v2087 = vunpack.c.l.b16 %v1733
    %v2088 = vunpack.c.h.b16 %v1733
    %v2089 = vunpack.c.l.b16 %v1734
    %v2090 = vunpack.c.h.b16 %v1734
    %v2091 = vunpack.c.l.b16 %v1735
    %v2092 = vunpack.c.h.b16 %v1735
    %v2093 = vunpack.c.l.b16 %v1736
    %v2094 = vunpack.c.h.b16 %v1736
    %v2095 = vunpack.c.l.b16 %v1737
    %v2096 = vunpack.c.h.b16 %v1737
    %v2097 = vunpack.c.l.b16 %v1738
    %v2098 = vunpack.c.h.b16 %v1738
    %v2099 = vunpack.c.l.b16 %v1739
    %v2100 = vunpack.c.h.b16 %v1739
    %v2101 = vunpack.c.l.b16 %v1740
    %v2102 = vunpack.c.h.b16 %v1740
    %v2103 = vunpack.c.l.b16 %v1741
    %v2104 = vunpack.c.h.b16 %v1741
    %v2105 = vunpack.c.l.b16 %v1742
    %v2106 = vunpack.c.h.b16 %v1742
    %v2107 = vunpack.c.l.b16 %v1743
    %v2108 = vunpack.c.h.b16 %v1743
    %v2109 = vunpack.c.l.b16 %v1744
    %v2110 = vunpack.c.h.b16 %v1744
    %v2111 = vunpack.c.l.b16 %v1745
    %v2112 = vunpack.c.h.b16 %v1745
    %v2113 = vunpack.c.l.b16 %v1746
    %v2114 = vunpack.c.h.b16 %v1746
    %v2115 = vunpack.c.l.b16 %v1747
    %v2116 = vunpack.c.h.b16 %v1747
    %v2117 = vunpack.c.l.b16 %v1748
    %v2118 = vunpack.c.h.b16 %v1748
    %v2119 = vunpack.c.l.b16 %v1749
    %v2120 = vunpack.c.h.b16 %v1749
    %v2121 = vunpack.c.l.b16 %v1750
    %v2122 = vunpack.c.h.b16 %v1750
    %v2123 = vunpack.c.l.b16 %v1751
    %v2124 = vunpack.c.h.b16 %v1751
    %v2125 = vunpack.c.l.b16 %v1752
    %v2126 = vunpack.c.h.b16 %v1752
    %v2127 = vunpack.c.l.b16 %v1753
    %v2128 = vunpack.c.h.b16 %v1753
    %v2129 = vunpack.c.l.b16 %v1754
    %v2130 = vunpack.c.h.b16 %v1754
    %v2131 = vunpack.c.l.b16 %v1755
    %v2132 = vunpack.c.h.b16 %v1755
    %v2133 = vunpack.c.l.b16 %v1756
    %v2134 = vunpack.c.h.b16 %v1756
    %v2135 = vunpack.c.l.b16 %v1757
    %v2136 = vunpack.c.h.b16 %v1757
    %v2137 = vunpack.c.l.b16 %v1758
    %v2138 = vunpack.c.h.b16 %v1758
    %v2139 = vunpack.c.l.b16 %v1759
    %v2140 = vunpack.c.h.b16 %v1759
    %v2141 = vunpack.c.l.b16 %v1760
    %v2142 = vunpack.c.h.b16 %v1760
    %v2143 = vunpack.c.l.b16 %v1761
    %v2144 = vunpack.c.h.b16 %v1761
    %v2145 = vunpack.c.l.b16 %v1762
    %v2146 = vunpack.c.h.b16 %v1762
    %v2147 = vpack.c.b16 %v1899, %v1891
    %v2148 = vpack.c.b16 %v1900, %v1892
    %v2149 = vpack.c.b16 %v1901, %v1893
    %v2150 = vpack.c.b16 %v1902, %v1894
    %v2151 = vpack.c.b16 %v1903, %v1895
    %v2152 = vpack.c.b16 %v1904, %v1896
    %v2153 = vpack.c.b16 %v1905, %v1897
    %v2154 = vpack.c.b16 %v1906, %v1898
    %v2155 = vpack.c.b16 %v1915, %v1907
    %v2156 = vpack.c.b16 %v1916, %v1908
    %v2157 = vpack.c.b16 %v1917, %v1909
    %v2158 = vpack.c.b16 %v1918, %v1910
    %v2159 = vpack.c.b16 %v1919, %v1911
    %v2160 = vpack.c.b16 %v1920, %v1912
    %v2161 = vpack.c.b16 %v1921, %v1913
    %v2162 = vpack.c.b16 %v1922, %v1914
    %v2163 = vpack.c.b16 %v1931, %v1923
    %v2164 = vpack.c.b16 %v1932, %v1924
    %v2165 = vpack.c.b16 %v1933, %v1925
    %v2166 = vpack.c.b16 %v1934, %v1926
    %v2167 = vpack.c.b16 %v1935, %v1927
    %v2168 = vpack.c.b16 %v1936, %v1928
    %v2169 = vpack.c.b16 %v1937, %v1929
    %v2170 = vpack.c.b16 %v1938, %v1930
    %v2171 = vpack.c.b16 %v1947, %v1939
    %v2172 = vpack.c.b16 %v1948, %v1940
    %v2173 = vpack.c.b16 %v1949, %v1941
    %v2174 = vpack.c.b16 %v1950, %v1942
    %v2175 = vpack.c.b16 %v1951, %v1943
    %v2176 = vpack.c.b16 %v1952, %v1944
    %v2177 = vpack.c.b16 %v1953, %v1945
    %v2178 = vpack.c.b16 %v1954, %v1946
    %v2179 = vpack.c.b16 %v1963, %v1955
    %v2180 = vpack.c.b16 %v1964, %v1956
    %v2181 = vpack.c.b16 %v1965, %v1957
    %v2182 = vpack.c.b16 %v1966, %v1958
    %v2183 = vpack.c.b16 %v1967, %v1959
    %v2184 = vpack.c.b16 %v1968, %v1960
    %v2185 = vpack.c.b16 %v1969, %v1961
    %v2186 = vpack.c.b16 %v1970, %v1962
    %v2187 = vpack.c.b16 %v1979, %v1971
    %v2188 = vpack.c.b16 %v1980, %v1972
    %v2189 = vpack.c.b16 %v1981, %v1973
    %v2190 = vpack.c.b16 %v1982, %v1974
    %v2191 = vpack.c.b16 %v1983, %v1975
    %v2192 = vpack.c.b16 %v1984, %v1976
    %v2193 = vpack.c.b16 %v1985, %v1977
    %v2194 = vpack.c.b16 %v1986, %v1978
    %v2195 = vpack.c.b16 %v1995, %v1987
    %v2196 = vpack.c.b16 %v1996, %v1988
    %v2197 = vpack.c.b16 %v1997, %v1989
    %v2198 = vpack.c.b16 %v1998, %v1990
    %v2199 = vpack.c.b16 %v1999, %v1991
    %v2200 = vpack.c.b16 %v2000, %v1992
    %v2201 = vpack.c.b16 %v2001, %v1993
    %v2202 = vpack.c.b16 %v2002, %v1994
    %v2203 = vpack.c.b16 %v2011, %v2003
    %v2204 = vpack.c.b16 %v2012, %v2004
    %v2205 = vpack.c.b16 %v2013, %v2005
    %v2206 = vpack.c.b16 %v2014, %v2006
    %v2207 = vpack.c.b16 %v2015, %v2007
    %v2208 = vpack.c.b16 %v2016, %v2008
    %v2209 = vpack.c.b16 %v2017, %v2009
    %v2210 = vpack.c.b16 %v2018, %v2010
    %v2211 = vpack.c.b16 %v2027, %v2019
    %v2212 = vpack.c.b16 %v2028, %v2020
    %v2213 = vpack.c.b16 %v2029, %v2021
    %v2214 = vpack.c.b16 %v2030, %v2022
    %v2215 = vpack.c.b16 %v2031, %v2023
    %v2216 = vpack.c.b16 %v2032, %v2024
    %v2217 = vpack.c.b16 %v2033, %v2025
    %v2218 = vpack.c.b16 %v2034, %v2026
    %v2219 = vpack.c.b16 %v2043, %v2035
    %v2220 = vpack.c.b16 %v2044, %v2036
    %v2221 = vpack.c.b16 %v2045, %v2037
    %v2222 = vpack.c.b16 %v2046, %v2038
    %v2223 = vpack.c.b16 %v2047, %v2039
    %v2224 = vpack.c.b16 %v2048, %v2040
    %v2225 = vpack.c.b16 %v2049, %v2041
    %v2226 = vpack.c.b16 %v2050, %v2042
    %v2227 = vpack.c.b16 %v2059, %v2051
    %v2228 = vpack.c.b16 %v2060, %v2052
    %v2229 = vpack.c.b16 %v2061, %v2053
    %v2230 = vpack.c.b16 %v2062, %v2054
    %v2231 = vpack.c.b16 %v2063, %v2055
    %v2232 = vpack.c.b16 %v2064, %v2056
    %v2233 = vpack.c.b16 %v2065, %v2057
    %v2234 = vpack.c.b16 %v2066, %v2058
    %v2235 = vpack.c.b16 %v2075, %v2067
    %v2236 = vpack.c.b16 %v2076, %v2068
    %v2237 = vpack.c.b16 %v2077, %v2069
    %v2238 = vpack.c.b16 %v2078, %v2070
    %v2239 = vpack.c.b16 %v2079, %v2071
    %v2240 = vpack.c.b16 %v2080, %v2072
    %v2241 = vpack.c.b16 %v2081, %v2073
    %v2242 = vpack.c.b16 %v2082, %v2074
    %v2243 = vpack.c.b16 %v2091, %v2083
    %v2244 = vpack.c.b16 %v2092, %v2084
    %v2245 = vpack.c.b16 %v2093, %v2085
    %v2246 = vpack.c.b16 %v2094, %v2086
    %v2247 = vpack.c.b16 %v2095, %v2087
    %v2248 = vpack.c.b16 %v2096, %v2088
    %v2249 = vpack.c.b16 %v2097, %v2089
    %v2250 = vpack.c.b16 %v2098, %v2090
    %v2251 = vpack.c.b16 %v2107, %v2099
    %v2252 = vpack.c.b16 %v2108, %v2100
    %v2253 = vpack.c.b16 %v2109, %v2101
    %v2254 = vpack.c.b16 %v2110, %v2102
    %v2255 = vpack.c.b16 %v2111, %v2103
    %v2256 = vpack.c.b16 %v2112, %v2104
    %v2257 = vpack.c.b16 %v2113, %v2105
    %v2258 = vpack.c.b16 %v2114, %v2106
    %v2259 = vpack.c.b16 %v2123, %v2115
    %v2260 = vpack.c.b16 %v2124, %v2116
    %v2261 = vpack.c.b16 %v2125, %v2117
    %v2262 = vpack.c.b16 %v2126, %v2118
    %v2263 = vpack.c.b16 %v2127, %v2119
    %v2264 = vpack.c.b16 %v2128, %v2120
    %v2265 = vpack.c.b16 %v2129, %v2121
    %v2266 = vpack.c.b16 %v2130, %v2122
    %v2267 = vpack.c.b16 %v2139, %v2131
    %v2268 = vpack.c.b16 %v2140, %v2132
    %v2269 = vpack.c.b16 %v2141, %v2133
    %v2270 = vpack.c.b16 %v2142, %v2134
    %v2271 = vpack.c.b16 %v2143, %v2135
    %v2272 = vpack.c.b16 %v2144, %v2136
    %v2273 = vpack.c.b16 %v2145, %v2137
    %v2274 = vpack.c.b16 %v2146, %v2138
    %2403 = vmatprep.subr.bf16.mxu0 %v2148
    %2404 = vmatpush1.bf16.msra.mxu0 %v2147
    %2405 = vmatprep.subr.bf16.mxu0 %v2156
    %2406 = vmatpush1.bf16.msra.mxu0 %v2155
    %2407 = vmatprep.subr.bf16.mxu0 %v2164
    %2408 = vmatpush1.bf16.msra.mxu0 %v2163
    %2409 = vmatprep.subr.bf16.mxu0 %v2172
    %2410 = vmatpush1.bf16.msra.mxu0 %v2171
    %2411 = vmatprep.subr.bf16.mxu0 %v2180
    %2412 = vmatpush1.bf16.msra.mxu0 %v2179
    %2413 = vmatprep.subr.bf16.mxu0 %v2188
    %2414 = vmatpush1.bf16.msra.mxu0 %v2187
    %2415 = vmatprep.subr.bf16.mxu0 %v2196
    %2416 = vmatpush1.bf16.msra.mxu0 %v2195
    %2417 = vmatprep.subr.bf16.mxu0 %v2204
    %2418 = vmatpush1.bf16.msra.mxu0 %v2203
    %2419 = vmatprep.subr.bf16.mxu0 %v2212
    %2420 = vmatpush1.bf16.msra.mxu0 %v2211
    %2421 = vmatprep.subr.bf16.mxu0 %v2220
    %2422 = vmatpush1.bf16.msra.mxu0 %v2219
    %2423 = vmatprep.subr.bf16.mxu0 %v2228
    %2424 = vmatpush1.bf16.msra.mxu0 %v2227
    %2425 = vmatprep.subr.bf16.mxu0 %v2236
    %2426 = vmatpush1.bf16.msra.mxu0 %v2235
    %2427 = vmatprep.subr.bf16.mxu0 %v2244
    %2428 = vmatpush1.bf16.msra.mxu0 %v2243
    %2429 = vmatprep.subr.bf16.mxu0 %v2252
    %2430 = vmatpush1.bf16.msra.mxu0 %v2251
    %2431 = vmatprep.subr.bf16.mxu0 %v2260
    %2432 = vmatpush1.bf16.msra.mxu0 %v2259
    %2433 = vmatprep.subr.bf16.mxu0 %v2268
    %2434 = vmatpush1.bf16.msra.mxu0 %v2267
    %2435 = vmatprep.mubr.bf16.mxu0 %v1634
    %2436 = vmatmul.mubr.bf16.gmra.mrb[0].mxu0 %v1633
    %v2437 = vpop.f32.mrb[0].mxu0
    %v2438 = vadd.f32 0.0, %v2437
    %v2439 = vpop.f32.mrb[0].mxu0
    %v2440 = vadd.f32 0.0, %v2439
    %v2441 = vpop.f32.mrb[0].mxu0
    %v2442 = vadd.f32 0.0, %v2441
    %v2443 = vpop.f32.mrb[0].mxu0
    %v2444 = vadd.f32 0.0, %v2443
    %2445 = vdwg.mxu0
    %2446 = vmatprep.subr.bf16.mxu0 %v2150
    %2447 = vmatpush1.bf16.msra.mxu0 %v2149
    %2448 = vmatprep.subr.bf16.mxu0 %v2158
    %2449 = vmatpush1.bf16.msra.mxu0 %v2157
    %2450 = vmatprep.subr.bf16.mxu0 %v2166
    %2451 = vmatpush1.bf16.msra.mxu0 %v2165
    %2452 = vmatprep.subr.bf16.mxu0 %v2174
    %2453 = vmatpush1.bf16.msra.mxu0 %v2173
    %2454 = vmatprep.subr.bf16.mxu0 %v2182
    %2455 = vmatpush1.bf16.msra.mxu0 %v2181
    %2456 = vmatprep.subr.bf16.mxu0 %v2190
    %2457 = vmatpush1.bf16.msra.mxu0 %v2189
    %2458 = vmatprep.subr.bf16.mxu0 %v2198
    %2459 = vmatpush1.bf16.msra.mxu0 %v2197
    %2460 = vmatprep.subr.bf16.mxu0 %v2206
    %2461 = vmatpush1.bf16.msra.mxu0 %v2205
    %2462 = vmatprep.subr.bf16.mxu0 %v2214
    %2463 = vmatpush1.bf16.msra.mxu0 %v2213
    %2464 = vmatprep.subr.bf16.mxu0 %v2222
    %2465 = vmatpush1.bf16.msra.mxu0 %v2221
    %2466 = vmatprep.subr.bf16.mxu0 %v2230
    %2467 = vmatpush1.bf16.msra.mxu0 %v2229
    %2468 = vmatprep.subr.bf16.mxu0 %v2238
    %2469 = vmatpush1.bf16.msra.mxu0 %v2237
    %2470 = vmatprep.subr.bf16.mxu0 %v2246
    %2471 = vmatpush1.bf16.msra.mxu0 %v2245
    %2472 = vmatprep.subr.bf16.mxu0 %v2254
    %2473 = vmatpush1.bf16.msra.mxu0 %v2253
    %2474 = vmatprep.subr.bf16.mxu0 %v2262
    %2475 = vmatpush1.bf16.msra.mxu0 %v2261
    %2476 = vmatprep.subr.bf16.mxu0 %v2270
    %2477 = vmatpush1.bf16.msra.mxu0 %v2269
    %2478 = vmatprep.mubr.bf16.mxu0 %v1634
    %2479 = vmatmul.mubr.bf16.gmra.mrb[0].mxu0 %v1633
    %v2480 = vpop.f32.mrb[0].mxu0
    %v2481 = vadd.f32 0.0, %v2480
    %v2482 = vpop.f32.mrb[0].mxu0
    %v2483 = vadd.f32 0.0, %v2482
    %v2484 = vpop.f32.mrb[0].mxu0
    %v2485 = vadd.f32 0.0, %v2484
    %v2486 = vpop.f32.mrb[0].mxu0
    %v2487 = vadd.f32 0.0, %v2486
    %2488 = vdwg.mxu0
    %2489 = vmatprep.subr.bf16.mxu0 %v2152
    %2490 = vmatpush1.bf16.msra.mxu0 %v2151
    %2491 = vmatprep.subr.bf16.mxu0 %v2160
    %2492 = vmatpush1.bf16.msra.mxu0 %v2159
    %2493 = vmatprep.subr.bf16.mxu0 %v2168
    %2494 = vmatpush1.bf16.msra.mxu0 %v2167
    %2495 = vmatprep.subr.bf16.mxu0 %v2176
    %2496 = vmatpush1.bf16.msra.mxu0 %v2175
    %2497 = vmatprep.subr.bf16.mxu0 %v2184
    %2498 = vmatpush1.bf16.msra.mxu0 %v2183
    %2499 = vmatprep.subr.bf16.mxu0 %v2192
    %2500 = vmatpush1.bf16.msra.mxu0 %v2191
    %2501 = vmatprep.subr.bf16.mxu0 %v2200
    %2502 = vmatpush1.bf16.msra.mxu0 %v2199
    %2503 = vmatprep.subr.bf16.mxu0 %v2208
    %2504 = vmatpush1.bf16.msra.mxu0 %v2207
    %2505 = vmatprep.subr.bf16.mxu0 %v2216
    %2506 = vmatpush1.bf16.msra.mxu0 %v2215
    %2507 = vmatprep.subr.bf16.mxu0 %v2224
    %2508 = vmatpush1.bf16.msra.mxu0 %v2223
    %2509 = vmatprep.subr.bf16.mxu0 %v2232
    %2510 = vmatpush1.bf16.msra.mxu0 %v2231
    %2511 = vmatprep.subr.bf16.mxu0 %v2240
    %2512 = vmatpush1.bf16.msra.mxu0 %v2239
    %2513 = vmatprep.subr.bf16.mxu0 %v2248
    %2514 = vmatpush1.bf16.msra.mxu0 %v2247
    %2515 = vmatprep.subr.bf16.mxu0 %v2256
    %2516 = vmatpush1.bf16.msra.mxu0 %v2255
    %2517 = vmatprep.subr.bf16.mxu0 %v2264
    %2518 = vmatpush1.bf16.msra.mxu0 %v2263
    %2519 = vmatprep.subr.bf16.mxu0 %v2272
    %2520 = vmatpush1.bf16.msra.mxu0 %v2271
    %2521 = vmatprep.mubr.bf16.mxu0 %v1634
    %2522 = vmatmul.mubr.bf16.gmra.mrb[0].mxu0 %v1633
    %v2523 = vpop.f32.mrb[0].mxu0
    %v2524 = vadd.f32 0.0, %v2523
    %v2525 = vpop.f32.mrb[0].mxu0
    %v2526 = vadd.f32 0.0, %v2525
    %v2527 = vpop.f32.mrb[0].mxu0
    %v2528 = vadd.f32 0.0, %v2527
    %v2529 = vpop.f32.mrb[0].mxu0
    %v2530 = vadd.f32 0.0, %v2529
    %2531 = vdwg.mxu0
    %2532 = vmatprep.subr.bf16.mxu0 %v2154
    %2533 = vmatpush1.bf16.msra.mxu0 %v2153
    %2534 = vmatprep.subr.bf16.mxu0 %v2162
    %2535 = vmatpush1.bf16.msra.mxu0 %v2161
    %2536 = vmatprep.subr.bf16.mxu0 %v2170
    %2537 = vmatpush1.bf16.msra.mxu0 %v2169
    %2538 = vmatprep.subr.bf16.mxu0 %v2178
    %2539 = vmatpush1.bf16.msra.mxu0 %v2177
    %2540 = vmatprep.subr.bf16.mxu0 %v2186
    %2541 = vmatpush1.bf16.msra.mxu0 %v2185
    %2542 = vmatprep.subr.bf16.mxu0 %v2194
    %2543 = vmatpush1.bf16.msra.mxu0 %v2193
    %2544 = vmatprep.subr.bf16.mxu0 %v2202
    %2545 = vmatpush1.bf16.msra.mxu0 %v2201
    %2546 = vmatprep.subr.bf16.mxu0 %v2210
    %2547 = vmatpush1.bf16.msra.mxu0 %v2209
    %2548 = vmatprep.subr.bf16.mxu0 %v2218
    %2549 = vmatpush1.bf16.msra.mxu0 %v2217
    %2550 = vmatprep.subr.bf16.mxu0 %v2226
    %2551 = vmatpush1.bf16.msra.mxu0 %v2225
    %2552 = vmatprep.subr.bf16.mxu0 %v2234
    %2553 = vmatpush1.bf16.msra.mxu0 %v2233
    %2554 = vmatprep.subr.bf16.mxu0 %v2242
    %2555 = vmatpush1.bf16.msra.mxu0 %v2241
    %2556 = vmatprep.subr.bf16.mxu0 %v2250
    %2557 = vmatpush1.bf16.msra.mxu0 %v2249
    %2558 = vmatprep.subr.bf16.mxu0 %v2258
    %2559 = vmatpush1.bf16.msra.mxu0 %v2257
    %2560 = vmatprep.subr.bf16.mxu0 %v2266
    %2561 = vmatpush1.bf16.msra.mxu0 %v2265
    %2562 = vmatprep.subr.bf16.mxu0 %v2274
    %2563 = vmatpush1.bf16.msra.mxu0 %v2273
    %2564 = vmatprep.mubr.bf16.mxu0 %v1634
    %2565 = vmatmul.mubr.bf16.gmra.mrb[0].mxu0 %v1633
    %v2566 = vpop.f32.mrb[0].mxu0
    %v2567 = vadd.f32 0.0, %v2566
    %v2568 = vpop.f32.mrb[0].mxu0
    %v2569 = vadd.f32 0.0, %v2568
    %v2570 = vpop.f32.mrb[0].mxu0
    %v2571 = vadd.f32 0.0, %v2570
    %v2572 = vpop.f32.mrb[0].mxu0
    %v2573 = vadd.f32 0.0, %v2572
    %2574 = vdwg.mxu0
    %v2575 = vxor.u32 %v2438, 2147483648
    %v2576 = vxor.u32 %v2440, 2147483648
    %v2577 = vxor.u32 %v2481, 2147483648
    %v2578 = vxor.u32 %v2483, 2147483648
    %v2579 = vxor.u32 %v2442, 2147483648
    %v2580 = vxor.u32 %v2444, 2147483648
    %v2581 = vxor.u32 %v2485, 2147483648
    %v2582 = vxor.u32 %v2487, 2147483648
    %v2583 = vmul.f32 %v2575, 1.442695
    %v2584 = vpow.pop %v2583
    %v2585 = vmul.f32 %v2576, 1.442695
    %v2586 = vpow.pop %v2585
    %v2587 = vmul.f32 %v2577, 1.442695
    %v2588 = vpow.pop %v2587
    %v2589 = vmul.f32 %v2578, 1.442695
    %v2590 = vpow.pop %v2589
    %v2591 = vmul.f32 %v2579, 1.442695
    %v2592 = vpow.pop %v2591
    %v2593 = vmul.f32 %v2580, 1.442695
    %v2594 = vpow.pop %v2593
    %v2595 = vmul.f32 %v2581, 1.442695
    %v2596 = vpow.pop %v2595
    %v2597 = vmul.f32 %v2582, 1.442695
    %v2598 = vpow.pop %v2597
    %v2599 = vadd.f32 %v2584, 1.0
    %v2600 = vadd.f32 %v2586, 1.0
    %v2601 = vadd.f32 %v2588, 1.0
    %v2602 = vadd.f32 %v2590, 1.0
    %v2603 = vadd.f32 %v2592, 1.0
    %v2604 = vadd.f32 %v2594, 1.0
    %v2605 = vadd.f32 %v2596, 1.0
    %v2606 = vadd.f32 %v2598, 1.0
    %v2607 = vrcp.pop %v2599
    %v2608 = vmul.f32 1.0, %v2607
    %v2609 = vrcp.pop %v2600
    %v2610 = vmul.f32 1.0, %v2609
    %v2611 = vrcp.pop %v2601
    %v2612 = vmul.f32 1.0, %v2611
    %v2613 = vrcp.pop %v2602
    %v2614 = vmul.f32 1.0, %v2613
    %v2615 = vrcp.pop %v2603
    %v2616 = vmul.f32 1.0, %v2615
    %v2617 = vrcp.pop %v2604
    %v2618 = vmul.f32 1.0, %v2617
    %v2619 = vrcp.pop %v2605
    %v2620 = vmul.f32 1.0, %v2619
    %v2621 = vrcp.pop %v2606
    %v2622 = vmul.f32 1.0, %v2621
    %v2623 = vmul.f32 %v2438, %v2608
    %v2624 = vmul.f32 %v2440, %v2610
    %v2625 = vmul.f32 %v2481, %v2612
    %v2626 = vmul.f32 %v2483, %v2614
    %v2627 = vmul.f32 %v2442, %v2616
    %v2628 = vmul.f32 %v2444, %v2618
    %v2629 = vmul.f32 %v2485, %v2620
    %v2630 = vmul.f32 %v2487, %v2622
    %v2631 = vmul.f32 %v2623, %v2524
    %v2632 = vmul.f32 %v2624, %v2526
    %v2633 = vmul.f32 %v2625, %v2567
    %v2634 = vmul.f32 %v2626, %v2569
    %v2635 = vmul.f32 %v2627, %v2528
    %v2636 = vmul.f32 %v2628, %v2530
    %v2637 = vmul.f32 %v2629, %v2571
    %v2638 = vmul.f32 %v2630, %v2573
    %v2639 = vpack.c.bf16 %v2635, %v2631
    %v2640 = vpack.c.bf16 %v2636, %v2632
    %v2641 = vpack.c.bf16 %v2637, %v2633
    %v2642 = vpack.c.bf16 %v2638, %v2634
    %v2643 = vld [vmem:[#allocation13] sm:$0xff]
    %v2644 = vld [vmem:[#allocation13 + $0x8] sm:$0xff]
    %v2645 = vld [vmem:[#allocation13 + $0x10] sm:$0xff]
    %v2646 = vld [vmem:[#allocation13 + $0x18] sm:$0xff]
    %v2647 = vld [vmem:[#allocation13 + $0x20] sm:$0xff]
    %v2648 = vld [vmem:[#allocation13 + $0x28] sm:$0xff]
    %v2649 = vld [vmem:[#allocation13 + $0x30] sm:$0xff]
    %v2650 = vld [vmem:[#allocation13 + $0x38] sm:$0xff]
    %v2651 = vld [vmem:[#allocation13 + $0x40] sm:$0xff]
    %v2652 = vld [vmem:[#allocation13 + $0x48] sm:$0xff]
    %v2653 = vld [vmem:[#allocation13 + $0x50] sm:$0xff]
    %v2654 = vld [vmem:[#allocation13 + $0x58] sm:$0xff]
    %v2655 = vld [vmem:[#allocation13 + $0x60] sm:$0xff]
    %v2656 = vld [vmem:[#allocation13 + $0x68] sm:$0xff]
    %v2657 = vld [vmem:[#allocation13 + $0x70] sm:$0xff]
    %v2658 = vld [vmem:[#allocation13 + $0x78] sm:$0xff]
    %v2659 = vld [vmem:[#allocation13 + $0x80] sm:$0xff]
    %v2660 = vld [vmem:[#allocation13 + $0x88] sm:$0xff]
    %v2661 = vld [vmem:[#allocation13 + $0x90] sm:$0xff]
    %v2662 = vld [vmem:[#allocation13 + $0x98] sm:$0xff]
    %v2663 = vld [vmem:[#allocation13 + $0xa0] sm:$0xff]
    %v2664 = vld [vmem:[#allocation13 + $0xa8] sm:$0xff]
    %v2665 = vld [vmem:[#allocation13 + $0xb0] sm:$0xff]
    %v2666 = vld [vmem:[#allocation13 + $0xb8] sm:$0xff]
    %v2667 = vld [vmem:[#allocation13 + $0xc0] sm:$0xff]
    %v2668 = vld [vmem:[#allocation13 + $0xc8] sm:$0xff]
    %v2669 = vld [vmem:[#allocation13 + $0xd0] sm:$0xff]
    %v2670 = vld [vmem:[#allocation13 + $0xd8] sm:$0xff]
    %v2671 = vld [vmem:[#allocation13 + $0xe0] sm:$0xff]
    %v2672 = vld [vmem:[#allocation13 + $0xe8] sm:$0xff]
    %v2673 = vld [vmem:[#allocation13 + $0xf0] sm:$0xff]
    %v2674 = vld [vmem:[#allocation13 + $0xf8] sm:$0xff]
    %v2675 = vld [vmem:[#allocation13 + $0x100] sm:$0xff]
    %v2676 = vld [vmem:[#allocation13 + $0x108] sm:$0xff]
    %v2677 = vld [vmem:[#allocation13 + $0x110] sm:$0xff]
    %v2678 = vld [vmem:[#allocation13 + $0x118] sm:$0xff]
    %v2679 = vld [vmem:[#allocation13 + $0x120] sm:$0xff]
    %v2680 = vld [vmem:[#allocation13 + $0x128] sm:$0xff]
    %v2681 = vld [vmem:[#allocation13 + $0x130] sm:$0xff]
    %v2682 = vld [vmem:[#allocation13 + $0x138] sm:$0xff]
    %v2683 = vld [vmem:[#allocation13 + $0x140] sm:$0xff]
    %v2684 = vld [vmem:[#allocation13 + $0x148] sm:$0xff]
    %v2685 = vld [vmem:[#allocation13 + $0x150] sm:$0xff]
    %v2686 = vld [vmem:[#allocation13 + $0x158] sm:$0xff]
    %v2687 = vld [vmem:[#allocation13 + $0x160] sm:$0xff]
    %v2688 = vld [vmem:[#allocation13 + $0x168] sm:$0xff]
    %v2689 = vld [vmem:[#allocation13 + $0x170] sm:$0xff]
    %v2690 = vld [vmem:[#allocation13 + $0x178] sm:$0xff]
    %v2691 = vld [vmem:[#allocation13 + $0x180] sm:$0xff]
    %v2692 = vld [vmem:[#allocation13 + $0x188] sm:$0xff]
    %v2693 = vld [vmem:[#allocation13 + $0x190] sm:$0xff]
    %v2694 = vld [vmem:[#allocation13 + $0x198] sm:$0xff]
    %v2695 = vld [vmem:[#allocation13 + $0x1a0] sm:$0xff]
    %v2696 = vld [vmem:[#allocation13 + $0x1a8] sm:$0xff]
    %v2697 = vld [vmem:[#allocation13 + $0x1b0] sm:$0xff]
    %v2698 = vld [vmem:[#allocation13 + $0x1b8] sm:$0xff]
    %v2699 = vld [vmem:[#allocation13 + $0x1c0] sm:$0xff]
    %v2700 = vld [vmem:[#allocation13 + $0x1c8] sm:$0xff]
    %v2701 = vld [vmem:[#allocation13 + $0x1d0] sm:$0xff]
    %v2702 = vld [vmem:[#allocation13 + $0x1d8] sm:$0xff]
    %v2703 = vld [vmem:[#allocation13 + $0x1e0] sm:$0xff]
    %v2704 = vld [vmem:[#allocation13 + $0x1e8] sm:$0xff]
    %v2705 = vld [vmem:[#allocation13 + $0x1f0] sm:$0xff]
    %v2706 = vld [vmem:[#allocation13 + $0x1f8] sm:$0xff]
    %v2771 = vunpack.c.l.b16 %v2643
    %v2772 = vunpack.c.h.b16 %v2643
    %v2773 = vunpack.c.l.b16 %v2644
    %v2774 = vunpack.c.h.b16 %v2644
    %v2775 = vunpack.c.l.b16 %v2645
    %v2776 = vunpack.c.h.b16 %v2645
    %v2777 = vunpack.c.l.b16 %v2646
    %v2778 = vunpack.c.h.b16 %v2646
    %v2779 = vunpack.c.l.b16 %v2647
    %v2780 = vunpack.c.h.b16 %v2647
    %v2781 = vunpack.c.l.b16 %v2648
    %v2782 = vunpack.c.h.b16 %v2648
    %v2783 = vunpack.c.l.b16 %v2649
    %v2784 = vunpack.c.h.b16 %v2649
    %v2785 = vunpack.c.l.b16 %v2650
    %v2786 = vunpack.c.h.b16 %v2650
    %v2787 = vunpack.c.l.b16 %v2651
    %v2788 = vunpack.c.h.b16 %v2651
    %v2789 = vunpack.c.l.b16 %v2652
    %v2790 = vunpack.c.h.b16 %v2652
    %v2791 = vunpack.c.l.b16 %v2653
    %v2792 = vunpack.c.h.b16 %v2653
    %v2793 = vunpack.c.l.b16 %v2654
    %v2794 = vunpack.c.h.b16 %v2654
    %v2795 = vunpack.c.l.b16 %v2655
    %v2796 = vunpack.c.h.b16 %v2655
    %v2797 = vunpack.c.l.b16 %v2656
    %v2798 = vunpack.c.h.b16 %v2656
    %v2799 = vunpack.c.l.b16 %v2657
    %v2800 = vunpack.c.h.b16 %v2657
    %v2801 = vunpack.c.l.b16 %v2658
    %v2802 = vunpack.c.h.b16 %v2658
    %v2803 = vunpack.c.l.b16 %v2659
    %v2804 = vunpack.c.h.b16 %v2659
    %v2805 = vunpack.c.l.b16 %v2660
    %v2806 = vunpack.c.h.b16 %v2660
    %v2807 = vunpack.c.l.b16 %v2661
    %v2808 = vunpack.c.h.b16 %v2661
    %v2809 = vunpack.c.l.b16 %v2662
    %v2810 = vunpack.c.h.b16 %v2662
    %v2811 = vunpack.c.l.b16 %v2663
    %v2812 = vunpack.c.h.b16 %v2663
    %v2813 = vunpack.c.l.b16 %v2664
    %v2814 = vunpack.c.h.b16 %v2664
    %v2815 = vunpack.c.l.b16 %v2665
    %v2816 = vunpack.c.h.b16 %v2665
    %v2817 = vunpack.c.l.b16 %v2666
    %v2818 = vunpack.c.h.b16 %v2666
    %v2819 = vunpack.c.l.b16 %v2667
    %v2820 = vunpack.c.h.b16 %v2667
    %v2821 = vunpack.c.l.b16 %v2668
    %v2822 = vunpack.c.h.b16 %v2668
    %v2823 = vunpack.c.l.b16 %v2669
    %v2824 = vunpack.c.h.b16 %v2669
    %v2825 = vunpack.c.l.b16 %v2670
    %v2826 = vunpack.c.h.b16 %v2670
    %v2827 = vunpack.c.l.b16 %v2671
    %v2828 = vunpack.c.h.b16 %v2671
    %v2829 = vunpack.c.l.b16 %v2672
    %v2830 = vunpack.c.h.b16 %v2672
    %v2831 = vunpack.c.l.b16 %v2673
    %v2832 = vunpack.c.h.b16 %v2673
    %v2833 = vunpack.c.l.b16 %v2674
    %v2834 = vunpack.c.h.b16 %v2674
    %v2835 = vunpack.c.l.b16 %v2675
    %v2836 = vunpack.c.h.b16 %v2675
    %v2837 = vunpack.c.l.b16 %v2676
    %v2838 = vunpack.c.h.b16 %v2676
    %v2839 = vunpack.c.l.b16 %v2677
    %v2840 = vunpack.c.h.b16 %v2677
    %v2841 = vunpack.c.l.b16 %v2678
    %v2842 = vunpack.c.h.b16 %v2678
    %v2843 = vunpack.c.l.b16 %v2679
    %v2844 = vunpack.c.h.b16 %v2679
    %v2845 = vunpack.c.l.b16 %v2680
    %v2846 = vunpack.c.h.b16 %v2680
    %v2847 = vunpack.c.l.b16 %v2681
    %v2848 = vunpack.c.h.b16 %v2681
    %v2849 = vunpack.c.l.b16 %v2682
    %v2850 = vunpack.c.h.b16 %v2682
    %v2851 = vunpack.c.l.b16 %v2683
    %v2852 = vunpack.c.h.b16 %v2683
    %v2853 = vunpack.c.l.b16 %v2684
    %v2854 = vunpack.c.h.b16 %v2684
    %v2855 = vunpack.c.l.b16 %v2685
    %v2856 = vunpack.c.h.b16 %v2685
    %v2857 = vunpack.c.l.b16 %v2686
    %v2858 = vunpack.c.h.b16 %v2686
    %v2859 = vunpack.c.l.b16 %v2687
    %v2860 = vunpack.c.h.b16 %v2687
    %v2861 = vunpack.c.l.b16 %v2688
    %v2862 = vunpack.c.h.b16 %v2688
    %v2863 = vunpack.c.l.b16 %v2689
    %v2864 = vunpack.c.h.b16 %v2689
    %v2865 = vunpack.c.l.b16 %v2690
    %v2866 = vunpack.c.h.b16 %v2690
    %v2867 = vunpack.c.l.b16 %v2691
    %v2868 = vunpack.c.h.b16 %v2691
    %v2869 = vunpack.c.l.b16 %v2692
    %v2870 = vunpack.c.h.b16 %v2692
    %v2871 = vunpack.c.l.b16 %v2693
    %v2872 = vunpack.c.h.b16 %v2693
    %v2873 = vunpack.c.l.b16 %v2694
    %v2874 = vunpack.c.h.b16 %v2694
    %v2875 = vunpack.c.l.b16 %v2695
    %v2876 = vunpack.c.h.b16 %v2695
    %v2877 = vunpack.c.l.b16 %v2696
    %v2878 = vunpack.c.h.b16 %v2696
    %v2879 = vunpack.c.l.b16 %v2697
    %v2880 = vunpack.c.h.b16 %v2697
    %v2881 = vunpack.c.l.b16 %v2698
    %v2882 = vunpack.c.h.b16 %v2698
    %v2883 = vunpack.c.l.b16 %v2699
    %v2884 = vunpack.c.h.b16 %v2699
    %v2885 = vunpack.c.l.b16 %v2700
    %v2886 = vunpack.c.h.b16 %v2700
    %v2887 = vunpack.c.l.b16 %v2701
    %v2888 = vunpack.c.h.b16 %v2701
    %v2889 = vunpack.c.l.b16 %v2702
    %v2890 = vunpack.c.h.b16 %v2702
    %v2891 = vunpack.c.l.b16 %v2703
    %v2892 = vunpack.c.h.b16 %v2703
    %v2893 = vunpack.c.l.b16 %v2704
    %v2894 = vunpack.c.h.b16 %v2704
    %v2895 = vunpack.c.l.b16 %v2705
    %v2896 = vunpack.c.h.b16 %v2705
    %v2897 = vunpack.c.l.b16 %v2706
    %v2898 = vunpack.c.h.b16 %v2706
    %v2899 = vpack.c.b16 %v2773, %v2771
    %v2900 = vpack.c.b16 %v2774, %v2772
    %v2901 = vpack.c.b16 %v2777, %v2775
    %v2902 = vpack.c.b16 %v2778, %v2776
    %v2903 = vpack.c.b16 %v2781, %v2779
    %v2904 = vpack.c.b16 %v2782, %v2780
    %v2905 = vpack.c.b16 %v2785, %v2783
    %v2906 = vpack.c.b16 %v2786, %v2784
    %v2907 = vpack.c.b16 %v2789, %v2787
    %v2908 = vpack.c.b16 %v2790, %v2788
    %v2909 = vpack.c.b16 %v2793, %v2791
    %v2910 = vpack.c.b16 %v2794, %v2792
    %v2911 = vpack.c.b16 %v2797, %v2795
    %v2912 = vpack.c.b16 %v2798, %v2796
    %v2913 = vpack.c.b16 %v2801, %v2799
    %v2914 = vpack.c.b16 %v2802, %v2800
    %v2915 = vpack.c.b16 %v2805, %v2803
    %v2916 = vpack.c.b16 %v2806, %v2804
    %v2917 = vpack.c.b16 %v2809, %v2807
    %v2918 = vpack.c.b16 %v2810, %v2808
    %v2919 = vpack.c.b16 %v2813, %v2811
    %v2920 = vpack.c.b16 %v2814, %v2812
    %v2921 = vpack.c.b16 %v2817, %v2815
    %v2922 = vpack.c.b16 %v2818, %v2816
    %v2923 = vpack.c.b16 %v2821, %v2819
    %v2924 = vpack.c.b16 %v2822, %v2820
    %v2925 = vpack.c.b16 %v2825, %v2823
    %v2926 = vpack.c.b16 %v2826, %v2824
    %v2927 = vpack.c.b16 %v2829, %v2827
    %v2928 = vpack.c.b16 %v2830, %v2828
    %v2929 = vpack.c.b16 %v2833, %v2831
    %v2930 = vpack.c.b16 %v2834, %v2832
    %v2931 = vpack.c.b16 %v2837, %v2835
    %v2932 = vpack.c.b16 %v2838, %v2836
    %v2933 = vpack.c.b16 %v2841, %v2839
    %v2934 = vpack.c.b16 %v2842, %v2840
    %v2935 = vpack.c.b16 %v2845, %v2843
    %v2936 = vpack.c.b16 %v2846, %v2844
    %v2937 = vpack.c.b16 %v2849, %v2847
    %v2938 = vpack.c.b16 %v2850, %v2848
    %v2939 = vpack.c.b16 %v2853, %v2851
    %v2940 = vpack.c.b16 %v2854, %v2852
    %v2941 = vpack.c.b16 %v2857, %v2855
    %v2942 = vpack.c.b16 %v2858, %v2856
    %v2943 = vpack.c.b16 %v2861, %v2859
    %v2944 = vpack.c.b16 %v2862, %v2860
    %v2945 = vpack.c.b16 %v2865, %v2863
    %v2946 = vpack.c.b16 %v2866, %v2864
    %v2947 = vpack.c.b16 %v2869, %v2867
    %v2948 = vpack.c.b16 %v2870, %v2868
    %v2949 = vpack.c.b16 %v2873, %v2871
    %v2950 = vpack.c.b16 %v2874, %v2872
    %v2951 = vpack.c.b16 %v2877, %v2875
    %v2952 = vpack.c.b16 %v2878, %v2876
    %v2953 = vpack.c.b16 %v2881, %v2879
    %v2954 = vpack.c.b16 %v2882, %v2880
    %v2955 = vpack.c.b16 %v2885, %v2883
    %v2956 = vpack.c.b16 %v2886, %v2884
    %v2957 = vpack.c.b16 %v2889, %v2887
    %v2958 = vpack.c.b16 %v2890, %v2888
    %v2959 = vpack.c.b16 %v2893, %v2891
    %v2960 = vpack.c.b16 %v2894, %v2892
    %v2961 = vpack.c.b16 %v2897, %v2895
    %v2962 = vpack.c.b16 %v2898, %v2896
    %3027 = vmatprep.subr.bf16.mxu0 %v2900
    %3028 = vmatpush1.bf16.msra.mxu0 %v2899
    %3029 = vmatprep.subr.bf16.mxu0 %v2902
    %3030 = vmatpush1.bf16.msra.mxu0 %v2901
    %3031 = vmatprep.subr.bf16.mxu0 %v2904
    %3032 = vmatpush1.bf16.msra.mxu0 %v2903
    %3033 = vmatprep.subr.bf16.mxu0 %v2906
    %3034 = vmatpush1.bf16.msra.mxu0 %v2905
    %3035 = vmatprep.subr.bf16.mxu0 %v2908
    %3036 = vmatpush1.bf16.msra.mxu0 %v2907
    %3037 = vmatprep.subr.bf16.mxu0 %v2910
    %3038 = vmatpush1.bf16.msra.mxu0 %v2909
    %3039 = vmatprep.subr.bf16.mxu0 %v2912
    %3040 = vmatpush1.bf16.msra.mxu0 %v2911
    %3041 = vmatprep.subr.bf16.mxu0 %v2914
    %3042 = vmatpush1.bf16.msra.mxu0 %v2913
    %3043 = vmatprep.subr.bf16.mxu0 %v2916
    %3044 = vmatpush1.bf16.msra.mxu0 %v2915
    %3045 = vmatprep.subr.bf16.mxu0 %v2918
    %3046 = vmatpush1.bf16.msra.mxu0 %v2917
    %3047 = vmatprep.subr.bf16.mxu0 %v2920
    %3048 = vmatpush1.bf16.msra.mxu0 %v2919
    %3049 = vmatprep.subr.bf16.mxu0 %v2922
    %3050 = vmatpush1.bf16.msra.mxu0 %v2921
    %3051 = vmatprep.subr.bf16.mxu0 %v2924
    %3052 = vmatpush1.bf16.msra.mxu0 %v2923
    %3053 = vmatprep.subr.bf16.mxu0 %v2926
    %3054 = vmatpush1.bf16.msra.mxu0 %v2925
    %3055 = vmatprep.subr.bf16.mxu0 %v2928
    %3056 = vmatpush1.bf16.msra.mxu0 %v2927
    %3057 = vmatprep.subr.bf16.mxu0 %v2930
    %3058 = vmatpush1.bf16.msra.mxu0 %v2929
    %3059 = vmatprep.mubr.bf16.mxu0 %v2640
    %3060 = vmatmul.mubr.bf16.gmra.mrb[0].mxu0 %v2639
    %v3061 = vpop.f32.mrb[0].mxu0
    %v3062 = vadd.f32 0.0, %v3061
    %v3063 = vpop.f32.mrb[0].mxu0
    %v3064 = vadd.f32 0.0, %v3063
    %v3065 = vpop.f32.mrb[0].mxu0
    %v3066 = vadd.f32 0.0, %v3065
    %v3067 = vpop.f32.mrb[0].mxu0
    %v3068 = vadd.f32 0.0, %v3067
    %3069 = vdwg.mxu0
    %3070 = vmatprep.subr.bf16.mxu0 %v2932
    %3071 = vmatpush1.bf16.msra.mxu0 %v2931
    %3072 = vmatprep.subr.bf16.mxu0 %v2934
    %3073 = vmatpush1.bf16.msra.mxu0 %v2933
    %3074 = vmatprep.subr.bf16.mxu0 %v2936
    %3075 = vmatpush1.bf16.msra.mxu0 %v2935
    %3076 = vmatprep.subr.bf16.mxu0 %v2938
    %3077 = vmatpush1.bf16.msra.mxu0 %v2937
    %3078 = vmatprep.subr.bf16.mxu0 %v2940
    %3079 = vmatpush1.bf16.msra.mxu0 %v2939
    %3080 = vmatprep.subr.bf16.mxu0 %v2942
    %3081 = vmatpush1.bf16.msra.mxu0 %v2941
    %3082 = vmatprep.subr.bf16.mxu0 %v2944
    %3083 = vmatpush1.bf16.msra.mxu0 %v2943
    %3084 = vmatprep.subr.bf16.mxu0 %v2946
    %3085 = vmatpush1.bf16.msra.mxu0 %v2945
    %3086 = vmatprep.subr.bf16.mxu0 %v2948
    %3087 = vmatpush1.bf16.msra.mxu0 %v2947
    %3088 = vmatprep.subr.bf16.mxu0 %v2950
    %3089 = vmatpush1.bf16.msra.mxu0 %v2949
    %3090 = vmatprep.subr.bf16.mxu0 %v2952
    %3091 = vmatpush1.bf16.msra.mxu0 %v2951
    %3092 = vmatprep.subr.bf16.mxu0 %v2954
    %3093 = vmatpush1.bf16.msra.mxu0 %v2953
    %3094 = vmatprep.subr.bf16.mxu0 %v2956
    %3095 = vmatpush1.bf16.msra.mxu0 %v2955
    %3096 = vmatprep.subr.bf16.mxu0 %v2958
    %3097 = vmatpush1.bf16.msra.mxu0 %v2957
    %3098 = vmatprep.subr.bf16.mxu0 %v2960
    %3099 = vmatpush1.bf16.msra.mxu0 %v2959
    %3100 = vmatprep.subr.bf16.mxu0 %v2962
    %3101 = vmatpush1.bf16.msra.mxu0 %v2961
    %3102 = vmatprep.mubr.bf16.mxu0 %v2642
    %3103 = vmatmul.mubr.bf16.gmra.mrb[0].mxu0 %v2641
    %v3104 = vpop.f32.mrb[0].mxu0
    %v3105 = vadd.f32 %v3062, %v3104
    %v3106 = vpop.f32.mrb[0].mxu0
    %v3107 = vadd.f32 %v3064, %v3106
    %v3108 = vpop.f32.mrb[0].mxu0
    %v3109 = vadd.f32 %v3066, %v3108
    %v3110 = vpop.f32.mrb[0].mxu0
    %v3111 = vadd.f32 %v3068, %v3110
    %3112 = vdwg.mxu0
    %v3113 = vadd.f32 %v1593, %v3105
    %v3114 = vadd.f32 %v1594, %v3107
    %v3115 = vadd.f32 %v1595, %v3109
    %v3116 = vadd.f32 %v1596, %v3111
    %3117 = vst [vmem:[#allocation14] sm:$0xff] %v3113
    %3118 = vst [vmem:[#allocation14 + $0x8] sm:$0xff] %v3114
    %3119 = vst [vmem:[#allocation14 + $0x10] sm:$0xff] %v3115
    %3120 = vst [vmem:[#allocation14 + $0x18] sm:$0xff] %v3116
    // Predicated region
    $region70: #{llama_block.1} parent=1 // pred_check
      _
    $region71: #{llama_block.1} parent=1 // pred_check_branch
      %3122 = sbr.rel (0) target = $region73
    $region72: #{llama_block.1} parent=1 // pred_region
      %s3124 = ssub.s32 512, 512
      %3125 = vsyncadd [#allocation4], %s3124
      %s3126 = sshll.u32 [#allocation14], 4
      %s3127 = int_to_ptr.vmem [resolvable:$true] %s3126
      %3132 = dma.vmem_to_hbm [thread:$0]  %s3127, 512, %s10, [#allocation4], 256, 256, 16
    $region73: #{llama_block.1} parent=1 // pred_fallthru
      _
    // Predicated region
    $region74: #{llama_block.1} parent=1 // pred_check
      _
    $region75: #{llama_block.1} parent=1 // pred_check_branch
      %3134 = sbr.rel (0) target = $region77
    $region76: #{llama_block.1} parent=1 // pred_region
      %s3136 = ssub.s32 512, 512
      %3137 = vsyncadd [#allocation16], %s3136
      %s3138 = sshll.u32 [#allocation15], 4
      %s3139 = int_to_ptr.vmem [resolvable:$true] %s3138
      %3144 = dma.vmem_to_hbm [thread:$0]  %s3139, 512, %s11, [#allocation16], 128, 128, 8
    $region77: #{llama_block.1} parent=1 // pred_fallthru
      _
    // Predicated region
    $region78: #{llama_block.1} parent=1 // pred_check
      _
    $region79: #{llama_block.1} parent=1 // pred_check_branch
      %3146 = sbr.rel (0) target = $region81
    $region80: #{llama_block.1} parent=1 // pred_region
      %s3148 = ssub.s32 512, 512
      %3149 = vsyncadd [#allocation16], %s3148
      %s3150 = sshll.u32 [#allocation17], 4
      %s3151 = int_to_ptr.vmem [resolvable:$true] %s3150
      %3156 = dma.vmem_to_hbm [thread:$0]  %s3151, 512, %s12, [#allocation16], 128, 128, 8
    $region81: #{llama_block.1} parent=1 // pred_fallthru
      _
    // Predicated region
    $region82: #{llama_block.1} parent=1 // pred_check
      _
    $region83: #{llama_block.1} parent=1 // pred_check_branch
      %3158 = sbr.rel (0) target = $region85
    $region84: #{llama_block.1} parent=1 // pred_region
      %3159 = dma.done [#allocation4], 512
    $region85: #{llama_block.1} parent=1 // pred_fallthru
      _
    // Predicated region
    $region86: #{llama_block.1} parent=1 // pred_check
      _
    $region87: #{llama_block.1} parent=1 // pred_check_branch
      %3161 = sbr.rel (0) target = $region89
    $region88: #{llama_block.1} parent=1 // pred_region
      %3162 = dma.done [#allocation16], 512
    $region89: #{llama_block.1} parent=1 // pred_fallthru
      _
    // Predicated region
    $region90: #{llama_block.1} parent=1 // pred_check
      _
    $region91: #{llama_block.1} parent=1 // pred_check_branch
      %3164 = sbr.rel (0) target = $region93
    $region92: #{llama_block.1} parent=1 // pred_region
      %3165 = dma.done [#allocation16], 512
    $region93: #{llama_block.1} parent=1 // pred_fallthru
      _
    %3166 = vsyncpa [#allocation3], 1
    %3167 = vsyncpa [#allocation6], 1
    %3168 = vsyncpa [#allocation9], 1
    %3169 = vsyncpa [#allocation12], 1
    %3170 = vsyncpa [#allocation4], 1
    %3171 = vsyncpa [#allocation16], 1

</llo_original>
